<compile_context>
chip_gen: v5e
topology: v5e:2x2
jax: 0.10.0
libtpu: 0.0.40
codegen_flags: <defaults>
</compile_context>

<pallas_src>
import jax
import jax.numpy as jnp
from jax.experimental import pallas as pl
from jax.experimental.pallas import tpu as pltpu


def _round_up(x, m):
    return (x + m - 1) // m * m


# -----------------------------------------------------------------------------
# Fused ResidualBlock kernel (one grid step == one batch sample)
# -----------------------------------------------------------------------------
def _make_resblock_kernel(n_out, wp, has_skip, eps=1e-5):
    """Operates on one flattened zero-padded bf16 image slab kept in VMEM.

    Output rows are indexed on the padded (H x Wp) grid; rows outside the
    valid HxW window are junk, excluded from GroupNorm statistics via `mask`
    and discarded by the wrapper.
    """
    offsets = [di * wp + dj for di in range(3) for dj in range(3)]
    id_off = wp + 1  # flat offset of x[h, w] inside the zero-padded slab

    def kernel(x_ref, mask_ref, A_ref, w1_ref, w2_ref, vec_ref, *rest):
        if has_skip:
            wsk_ref, o_ref = rest
        else:
            (o_ref,) = rest

        mask = mask_ref[...]                      # (n_out, 1) f32
        A = A_ref[...]                            # (C, C) f32 group-average mat
        vecs = vec_ref[...]                       # (8, C) f32 packed vectors
        conv1_b, gn1_g, gn1_b = vecs[0:1], vecs[1:2], vecs[2:3]
        conv2_b, gn2_g, gn2_b = vecs[3:4], vecs[4:5], vecs[5:6]

        def gn_stats(y):
            # Masked per-channel sums -> per-group mean / rstd (broadcast to C)
            # via a single (2, C) @ (C, C) MXU dot.
            # NOTE: one-pass E[x^2]-E[x]^2 variance (f32); fine at inference
            # tolerances, would need the two-pass centered form for training.
            ym = y * mask
            s = jnp.sum(ym, axis=0, keepdims=True)            # (1, C)
            ss = jnp.sum(ym * ym, axis=0, keepdims=True)      # (1, C)
            mom = jnp.dot(jnp.concatenate([s, ss], axis=0), A,
                          preferred_element_type=jnp.float32)  # (2, C)
            mean = mom[0:1]
            var = mom[1:2] - mean * mean
            return mean, jax.lax.rsqrt(var + eps)

        # ---- conv1 (3x3, pad=1): im2col built once in VMEM, single MXU dot --
        cols = [x_ref[0, off:off + n_out, :] for off in offsets]   # bf16 slices
        lhs = jnp.concatenate(cols, axis=-1)                       # (n_out, 9*Cin)
        h1 = jnp.dot(lhs, w1_ref[...],
                     preferred_element_type=jnp.float32) + conv1_b

        # ---- GroupNorm1 + ReLU ----------------------------------------------
        mean1, rstd1 = gn_stats(h1)
        a1 = jnp.maximum((h1 - mean1) * rstd1 * gn1_g + gn1_b, 0.0)

        # ---- conv2 (1x1), fused: intermediate never leaves VMEM -------------
        h2 = jnp.dot(a1.astype(jnp.bfloat16), w2_ref[...],
                     preferred_element_type=jnp.float32) + conv2_b

        # ---- GroupNorm2 + residual + ReLU ------------------------------------
        mean2, rstd2 = gn_stats(h2)
        y = (h2 - mean2) * rstd2 * gn2_g + gn2_b

        x_id = x_ref[0, id_off:id_off + n_out, :]      # identity rows (bf16)
        if has_skip:
            identity = jnp.dot(x_id, wsk_ref[...],
                               preferred_element_type=jnp.float32) + vecs[6:7]
        else:
            identity = x_id.astype(jnp.float32)
        o_ref[0] = jnp.maximum(y + identity, 0.0)

    return kernel


# -----------------------------------------------------------------------------
# Wrapper: PyTorch-faithful NCHW interface, torch parameter layouts
# -----------------------------------------------------------------------------
def residual_block_forward(x_nchw, params, groups=32, eps=1e-5):
    """ResidualBlock forward.  x: (B, Cin, H, W) f32, params in torch layout."""
    B, Cin, H, W = x_nchw.shape
    Cout = params["conv1_w"].shape[0]
    has_skip = "skip_w" in params
    assert has_skip == (Cin != Cout)
    assert Cout % groups == 0

    Hp, Wp = H + 2, W + 2
    n_out = _round_up(H * Wp, 8)               # output rows on the padded grid
    n_in = _round_up(n_out + 2 * Wp + 2, 8)    # + room for the largest tap shift

    # NCHW -> NHWC (C on lanes), zero-pad halo, flatten spatial, store as bf16
    # (halves HBM->VMEM DMA; matmuls run in bf16 anyway).
    x = jnp.transpose(x_nchw, (0, 2, 3, 1)).astype(jnp.bfloat16)
    xp = jnp.pad(x, ((0, 0), (1, 1), (1, 1), (0, 0)))
    xflat = jnp.pad(xp.reshape(B, Hp * Wp, Cin),
                    ((0, 0), (0, n_in - Hp * Wp), (0, 0)))

    # Validity mask: padded-grid rows outside the HxW window are junk.
    q = jnp.arange(n_out)
    mask = ((q // Wp < H) & (q % Wp < W)).astype(jnp.float32)[:, None]

    # Group-averaging matrix: A[c, c'] = 1/(H*W*cg) if group(c) == group(c').
    cg = Cout // groups
    gid = jnp.arange(Cout) // cg
    A = (gid[:, None] == gid[None, :]).astype(jnp.float32) / float(H * W * cg)

    # Torch weight layouts -> matmul layouts; bf16 at the matmul boundary.
    w1 = jnp.transpose(params["conv1_w"], (2, 3, 1, 0))            # (3,3,Cin,Cout)
    w1 = w1.reshape(9 * Cin, Cout).astype(jnp.bfloat16)
    w2 = params["conv2_w"][:, :, 0, 0].T.astype(jnp.bfloat16)      # (Cout, Cout)

    # Pack all (Cout,) vectors into one (8, Cout) array -> single DMA.
    zeros_c = jnp.zeros((Cout,), jnp.float32)
    vec_rows = [params["conv1_b"], params["gn1_g"], params["gn1_b"],
                params["conv2_b"], params["gn2_g"], params["gn2_b"],
                params.get("skip_b", zeros_c), zeros_c]
    vecs = jnp.stack([v.astype(jnp.float32) for v in vec_rows], axis=0)

    inputs = [xflat, mask, A, w1, w2, vecs]
    in_specs = [
        pl.BlockSpec((1, n_in, Cin), lambda b: (b, 0, 0)),
        pl.BlockSpec((n_out, 1), lambda b: (0, 0)),
        pl.BlockSpec((Cout, Cout), lambda b: (0, 0)),
        pl.BlockSpec((9 * Cin, Cout), lambda b: (0, 0)),
        pl.BlockSpec((Cout, Cout), lambda b: (0, 0)),
        pl.BlockSpec((8, Cout), lambda b: (0, 0)),
    ]
    if has_skip:
        wsk = params["skip_w"][:, :, 0, 0].T.astype(jnp.bfloat16)  # (Cin, Cout)
        inputs.append(wsk)
        in_specs.append(pl.BlockSpec((Cin, Cout), lambda b: (0, 0)))

    # Rough VMEM budget: double-buffered in/out slabs + im2col lhs + f32
    # intermediates + weights; clamp to [32 MiB, 64 MiB] (v7x physical cap).
    need = (2 * n_in * Cin * 2 + 2 * n_out * Cout * 4
            + n_out * 9 * Cin * 2 + 4 * n_out * Cout * 4
            + (9 * Cin + 2 * Cout + Cin) * Cout * 2
            + (Cout * Cout + 8 * Cout + n_out) * 4)
    vmem_limit = int(min(max(2 * need, 32 * 1024 * 1024), 64 * 1024 * 1024))

    out = pl.pallas_call(
        _make_resblock_kernel(n_out, Wp, has_skip, eps),
        out_shape=jax.ShapeDtypeStruct((B, n_out, Cout), jnp.float32),
        grid=(B,),
        in_specs=in_specs,
        out_specs=pl.BlockSpec((1, n_out, Cout), lambda b: (b, 0, 0)),
        compiler_params=pltpu.CompilerParams(
            dimension_semantics=("parallel",),
            vmem_limit_bytes=vmem_limit),
    )(*inputs)

    # TODO(synk): when chaining ResidualBlocks, keep activations in this
    # flattened-padded NHWC layout and fuse the slice/transpose into the
    # consumer instead of round-tripping to NCHW every block.
    y = out[:, :H * Wp, :].reshape(B, H, Wp, Cout)[:, :, :W, :]
    return jnp.transpose(y, (0, 3, 1, 2))                          # NCHW


# -----------------------------------------------------------------------------
# Pure-JAX reference (PyTorch semantics) for correctness checking
# -----------------------------------------------------------------------------
def reference_residual_block(x_nchw, params, groups=32, eps=1e-5,
                             matmul_dtype=jnp.float32):
    x = jnp.transpose(x_nchw, (0, 2, 3, 1)).astype(jnp.float32)
    B, H, W, Cin = x.shape
    w1 = jnp.transpose(params["conv1_w"], (2, 3, 1, 0))            # (3,3,Cin,Cout)
    Cout = w1.shape[-1]

    def mm(a, b):
        return jnp.einsum("bhwc,cd->bhwd",
                          a.astype(matmul_dtype), b.astype(matmul_dtype),
                          preferred_element_type=jnp.float32)

    def conv3x3(v, w, bias):
        vp = jnp.pad(v, ((0, 0), (1, 1), (1, 1), (0, 0)))
        acc = jnp.zeros((B, H, W, Cout), jnp.float32) + bias
        for i in range(3):
            for j in range(3):
                acc = acc + mm(vp[:, i:i + H, j:j + W, :], w[i, j])
        return acc

    def gn(v, g, b):
        cg = Cout // groups
        vg = v.reshape(B, H, W, groups, cg)
        mean = vg.mean(axis=(1, 2, 4), keepdims=True)
        var = ((vg - mean) ** 2).mean(axis=(1, 2, 4), keepdims=True)
        return ((vg - mean) / jnp.sqrt(var + eps)).reshape(B, H, W, Cout) * g + b

    h = conv3x3(x, w1, params["conv1_b"])
    h = jax.nn.relu(gn(h, params["gn1_g"], params["gn1_b"]))
    h = mm(h, params["conv2_w"][:, :, 0, 0].T) + params["conv2_b"]
    h = gn(h, params["gn2_g"], params["gn2_b"])
    if "skip_w" in params:
        identity = mm(x, params["skip_w"][:, :, 0, 0].T) + params["skip_b"]
    else:
        # mirror the kernel's bf16 residency of the identity path
        identity = x.astype(matmul_dtype).astype(jnp.float32)
    return jnp.transpose(jax.nn.relu(h + identity), (0, 3, 1, 2))


# -----------------------------------------------------------------------------
# Deterministic synthetic parameters (torch layouts / shapes)
# -----------------------------------------------------------------------------
def init_params(key, in_ch, out_ch):
    ks = jax.random.split(key, 10)

    def rnd(k, shape, scale):
        return scale * jax.random.normal(k, shape, jnp.float32)

    p = {
        "conv1_w": rnd(ks[0], (out_ch, in_ch, 3, 3), 0.05),
        "conv1_b": rnd(ks[1], (out_ch,), 0.05),
        "conv2_w": rnd(ks[2], (out_ch, out_ch, 1, 1), 0.1),
        "conv2_b": rnd(ks[3], (out_ch,), 0.05),
        "gn1_g": 1.0 + rnd(ks[4], (out_ch,), 0.1),
        "gn1_b": rnd(ks[5], (out_ch,), 0.1),
        "gn2_g": 1.0 + rnd(ks[6], (out_ch,), 0.1),
        "gn2_b": rnd(ks[7], (out_ch,), 0.1),
    }
    if in_ch != out_ch:
        p["skip_w"] = rnd(ks[8], (out_ch, in_ch, 1, 1), 0.1)
        p["skip_b"] = rnd(ks[9], (out_ch,), 0.05)
    return p


if __name__ == "__main__":
    root = jax.random.PRNGKey(0)
    k1, k2, k3, k4 = jax.random.split(root, 4)

    fwd = jax.jit(residual_block_forward)

    # Case 1: in_channels == out_channels == 64 -> Identity skip (VQ-VAE usage)
    x1 = jax.random.normal(k1, (2, 64, 16, 16), jnp.float32)
    p1 = init_params(k2, 64, 64)
    out1 = fwd(x1, p1)
    jax.block_until_ready(out1)
    assert out1.shape == (2, 64, 16, 16)
    # structural correctness (same bf16 rounding as the kernel)
    ref1_bf = reference_residual_block(x1, p1, matmul_dtype=jnp.bfloat16)
    assert float(jnp.max(jnp.abs(out1 - ref1_bf))) < 5e-3
    # fidelity to the f32 PyTorch module (loose: bf16 matmul quantization)
    ref1_f32 = reference_residual_block(x1, p1, matmul_dtype=jnp.float32)
    assert float(jnp.max(jnp.abs(out1 - ref1_f32))) < 0.3

    # Case 2: in_channels (32) != out_channels (64) -> 1x1 conv skip path
    x2 = jax.random.normal(k3, (2, 32, 16, 16), jnp.float32)
    p2 = init_params(k4, 32, 64)
    out2 = fwd(x2, p2)
    jax.block_until_ready(out2)
    assert out2.shape == (2, 64, 16, 16)
    ref2_bf = reference_residual_block(x2, p2, matmul_dtype=jnp.bfloat16)
    assert float(jnp.max(jnp.abs(out2 - ref2_bf))) < 5e-3
    ref2_f32 = reference_residual_block(x2, p2, matmul_dtype=jnp.float32)
    assert float(jnp.max(jnp.abs(out2 - ref2_f32))) < 0.3

    print("KERNEL_OK")
</pallas_src>

<mosaic_0001>
module attributes {stable_mosaic.version = 11 : i64} {
  func.func @kernel(%arg0: i32, %arg1: memref<1x328x64xbf16, #tpu.memory_space<vmem>>, %arg2: memref<288x1xf32, #tpu.memory_space<vmem>>, %arg3: memref<64x64xf32, #tpu.memory_space<vmem>>, %arg4: memref<576x64xbf16, #tpu.memory_space<vmem>>, %arg5: memref<64x64xbf16, #tpu.memory_space<vmem>>, %arg6: memref<8x64xf32, #tpu.memory_space<vmem>>, %arg7: memref<1x288x64xf32, #tpu.memory_space<vmem>>) attributes {dimension_semantics = [#tpu.dimension_semantics<parallel>], iteration_bounds = array<i64: 2>, scalar_prefetch = 0 : i64, scratch_operands = 0 : i64, tpu.core_type = #tpu.core_type<tc>, window_params = [{transform_indices = @transform_0, window_bounds = array<i64: 1, 328, 64>}, {pipeline_mode = #tpu.pipeline_mode<synchronous>, transform_indices = @transform_1, window_bounds = array<i64: 288, 1>}, {pipeline_mode = #tpu.pipeline_mode<synchronous>, transform_indices = @transform_2, window_bounds = array<i64: 64, 64>}, {pipeline_mode = #tpu.pipeline_mode<synchronous>, transform_indices = @transform_3, window_bounds = array<i64: 576, 64>}, {pipeline_mode = #tpu.pipeline_mode<synchronous>, transform_indices = @transform_4, window_bounds = array<i64: 64, 64>}, {pipeline_mode = #tpu.pipeline_mode<synchronous>, transform_indices = @transform_5, window_bounds = array<i64: 8, 64>}, {transform_indices = @transform_6, window_bounds = array<i64: 1, 288, 64>}]} {
    %c0 = arith.constant 0 : index
    %c0_0 = arith.constant 0 : index
    %0 = vector.load %arg2[%c0, %c0_0] : memref<288x1xf32, #tpu.memory_space<vmem>>, vector<288x1xf32>
    %c0_1 = arith.constant 0 : index
    %c0_2 = arith.constant 0 : index
    %1 = vector.load %arg3[%c0_1, %c0_2] : memref<64x64xf32, #tpu.memory_space<vmem>>, vector<64x64xf32>
    %c0_3 = arith.constant 0 : index
    %c0_4 = arith.constant 0 : index
    %2 = vector.load %arg6[%c0_3, %c0_4] : memref<8x64xf32, #tpu.memory_space<vmem>>, vector<8x64xf32>
    %3 = vector.extract_strided_slice %2 {offsets = [0, 0], sizes = [1, 64], strides = [1, 1]} : vector<8x64xf32> to vector<1x64xf32>
    %4 = vector.extract_strided_slice %2 {offsets = [1, 0], sizes = [1, 64], strides = [1, 1]} : vector<8x64xf32> to vector<1x64xf32>
    %5 = vector.extract_strided_slice %2 {offsets = [2, 0], sizes = [1, 64], strides = [1, 1]} : vector<8x64xf32> to vector<1x64xf32>
    %6 = vector.extract_strided_slice %2 {offsets = [3, 0], sizes = [1, 64], strides = [1, 1]} : vector<8x64xf32> to vector<1x64xf32>
    %7 = vector.extract_strided_slice %2 {offsets = [4, 0], sizes = [1, 64], strides = [1, 1]} : vector<8x64xf32> to vector<1x64xf32>
    %8 = vector.extract_strided_slice %2 {offsets = [5, 0], sizes = [1, 64], strides = [1, 1]} : vector<8x64xf32> to vector<1x64xf32>
    %c0_5 = arith.constant 0 : index
    %c0_6 = arith.constant 0 : index
    %c0_7 = arith.constant 0 : index
    %9 = vector.load %arg1[%c0_5, %c0_6, %c0_7] : memref<1x328x64xbf16, #tpu.memory_space<vmem>>, vector<1x288x64xbf16>
    %10 = vector.shape_cast %9 : vector<1x288x64xbf16> to vector<288x64xbf16>
    %c0_8 = arith.constant 0 : index
    %c1 = arith.constant 1 : index
    %c0_9 = arith.constant 0 : index
    %11 = vector.load %arg1[%c0_8, %c1, %c0_9] : memref<1x328x64xbf16, #tpu.memory_space<vmem>>, vector<1x288x64xbf16>
    %12 = vector.shape_cast %11 : vector<1x288x64xbf16> to vector<288x64xbf16>
    %c0_10 = arith.constant 0 : index
    %c2 = arith.constant 2 : index
    %c0_11 = arith.constant 0 : index
    %13 = vector.load %arg1[%c0_10, %c2, %c0_11] : memref<1x328x64xbf16, #tpu.memory_space<vmem>>, vector<1x288x64xbf16>
    %14 = vector.shape_cast %13 : vector<1x288x64xbf16> to vector<288x64xbf16>
    %c0_12 = arith.constant 0 : index
    %c18 = arith.constant 18 : index
    %c0_13 = arith.constant 0 : index
    %15 = vector.load %arg1[%c0_12, %c18, %c0_13] : memref<1x328x64xbf16, #tpu.memory_space<vmem>>, vector<1x288x64xbf16>
    %16 = vector.shape_cast %15 : vector<1x288x64xbf16> to vector<288x64xbf16>
    %c0_14 = arith.constant 0 : index
    %c19 = arith.constant 19 : index
    %c0_15 = arith.constant 0 : index
    %17 = vector.load %arg1[%c0_14, %c19, %c0_15] : memref<1x328x64xbf16, #tpu.memory_space<vmem>>, vector<1x288x64xbf16>
    %18 = vector.shape_cast %17 : vector<1x288x64xbf16> to vector<288x64xbf16>
    %c0_16 = arith.constant 0 : index
    %c20 = arith.constant 20 : index
    %c0_17 = arith.constant 0 : index
    %19 = vector.load %arg1[%c0_16, %c20, %c0_17] : memref<1x328x64xbf16, #tpu.memory_space<vmem>>, vector<1x288x64xbf16>
    %20 = vector.shape_cast %19 : vector<1x288x64xbf16> to vector<288x64xbf16>
    %c0_18 = arith.constant 0 : index
    %c36 = arith.constant 36 : index
    %c0_19 = arith.constant 0 : index
    %21 = vector.load %arg1[%c0_18, %c36, %c0_19] : memref<1x328x64xbf16, #tpu.memory_space<vmem>>, vector<1x288x64xbf16>
    %22 = vector.shape_cast %21 : vector<1x288x64xbf16> to vector<288x64xbf16>
    %c0_20 = arith.constant 0 : index
    %c37 = arith.constant 37 : index
    %c0_21 = arith.constant 0 : index
    %23 = vector.load %arg1[%c0_20, %c37, %c0_21] : memref<1x328x64xbf16, #tpu.memory_space<vmem>>, vector<1x288x64xbf16>
    %24 = vector.shape_cast %23 : vector<1x288x64xbf16> to vector<288x64xbf16>
    %c0_22 = arith.constant 0 : index
    %c38 = arith.constant 38 : index
    %c0_23 = arith.constant 0 : index
    %25 = vector.load %arg1[%c0_22, %c38, %c0_23] : memref<1x328x64xbf16, #tpu.memory_space<vmem>>, vector<1x288x64xbf16>
    %26 = vector.shape_cast %25 : vector<1x288x64xbf16> to vector<288x64xbf16>
    %27 = tpu.concatenate %10, %12, %14, %16, %18, %20, %22, %24, %26 in 1 : vector<288x64xbf16>, vector<288x64xbf16>, vector<288x64xbf16>, vector<288x64xbf16>, vector<288x64xbf16>, vector<288x64xbf16>, vector<288x64xbf16>, vector<288x64xbf16>, vector<288x64xbf16> -> vector<288x576xbf16>
    %c0_24 = arith.constant 0 : index
    %c0_25 = arith.constant 0 : index
    %28 = vector.load %arg4[%c0_24, %c0_25] : memref<576x64xbf16, #tpu.memory_space<vmem>>, vector<576x64xbf16>
    %cst = arith.constant dense<0.000000e+00> : vector<288x64xf32>
    %29 = tpu.matmul %27, %28, %cst {dimension_numbers = #tpu.dot_dimension_numbers<[1], [0], [0], [1], [0, 0, 1, 1], [], []>} : vector<288x576xbf16>, vector<576x64xbf16>, vector<288x64xf32> -> vector<288x64xf32>
    %30 = vector.broadcast %3 : vector<1x64xf32> to vector<288x64xf32>
    %31 = arith.addf %29, %30 : vector<288x64xf32>
    %32 = vector.broadcast %0 : vector<288x1xf32> to vector<288x64xf32>
    %33 = arith.mulf %31, %32 : vector<288x64xf32>
    %cst_26 = arith.constant dense<0.000000e+00> : vector<64xf32>
    %34 = vector.multi_reduction <add>, %33, %cst_26 [0] : vector<288x64xf32> to vector<64xf32>
    %35 = vector.shape_cast %34 : vector<64xf32> to vector<1x64xf32>
    %36 = arith.mulf %33, %33 : vector<288x64xf32>
    %cst_27 = arith.constant dense<0.000000e+00> : vector<64xf32>
    %37 = vector.multi_reduction <add>, %36, %cst_27 [0] : vector<288x64xf32> to vector<64xf32>
    %38 = vector.shape_cast %37 : vector<64xf32> to vector<1x64xf32>
    %39 = tpu.concatenate %35, %38 in 0 : vector<1x64xf32>, vector<1x64xf32> -> vector<2x64xf32>
    %cst_28 = arith.constant dense<0.000000e+00> : vector<2x64xf32>
    %40 = tpu.matmul %39, %1, %cst_28 {dimension_numbers = #tpu.dot_dimension_numbers<[1], [0], [0], [1], [0, 0, 1, 1], [], []>} : vector<2x64xf32>, vector<64x64xf32>, vector<2x64xf32> -> vector<2x64xf32>
    %41 = vector.extract_strided_slice %40 {offsets = [0, 0], sizes = [1, 64], strides = [1, 1]} : vector<2x64xf32> to vector<1x64xf32>
    %42 = vector.extract_strided_slice %40 {offsets = [1, 0], sizes = [1, 64], strides = [1, 1]} : vector<2x64xf32> to vector<1x64xf32>
    %43 = arith.mulf %41, %41 : vector<1x64xf32>
    %44 = arith.subf %42, %43 : vector<1x64xf32>
    %cst_29 = arith.constant 9.99999974E-6 : f32
    %45 = vector.broadcast %cst_29 : f32 to vector<1x64xf32>
    %46 = arith.addf %44, %45 : vector<1x64xf32>
    %47 = math.rsqrt %46 : vector<1x64xf32>
    %48 = vector.broadcast %41 : vector<1x64xf32> to vector<288x64xf32>
    %49 = arith.subf %31, %48 : vector<288x64xf32>
    %50 = vector.broadcast %47 : vector<1x64xf32> to vector<288x64xf32>
    %51 = arith.mulf %49, %50 : vector<288x64xf32>
    %52 = vector.broadcast %4 : vector<1x64xf32> to vector<288x64xf32>
    %53 = arith.mulf %51, %52 : vector<288x64xf32>
    %54 = vector.broadcast %5 : vector<1x64xf32> to vector<288x64xf32>
    %55 = arith.addf %53, %54 : vector<288x64xf32>
    %cst_30 = arith.constant 0.000000e+00 : f32
    %56 = vector.broadcast %cst_30 : f32 to vector<288x64xf32>
    %57 = arith.maximumf %55, %56 : vector<288x64xf32>
    %58 = arith.truncf %57 : vector<288x64xf32> to vector<288x64xbf16>
    %c0_31 = arith.constant 0 : index
    %c0_32 = arith.constant 0 : index
    %59 = vector.load %arg5[%c0_31, %c0_32] : memref<64x64xbf16, #tpu.memory_space<vmem>>, vector<64x64xbf16>
    %cst_33 = arith.constant dense<0.000000e+00> : vector<288x64xf32>
    %60 = tpu.matmul %58, %59, %cst_33 {dimension_numbers = #tpu.dot_dimension_numbers<[1], [0], [0], [1], [0, 0, 1, 1], [], []>} : vector<288x64xbf16>, vector<64x64xbf16>, vector<288x64xf32> -> vector<288x64xf32>
    %61 = vector.broadcast %6 : vector<1x64xf32> to vector<288x64xf32>
    %62 = arith.addf %60, %61 : vector<288x64xf32>
    %63 = vector.broadcast %0 : vector<288x1xf32> to vector<288x64xf32>
    %64 = arith.mulf %62, %63 : vector<288x64xf32>
    %cst_34 = arith.constant dense<0.000000e+00> : vector<64xf32>
    %65 = vector.multi_reduction <add>, %64, %cst_34 [0] : vector<288x64xf32> to vector<64xf32>
    %66 = vector.shape_cast %65 : vector<64xf32> to vector<1x64xf32>
    %67 = arith.mulf %64, %64 : vector<288x64xf32>
    %cst_35 = arith.constant dense<0.000000e+00> : vector<64xf32>
    %68 = vector.multi_reduction <add>, %67, %cst_35 [0] : vector<288x64xf32> to vector<64xf32>
    %69 = vector.shape_cast %68 : vector<64xf32> to vector<1x64xf32>
    %70 = tpu.concatenate %66, %69 in 0 : vector<1x64xf32>, vector<1x64xf32> -> vector<2x64xf32>
    %cst_36 = arith.constant dense<0.000000e+00> : vector<2x64xf32>
    %71 = tpu.matmul %70, %1, %cst_36 {dimension_numbers = #tpu.dot_dimension_numbers<[1], [0], [0], [1], [0, 0, 1, 1], [], []>} : vector<2x64xf32>, vector<64x64xf32>, vector<2x64xf32> -> vector<2x64xf32>
    %72 = vector.extract_strided_slice %71 {offsets = [0, 0], sizes = [1, 64], strides = [1, 1]} : vector<2x64xf32> to vector<1x64xf32>
    %73 = vector.extract_strided_slice %71 {offsets = [1, 0], sizes = [1, 64], strides = [1, 1]} : vector<2x64xf32> to vector<1x64xf32>
    %74 = arith.mulf %72, %72 : vector<1x64xf32>
    %75 = arith.subf %73, %74 : vector<1x64xf32>
    %cst_37 = arith.constant 9.99999974E-6 : f32
    %76 = vector.broadcast %cst_37 : f32 to vector<1x64xf32>
    %77 = arith.addf %75, %76 : vector<1x64xf32>
    %78 = math.rsqrt %77 : vector<1x64xf32>
    %79 = vector.broadcast %72 : vector<1x64xf32> to vector<288x64xf32>
    %80 = arith.subf %62, %79 : vector<288x64xf32>
    %81 = vector.broadcast %78 : vector<1x64xf32> to vector<288x64xf32>
    %82 = arith.mulf %80, %81 : vector<288x64xf32>
    %83 = vector.broadcast %7 : vector<1x64xf32> to vector<288x64xf32>
    %84 = arith.mulf %82, %83 : vector<288x64xf32>
    %85 = vector.broadcast %8 : vector<1x64xf32> to vector<288x64xf32>
    %86 = arith.addf %84, %85 : vector<288x64xf32>
    %c0_38 = arith.constant 0 : index
    %c19_39 = arith.constant 19 : index
    %c0_40 = arith.constant 0 : index
    %87 = vector.load %arg1[%c0_38, %c19_39, %c0_40] : memref<1x328x64xbf16, #tpu.memory_space<vmem>>, vector<1x288x64xbf16>
    %88 = vector.shape_cast %87 : vector<1x288x64xbf16> to vector<288x64xbf16>
    %89 = arith.extf %88 : vector<288x64xbf16> to vector<288x64xf32>
    %90 = arith.addf %86, %89 : vector<288x64xf32>
    %cst_41 = arith.constant 0.000000e+00 : f32
    %91 = vector.broadcast %cst_41 : f32 to vector<288x64xf32>
    %92 = arith.maximumf %90, %91 : vector<288x64xf32>
    %c0_42 = arith.constant 0 : index
    %c0_43 = arith.constant 0 : index
    %c0_44 = arith.constant 0 : index
    %93 = vector.load %arg7[%c0_42, %c0_43, %c0_44] : memref<1x288x64xf32, #tpu.memory_space<vmem>>, vector<1x288x64xf32>
    %94 = vector.shape_cast %93 : vector<1x288x64xf32> to vector<288x64xf32>
    %95 = vector.shape_cast %92 : vector<288x64xf32> to vector<1x288x64xf32>
    tpu.vector_store %arg7[%c0_42, %c0_43, %c0_44], %95 {strides = array<i32>} : memref<1x288x64xf32, #tpu.memory_space<vmem>>, vector<1x288x64xf32>,
    return
  }
  func.func @transform_0(%arg0: i32) -> (i32, i32, i32) {
    %c0_i32 = arith.constant 0 : i32
    %c0_i32_0 = arith.constant 0 : i32
    %c0_i32_1 = arith.constant 0 : i32
    return %arg0, %c0_i32, %c0_i32_0 : i32, i32, i32
  }
  func.func @transform_1(%arg0: i32) -> (i32, i32) {
    %c0_i32 = arith.constant 0 : i32
    %c0_i32_0 = arith.constant 0 : i32
    %c0_i32_1 = arith.constant 0 : i32
    return %c0_i32, %c0_i32_0 : i32, i32
  }
  func.func @transform_2(%arg0: i32) -> (i32, i32) {
    %c0_i32 = arith.constant 0 : i32
    %c0_i32_0 = arith.constant 0 : i32
    %c0_i32_1 = arith.constant 0 : i32
    return %c0_i32, %c0_i32_0 : i32, i32
  }
  func.func @transform_3(%arg0: i32) -> (i32, i32) {
    %c0_i32 = arith.constant 0 : i32
    %c0_i32_0 = arith.constant 0 : i32
    %c0_i32_1 = arith.constant 0 : i32
    return %c0_i32, %c0_i32_0 : i32, i32
  }
  func.func @transform_4(%arg0: i32) -> (i32, i32) {
    %c0_i32 = arith.constant 0 : i32
    %c0_i32_0 = arith.constant 0 : i32
    %c0_i32_1 = arith.constant 0 : i32
    return %c0_i32, %c0_i32_0 : i32, i32
  }
  func.func @transform_5(%arg0: i32) -> (i32, i32) {
    %c0_i32 = arith.constant 0 : i32
    %c0_i32_0 = arith.constant 0 : i32
    %c0_i32_1 = arith.constant 0 : i32
    return %c0_i32, %c0_i32_0 : i32, i32
  }
  func.func @transform_6(%arg0: i32) -> (i32, i32, i32) {
    %c0_i32 = arith.constant 0 : i32
    %c0_i32_0 = arith.constant 0 : i32
    %c0_i32_1 = arith.constant 0 : i32
    return %arg0, %c0_i32, %c0_i32_0 : i32, i32, i32
  }
}

</mosaic_0001>

<llo_original>
// kernel: residual_block_forward.1
$region0: #{residual_block_forward.1}
  #allocation0 [shape = 'u32[]', space=smem, size = 0x4, offset = 0x4, fixed_abs, tag = 'smem constant byte address 0x4 - core index']
  #allocation1 [shape = 'u32[72,128]{1,0:T(1,128)}', space=vmem, size = 0x9000, scoped, tag = 'internal scratch']
  %s0 = inlined_call_operand.vmem [shape: bf16[2,328,64], index: 0, kind: input, shape index: {}]
  %s1 = inlined_call_operand.vmem [shape: f32[288,1], index: 1, kind: input, shape index: {}]
  %s2 = inlined_call_operand.vmem [shape: f32[64,64], index: 2, kind: input, shape index: {}]
  %s3 = inlined_call_operand.vmem [shape: bf16[576,64], index: 3, kind: input, shape index: {}]
  %s4 = inlined_call_operand.vmem [shape: bf16[64,64], index: 4, kind: input, shape index: {}]
  %s5 = inlined_call_operand.vmem [shape: f32[8,64], index: 5, kind: input, shape index: {}]
  %s6 = inlined_call_operand.vmem [shape: f32[2,288,64], index: 6, kind: output, shape index: {}]
  %s7 = sld [smem:[#allocation0]]
  $region57: #{residual_block_forward.1} parent=0
    _
  %s9 = ssub.s32 1, %s7
  %s10 = scalar_select 0, %s9, %s7
  loop: start=0, step=1, limit=4
  $region2: #{residual_block_forward.1} parent=0 // loop_pre_header
    _
  $region3: #{residual_block_forward.1} parent=0 // loop_header
    %s12 = sphi 0, %s16
    %p13 = scmp.ge.s32.totalorder %s12, 4
    %s22 = sphi 0, %s24
    %s25 = sphi 0, %s22
    %s26 = sphi 0, %s25
    %s42 = sphi 0, %s26
    %s46 = sphi 0, %s46
    %s48 = sphi 0, %s46
    %s49 = sphi 0, %s48
    %s63 = sphi 0, %s49
    %s67 = sphi 0, %s67
    %s69 = sphi 0, %s67
    %s70 = sphi 0, %s69
    %s84 = sphi 0, %s70
    %s88 = sphi 0, %s88
    %s90 = sphi 0, %s88
    %s91 = sphi 0, %s90
    %s105 = sphi 0, %s91
    %s109 = sphi 0, %s109
    %s111 = sphi 0, %s109
    %s112 = sphi 0, %s111
    %s126 = sphi 0, %s112
    %s130 = sphi 0, %s130
    %s132 = sphi 0, %s130
    %s133 = sphi 0, %s132
    %s147 = sphi 0, %s133
    %s153 = sphi 0, %s155
    %s156 = sphi 0, %s153
    %s157 = sphi 0, %s156
    %s173 = sphi 0, %s157
  $region4: #{residual_block_forward.1} parent=0 // loop_header_branch
    %15 = sbr.rel (%p13) target = $region8
  $region5: #{residual_block_forward.1} parent=0 // loop_body
    %s17 = ssub.s32 %s12, 1
    %s18 = ssub.s32 %s12, 2
    %s19 = sadd.s32 %s12, 1
    %s20 = ssub.s32 %s12, %s19
    %p21 = scmp.eq.s32.totalorder %s20, 0
    %s23 = sadd.s32 %s22, 1
    %s24 = scalar_select %p21, %s22, %s23
    %p27 = pneg %p21
    %p28 = scmp.eq.s32.totalorder %s12, 1
    %p29 = por %p27, %p28
    %p30 = scmp.ne.s32.totalorder %s22, %s25
    %p31 = scmp.eq.s32.totalorder %s12, 0
    %p32 = por %p30, %p31
    %p33 = scmp.ne.s32.totalorder %s22, %s25
    %p34 = scmp.eq.s32.totalorder %s17, 1
    %p35 = por %p33, %p34
    %p36 = scmp.ne.s32.totalorder %s25, %s26
    %p37 = scmp.eq.s32.totalorder %s17, 0
    %p38 = por %p36, %p37
    %p39 = scmp.ne.s32.totalorder %s25, %s26
    %p40 = scmp.eq.s32.totalorder %s18, 1
    %p41 = por %p39, %p40
    %p43 = scmp.ne.s32.totalorder %s26, %s42
    %p44 = scmp.eq.s32.totalorder %s18, 0
    %p45 = por %p43, %p44
    %s47 = sadd.s32 %s46, 1
    %p50 = scmp.eq.s32.totalorder %s12, 1
    %p51 = scmp.ne.s32.totalorder %s46, %s48
    %p52 = scmp.eq.s32.totalorder %s12, 0
    %p53 = por %p51, %p52
    %p54 = scmp.ne.s32.totalorder %s46, %s48
    %p55 = scmp.eq.s32.totalorder %s17, 1
    %p56 = por %p54, %p55
    %p57 = scmp.ne.s32.totalorder %s48, %s49
    %p58 = scmp.eq.s32.totalorder %s17, 0
    %p59 = por %p57, %p58
    %p60 = scmp.ne.s32.totalorder %s48, %s49
    %p61 = scmp.eq.s32.totalorder %s18, 1
    %p62 = por %p60, %p61
    %p64 = scmp.ne.s32.totalorder %s49, %s63
    %p65 = scmp.eq.s32.totalorder %s18, 0
    %p66 = por %p64, %p65
    %s68 = sadd.s32 %s67, 1
    %p71 = scmp.eq.s32.totalorder %s12, 1
    %p72 = scmp.ne.s32.totalorder %s67, %s69
    %p73 = scmp.eq.s32.totalorder %s12, 0
    %p74 = por %p72, %p73
    %p75 = scmp.ne.s32.totalorder %s67, %s69
    %p76 = scmp.eq.s32.totalorder %s17, 1
    %p77 = por %p75, %p76
    %p78 = scmp.ne.s32.totalorder %s69, %s70
    %p79 = scmp.eq.s32.totalorder %s17, 0
    %p80 = por %p78, %p79
    %p81 = scmp.ne.s32.totalorder %s69, %s70
    %p82 = scmp.eq.s32.totalorder %s18, 1
    %p83 = por %p81, %p82
    %p85 = scmp.ne.s32.totalorder %s70, %s84
    %p86 = scmp.eq.s32.totalorder %s18, 0
    %p87 = por %p85, %p86
    %s89 = sadd.s32 %s88, 1
    %p92 = scmp.eq.s32.totalorder %s12, 1
    %p93 = scmp.ne.s32.totalorder %s88, %s90
    %p94 = scmp.eq.s32.totalorder %s12, 0
    %p95 = por %p93, %p94
    %p96 = scmp.ne.s32.totalorder %s88, %s90
    %p97 = scmp.eq.s32.totalorder %s17, 1
    %p98 = por %p96, %p97
    %p99 = scmp.ne.s32.totalorder %s90, %s91
    %p100 = scmp.eq.s32.totalorder %s17, 0
    %p101 = por %p99, %p100
    %p102 = scmp.ne.s32.totalorder %s90, %s91
    %p103 = scmp.eq.s32.totalorder %s18, 1
    %p104 = por %p102, %p103
    %p106 = scmp.ne.s32.totalorder %s91, %s105
    %p107 = scmp.eq.s32.totalorder %s18, 0
    %p108 = por %p106, %p107
    %s110 = sadd.s32 %s109, 1
    %p113 = scmp.eq.s32.totalorder %s12, 1
    %p114 = scmp.ne.s32.totalorder %s109, %s111
    %p115 = scmp.eq.s32.totalorder %s12, 0
    %p116 = por %p114, %p115
    %p117 = scmp.ne.s32.totalorder %s109, %s111
    %p118 = scmp.eq.s32.totalorder %s17, 1
    %p119 = por %p117, %p118
    %p120 = scmp.ne.s32.totalorder %s111, %s112
    %p121 = scmp.eq.s32.totalorder %s17, 0
    %p122 = por %p120, %p121
    %p123 = scmp.ne.s32.totalorder %s111, %s112
    %p124 = scmp.eq.s32.totalorder %s18, 1
    %p125 = por %p123, %p124
    %p127 = scmp.ne.s32.totalorder %s112, %s126
    %p128 = scmp.eq.s32.totalorder %s18, 0
    %p129 = por %p127, %p128
    %s131 = sadd.s32 %s130, 1
    %p134 = scmp.eq.s32.totalorder %s12, 1
    %p135 = scmp.ne.s32.totalorder %s130, %s132
    %p136 = scmp.eq.s32.totalorder %s12, 0
    %p137 = por %p135, %p136
    %p138 = scmp.ne.s32.totalorder %s130, %s132
    %p139 = scmp.eq.s32.totalorder %s17, 1
    %p140 = por %p138, %p139
    %p141 = scmp.ne.s32.totalorder %s132, %s133
    %p142 = scmp.eq.s32.totalorder %s17, 0
    %p143 = por %p141, %p142
    %p144 = scmp.ne.s32.totalorder %s132, %s133
    %p145 = scmp.eq.s32.totalorder %s18, 1
    %p146 = por %p144, %p145
    %p148 = scmp.ne.s32.totalorder %s133, %s147
    %p149 = scmp.eq.s32.totalorder %s18, 0
    %p150 = por %p148, %p149
    %s151 = ssub.s32 %s12, %s19
    %p152 = scmp.eq.s32.totalorder %s151, 0
    %s154 = sadd.s32 %s153, 1
    %s155 = scalar_select %p152, %s153, %s154
    %p158 = pneg %p152
    %p159 = scmp.eq.s32.totalorder %s12, 1
    %p160 = por %p158, %p159
    %p161 = scmp.ne.s32.totalorder %s153, %s156
    %p162 = scmp.eq.s32.totalorder %s12, 0
    %p163 = por %p161, %p162
    %p164 = scmp.ne.s32.totalorder %s153, %s156
    %p165 = scmp.eq.s32.totalorder %s17, 1
    %p166 = por %p164, %p165
    %p167 = scmp.ne.s32.totalorder %s156, %s157
    %p168 = scmp.eq.s32.totalorder %s17, 0
    %p169 = por %p167, %p168
    %p170 = scmp.ne.s32.totalorder %s156, %s157
    %p171 = scmp.eq.s32.totalorder %s18, 1
    %p172 = por %p170, %p171
    %p174 = scmp.ne.s32.totalorder %s157, %s173
    %p175 = scmp.eq.s32.totalorder %s18, 0
    %p176 = por %p174, %p175
    %p177 = scmp.le.s32.totalorder 1, %s12
    %p178 = scmp.lt.s32.totalorder %s12, 3
    %p179 = pnand %p177, %p178
    %p180 = pneg %p179
    // Predicated region
    $region9: #{residual_block_forward.1} parent=5 // pred_check
      _
    $region10: #{residual_block_forward.1} parent=5 // pred_check_branch
      %182 = sbr.rel (%p179) target = $region12
    $region11: #{residual_block_forward.1} parent=5 // pred_region
      %s183 = ssub.s32 %s12, 1
      // Predicated region
      $region13: #{residual_block_forward.1} parent=11 // pred_check
        %p184 = pneg %p59
      $region14: #{residual_block_forward.1} parent=11 // pred_check_branch
        %186 = sbr.rel (%p184) target = $region16
      $region15: #{residual_block_forward.1} parent=11 // pred_region
        _
      $region16: #{residual_block_forward.1} parent=11 // pred_fallthru
        _
      // Predicated region
      $region17: #{residual_block_forward.1} parent=11 // pred_check
        %p187 = pneg %p80
      $region18: #{residual_block_forward.1} parent=11 // pred_check_branch
        %189 = sbr.rel (%p187) target = $region20
      $region19: #{residual_block_forward.1} parent=11 // pred_region
        _
      $region20: #{residual_block_forward.1} parent=11 // pred_fallthru
        _
      // Predicated region
      $region21: #{residual_block_forward.1} parent=11 // pred_check
        %p190 = pneg %p101
      $region22: #{residual_block_forward.1} parent=11 // pred_check_branch
        %192 = sbr.rel (%p190) target = $region24
      $region23: #{residual_block_forward.1} parent=11 // pred_region
        _
      $region24: #{residual_block_forward.1} parent=11 // pred_fallthru
        _
      // Predicated region
      $region25: #{residual_block_forward.1} parent=11 // pred_check
        %p193 = pneg %p122
      $region26: #{residual_block_forward.1} parent=11 // pred_check_branch
        %195 = sbr.rel (%p193) target = $region28
      $region27: #{residual_block_forward.1} parent=11 // pred_region
        _
      $region28: #{residual_block_forward.1} parent=11 // pred_fallthru
        _
      // Predicated region
      $region29: #{residual_block_forward.1} parent=11 // pred_check
        %p196 = pneg %p143
      $region30: #{residual_block_forward.1} parent=11 // pred_check_branch
        %198 = sbr.rel (%p196) target = $region32
      $region31: #{residual_block_forward.1} parent=11 // pred_region
        _
      $region32: #{residual_block_forward.1} parent=11 // pred_fallthru
        _
    $region12: #{residual_block_forward.1} parent=5 // pred_fallthru
      _
    %p199 = scmp.lt.s32.totalorder %s12, 2
    // Predicated region
    $region33: #{residual_block_forward.1} parent=5 // pred_check
      %p200 = pneg %p199
    $region34: #{residual_block_forward.1} parent=5 // pred_check_branch
      %202 = sbr.rel (%p200) target = $region36
    $region35: #{residual_block_forward.1} parent=5 // pred_region
      // Predicated region
      $region37: #{residual_block_forward.1} parent=35 // pred_check
        %p203 = pneg %p32
      $region38: #{residual_block_forward.1} parent=35 // pred_check_branch
        %205 = sbr.rel (%p203) target = $region40
      $region39: #{residual_block_forward.1} parent=35 // pred_region
        %p206 = scmp.lt.s32.totalorder %s12, 1
        %s207 = scalar_select %p206, %s12, 1
        %s208 = smul.addr %s207, 41
        %s209 = smul.addr %s208, 4
        %s210 = scalar_lea.vmem %s0, %s209
      $region40: #{residual_block_forward.1} parent=35 // pred_fallthru
        _
    $region36: #{residual_block_forward.1} parent=5 // pred_fallthru
      _
    %p211 = scmp.le.s32.totalorder 1, %s12
    %p212 = scmp.lt.s32.totalorder %s12, 3
    %p213 = pnand %p211, %p212
    %p214 = pneg %p213
    // Predicated region
    $region41: #{residual_block_forward.1} parent=5 // pred_check
      _
    $region42: #{residual_block_forward.1} parent=5 // pred_check_branch
      %216 = sbr.rel (%p213) target = $region44
    $region43: #{residual_block_forward.1} parent=5 // pred_region
      %s217 = ssub.s32 %s12, 1
      %p218 = scmp.lt.s32.totalorder %s17, 1
      %s219 = scalar_select %p218, %s17, 1
      %s220 = smul.addr %s219, 41
      %s221 = smul.addr %s220, 4
      %s222 = scalar_lea.vmem %s0, %s221
      %p223 = pneg %p38
      %p224 = pneg %p35
      %p225 = pneg %p59
      %p226 = pneg %p56
      %p227 = pneg %p80
      %p228 = pneg %p77
      %p229 = pneg %p101
      %p230 = pneg %p98
      %p231 = pneg %p122
      %p232 = pneg %p119
      %p233 = pneg %p143
      %p234 = pneg %p140
      %p235 = pneg %p169
      %p236 = pneg %p166
      %p237 = scmp.lt.s32.totalorder %s17, 1
      %s238 = scalar_select %p237, %s17, 1
      %s239 = smul.addr %s238, 36
      %s240 = smul.addr %s239, 8
      %s241 = scalar_lea.vmem %s6, %s240
      %p242 = scmp.lt.s32.totalorder %s17, 1
      %s243 = scalar_select %p242, %s17, 1
      %s244 = smul.addr %s243, 41
      %s245 = smul.addr %s244, 4
      %s246 = scalar_lea.vmem %s0, %s245
      %p247 = scmp.lt.s32.totalorder %s17, 1
      %s248 = scalar_select %p247, %s17, 1
      %s249 = smul.addr %s248, 36
      %s250 = smul.addr %s249, 8
      %s251 = scalar_lea.vmem %s6, %s250
      %v253 = vld [vmem:[%s1] sm:$0xff]
      %v254 = vld [vmem:[%s1 + $0x8] sm:$0xff]
      %v255 = vld [vmem:[%s1 + $0x10] sm:$0xff]
      %v256 = vld [vmem:[%s1 + $0x18] sm:$0xff]
      %v257 = vld [vmem:[%s1 + $0x20] sm:$0xff]
      %v258 = vld [vmem:[%s1 + $0x28] sm:$0xff]
      %v259 = vld [vmem:[%s1 + $0x30] sm:$0xff]
      %v260 = vld [vmem:[%s1 + $0x38] sm:$0xff]
      %v261 = vld [vmem:[%s1 + $0x40] sm:$0xff]
      %v262 = vld [vmem:[%s1 + $0x48] sm:$0xff]
      %v263 = vld [vmem:[%s1 + $0x50] sm:$0xff]
      %v264 = vld [vmem:[%s1 + $0x58] sm:$0xff]
      %v265 = vld [vmem:[%s1 + $0x60] sm:$0xff]
      %v266 = vld [vmem:[%s1 + $0x68] sm:$0xff]
      %v267 = vld [vmem:[%s1 + $0x70] sm:$0xff]
      %v268 = vld [vmem:[%s1 + $0x78] sm:$0xff]
      %v269 = vld [vmem:[%s1 + $0x80] sm:$0xff]
      %v270 = vld [vmem:[%s1 + $0x88] sm:$0xff]
      %v271 = vld [vmem:[%s1 + $0x90] sm:$0xff]
      %v272 = vld [vmem:[%s1 + $0x98] sm:$0xff]
      %v273 = vld [vmem:[%s1 + $0xa0] sm:$0xff]
      %v274 = vld [vmem:[%s1 + $0xa8] sm:$0xff]
      %v275 = vld [vmem:[%s1 + $0xb0] sm:$0xff]
      %v276 = vld [vmem:[%s1 + $0xb8] sm:$0xff]
      %v277 = vld [vmem:[%s1 + $0xc0] sm:$0xff]
      %v278 = vld [vmem:[%s1 + $0xc8] sm:$0xff]
      %v279 = vld [vmem:[%s1 + $0xd0] sm:$0xff]
      %v280 = vld [vmem:[%s1 + $0xd8] sm:$0xff]
      %v281 = vld [vmem:[%s1 + $0xe0] sm:$0xff]
      %v282 = vld [vmem:[%s1 + $0xe8] sm:$0xff]
      %v283 = vld [vmem:[%s1 + $0xf0] sm:$0xff]
      %v284 = vld [vmem:[%s1 + $0xf8] sm:$0xff]
      %v285 = vld [vmem:[%s1 + $0x100] sm:$0xff]
      %v286 = vld [vmem:[%s1 + $0x108] sm:$0xff]
      %v287 = vld [vmem:[%s1 + $0x110] sm:$0xff]
      %v288 = vld [vmem:[%s1 + $0x118] sm:$0xff]
      %v289 = vld [vmem:[%s2] sm:$0xff]
      %v290 = vld [vmem:[%s2 + $0x8] sm:$0xff]
      %v291 = vld [vmem:[%s2 + $0x10] sm:$0xff]
      %v292 = vld [vmem:[%s2 + $0x18] sm:$0xff]
      %v293 = vld [vmem:[%s2 + $0x20] sm:$0xff]
      %v294 = vld [vmem:[%s2 + $0x28] sm:$0xff]
      %v295 = vld [vmem:[%s2 + $0x30] sm:$0xff]
      %v296 = vld [vmem:[%s2 + $0x38] sm:$0xff]
      %v297 = vld [vmem:[%s5] sm:$0xff]
      %v298 = vld [vmem:[%s246] sm:$0xf]
      %v299 = vld [vmem:[%s246 + $0x4] sm:$0xf]
      %v300 = vld [vmem:[%s246 + $0x8] sm:$0xf]
      %v301 = vld [vmem:[%s246 + $0xc] sm:$0xf]
      %v302 = vld [vmem:[%s246 + $0x10] sm:$0xf]
      %v303 = vld [vmem:[%s246 + $0x14] sm:$0xf]
      %v304 = vld [vmem:[%s246 + $0x18] sm:$0xf]
      %v305 = vld [vmem:[%s246 + $0x1c] sm:$0xf]
      %v306 = vld [vmem:[%s246 + $0x20] sm:$0xf]
      %v307 = vld [vmem:[%s246 + $0x24] sm:$0xf]
      %v308 = vld [vmem:[%s246 + $0x28] sm:$0xf]
      %v309 = vld [vmem:[%s246 + $0x2c] sm:$0xf]
      %v310 = vld [vmem:[%s246 + $0x30] sm:$0xf]
      %v311 = vld [vmem:[%s246 + $0x34] sm:$0xf]
      %v312 = vld [vmem:[%s246 + $0x38] sm:$0xf]
      %v313 = vld [vmem:[%s246 + $0x3c] sm:$0xf]
      %v314 = vld [vmem:[%s246 + $0x40] sm:$0xf]
      %v315 = vld [vmem:[%s246 + $0x44] sm:$0xf]
      %v316 = vld [vmem:[%s246 + $0x48] sm:$0xf]
      %v317 = vld [vmem:[%s246 + $0x4c] sm:$0xf]
      %v318 = vld [vmem:[%s246 + $0x50] sm:$0xf]
      %v319 = vld [vmem:[%s246 + $0x54] sm:$0xf]
      %v320 = vld [vmem:[%s246 + $0x58] sm:$0xf]
      %v321 = vld [vmem:[%s246 + $0x5c] sm:$0xf]
      %v322 = vld [vmem:[%s246 + $0x60] sm:$0xf]
      %v323 = vld [vmem:[%s246 + $0x64] sm:$0xf]
      %v324 = vld [vmem:[%s246 + $0x68] sm:$0xf]
      %v325 = vld [vmem:[%s246 + $0x6c] sm:$0xf]
      %v326 = vld [vmem:[%s246 + $0x70] sm:$0xf]
      %v327 = vld [vmem:[%s246 + $0x74] sm:$0xf]
      %v328 = vld [vmem:[%s246 + $0x78] sm:$0xf]
      %v329 = vld [vmem:[%s246 + $0x7c] sm:$0xf]
      %v330 = vld [vmem:[%s246 + $0x80] sm:$0xf]
      %v331 = vld [vmem:[%s246 + $0x84] sm:$0xf]
      %v332 = vld [vmem:[%s246 + $0x88] sm:$0xf]
      %v333 = vld [vmem:[%s246 + $0x8c] sm:$0xf]
      %v334 = vld [vmem:[%s246 + $0x90] sm:$0x1]
      %v335 = vld [vmem:[%s246] sm:$0xe]
      %v336 = vld [vmem:[%s246 + $0x8] sm:$0xe]
      %v337 = vld [vmem:[%s246 + $0x90] sm:$0xf]
      %v338 = vld [vmem:[%s246 + $0x94] sm:$0xf]
      %v339 = vld [vmem:[%s246 + $0x98] sm:$0x1]
      %v340 = vld [vmem:[%s246 + $0x98] sm:$0x3]
      %v341 = vld [vmem:[%s246 + $0x8] sm:$0xc]
      %v342 = vld [vmem:[%s246 + $0x10] sm:$0xc]
      %v343 = vld [vmem:[%s246 + $0x98] sm:$0xf]
      %v344 = vld [vmem:[%s246 + $0x9c] sm:$0xf]
      %v345 = vld [vmem:[%s246 + $0xa0] sm:$0x3]
      %v346 = vld [vmem:[%s246 + $0xa0] sm:$0x7]
      %v347 = vld [vmem:[%s246 + $0x10] sm:$0x8]
      %v384 = vunpack.c.l.b16 %v298
      %v385 = vunpack.c.l.b16 %v299
      %v386 = vunpack.c.l.b16 %v300
      %v387 = vunpack.c.l.b16 %v301
      %v388 = vunpack.c.l.b16 %v302
      %v389 = vunpack.c.l.b16 %v303
      %v390 = vunpack.c.l.b16 %v304
      %v391 = vunpack.c.l.b16 %v305
      %v392 = vunpack.c.l.b16 %v306
      %v393 = vunpack.c.l.b16 %v307
      %v394 = vunpack.c.l.b16 %v308
      %v395 = vunpack.c.l.b16 %v309
      %v396 = vunpack.c.l.b16 %v310
      %v397 = vunpack.c.l.b16 %v311
      %v398 = vunpack.c.l.b16 %v312
      %v399 = vunpack.c.l.b16 %v313
      %v400 = vunpack.c.l.b16 %v314
      %v401 = vunpack.c.l.b16 %v315
      %v402 = vunpack.c.l.b16 %v316
      %v403 = vunpack.c.l.b16 %v317
      %v404 = vunpack.c.l.b16 %v318
      %v405 = vunpack.c.l.b16 %v319
      %v406 = vunpack.c.l.b16 %v320
      %v407 = vunpack.c.l.b16 %v321
      %v408 = vunpack.c.l.b16 %v322
      %v409 = vunpack.c.l.b16 %v323
      %v410 = vunpack.c.l.b16 %v324
      %v411 = vunpack.c.l.b16 %v325
      %v412 = vunpack.c.l.b16 %v326
      %v413 = vunpack.c.l.b16 %v327
      %v414 = vunpack.c.l.b16 %v328
      %v415 = vunpack.c.l.b16 %v329
      %v416 = vunpack.c.l.b16 %v330
      %v417 = vunpack.c.l.b16 %v331
      %v418 = vunpack.c.l.b16 %v332
      %v419 = vunpack.c.l.b16 %v333
      %v420 = vpack.c.b16 %v385, %v384
      %v421 = vpack.c.b16 %v387, %v386
      %v422 = vpack.c.b16 %v389, %v388
      %v423 = vpack.c.b16 %v391, %v390
      %v424 = vpack.c.b16 %v393, %v392
      %v425 = vpack.c.b16 %v395, %v394
      %v426 = vpack.c.b16 %v397, %v396
      %v427 = vpack.c.b16 %v399, %v398
      %v428 = vpack.c.b16 %v401, %v400
      %v429 = vpack.c.b16 %v403, %v402
      %v430 = vpack.c.b16 %v405, %v404
      %v431 = vpack.c.b16 %v407, %v406
      %v432 = vpack.c.b16 %v409, %v408
      %v433 = vpack.c.b16 %v411, %v410
      %v434 = vpack.c.b16 %v413, %v412
      %v435 = vpack.c.b16 %v415, %v414
      %v436 = vpack.c.b16 %v417, %v416
      %v437 = vpack.c.b16 %v419, %v418
      %v439 = vunpack.c.l.b16 %v334
      %v440 = vpack.c.b16 %v439, %v439
      %vm441 = vsmask.f32 7424
      %v443 = vshrl.u32 %v420, 16
      %v445 = vshll.u32 %v420, 16
      %v447 = vrot.slane %v445, 1
      %v448 = vor.u32 %v443, %v447
      %v450 = vshll.u32 %v421, 16
      %v452 = vrot.slane %v450, 1
      %v453 = vsel %vm441, %v448, %v452
      %v454 = vshrl.u32 %v421, 16
      %v456 = vor.u32 %v454, %v452
      %v458 = vshll.u32 %v422, 16
      %v460 = vrot.slane %v458, 1
      %v461 = vsel %vm441, %v456, %v460
      %v462 = vshrl.u32 %v422, 16
      %v464 = vor.u32 %v462, %v460
      %v466 = vshll.u32 %v423, 16
      %v468 = vrot.slane %v466, 1
      %v469 = vsel %vm441, %v464, %v468
      %v470 = vshrl.u32 %v423, 16
      %v472 = vor.u32 %v470, %v468
      %v474 = vshll.u32 %v424, 16
      %v476 = vrot.slane %v474, 1
      %v477 = vsel %vm441, %v472, %v476
      %v478 = vshrl.u32 %v424, 16
      %v480 = vor.u32 %v478, %v476
      %v482 = vshll.u32 %v425, 16
      %v484 = vrot.slane %v482, 1
      %v485 = vsel %vm441, %v480, %v484
      %v486 = vshrl.u32 %v425, 16
      %v488 = vor.u32 %v486, %v484
      %v490 = vshll.u32 %v426, 16
      %v492 = vrot.slane %v490, 1
      %v493 = vsel %vm441, %v488, %v492
      %v494 = vshrl.u32 %v426, 16
      %v496 = vor.u32 %v494, %v492
      %v498 = vshll.u32 %v427, 16
      %v500 = vrot.slane %v498, 1
      %v501 = vsel %vm441, %v496, %v500
      %v502 = vshrl.u32 %v427, 16
      %v504 = vor.u32 %v502, %v500
      %v506 = vshll.u32 %v428, 16
      %v508 = vrot.slane %v506, 1
      %v509 = vsel %vm441, %v504, %v508
      %v510 = vshrl.u32 %v428, 16
      %v512 = vor.u32 %v510, %v508
      %v514 = vshll.u32 %v429, 16
      %v516 = vrot.slane %v514, 1
      %v517 = vsel %vm441, %v512, %v516
      %v518 = vshrl.u32 %v429, 16
      %v520 = vor.u32 %v518, %v516
      %v522 = vshll.u32 %v430, 16
      %v524 = vrot.slane %v522, 1
      %v525 = vsel %vm441, %v520, %v524
      %v526 = vshrl.u32 %v430, 16
      %v528 = vor.u32 %v526, %v524
      %v530 = vshll.u32 %v431, 16
      %v532 = vrot.slane %v530, 1
      %v533 = vsel %vm441, %v528, %v532
      %v534 = vshrl.u32 %v431, 16
      %v536 = vor.u32 %v534, %v532
      %v538 = vshll.u32 %v432, 16
      %v540 = vrot.slane %v538, 1
      %v541 = vsel %vm441, %v536, %v540
      %v542 = vshrl.u32 %v432, 16
      %v544 = vor.u32 %v542, %v540
      %v546 = vshll.u32 %v433, 16
      %v548 = vrot.slane %v546, 1
      %v549 = vsel %vm441, %v544, %v548
      %v550 = vshrl.u32 %v433, 16
      %v552 = vor.u32 %v550, %v548
      %v554 = vshll.u32 %v434, 16
      %v556 = vrot.slane %v554, 1
      %v557 = vsel %vm441, %v552, %v556
      %v558 = vshrl.u32 %v434, 16
      %v560 = vor.u32 %v558, %v556
      %v562 = vshll.u32 %v435, 16
      %v564 = vrot.slane %v562, 1
      %v565 = vsel %vm441, %v560, %v564
      %v566 = vshrl.u32 %v435, 16
      %v568 = vor.u32 %v566, %v564
      %v570 = vshll.u32 %v436, 16
      %v572 = vrot.slane %v570, 1
      %v573 = vsel %vm441, %v568, %v572
      %v574 = vshrl.u32 %v436, 16
      %v576 = vor.u32 %v574, %v572
      %v578 = vshll.u32 %v437, 16
      %v580 = vrot.slane %v578, 1
      %v581 = vsel %vm441, %v576, %v580
      %v582 = vshrl.u32 %v437, 16
      %v584 = vor.u32 %v582, %v580
      %v586 = vshll.u32 %v440, 16
      %v588 = vrot.slane %v586, 1
      %v589 = vsel %vm441, %v584, %v588
      %590 = vrot.lane.b32.xlu0 %v453, 64
      %v591 = vpop.permute.xlu0 %590
      %592 = vrot.lane.b32.xlu0 %v461, 64
      %v593 = vpop.permute.xlu0 %592
      %594 = vrot.lane.b32.xlu0 %v469, 64
      %v595 = vpop.permute.xlu0 %594
      %596 = vrot.lane.b32.xlu0 %v477, 64
      %v597 = vpop.permute.xlu0 %596
      %598 = vrot.lane.b32.xlu0 %v485, 64
      %v599 = vpop.permute.xlu0 %598
      %600 = vrot.lane.b32.xlu0 %v493, 64
      %v601 = vpop.permute.xlu0 %600
      %602 = vrot.lane.b32.xlu0 %v501, 64
      %v603 = vpop.permute.xlu0 %602
      %604 = vrot.lane.b32.xlu0 %v509, 64
      %v605 = vpop.permute.xlu0 %604
      %606 = vrot.lane.b32.xlu0 %v517, 64
      %v607 = vpop.permute.xlu0 %606
      %608 = vrot.lane.b32.xlu0 %v525, 64
      %v609 = vpop.permute.xlu0 %608
      %610 = vrot.lane.b32.xlu0 %v533, 64
      %v611 = vpop.permute.xlu0 %610
      %612 = vrot.lane.b32.xlu0 %v541, 64
      %v613 = vpop.permute.xlu0 %612
      %614 = vrot.lane.b32.xlu0 %v549, 64
      %v615 = vpop.permute.xlu0 %614
      %616 = vrot.lane.b32.xlu0 %v557, 64
      %v617 = vpop.permute.xlu0 %616
      %618 = vrot.lane.b32.xlu0 %v565, 64
      %v619 = vpop.permute.xlu0 %618
      %620 = vrot.lane.b32.xlu0 %v573, 64
      %v621 = vpop.permute.xlu0 %620
      %622 = vrot.lane.b32.xlu0 %v581, 64
      %v623 = vpop.permute.xlu0 %622
      %624 = vrot.lane.b32.xlu0 %v589, 64
      %v625 = vpop.permute.xlu0 %624
      %v627 = vunpack.c.l.b16 %v335
      %v628 = vpack.c.b16 %v385, %v627
      %vm629 = vcmask 1046528
      %v630 = vrot.slane %v628, 1
      %v631 = vrot.slane %v421, 1
      %v632 = vsel %vm629, %v630, %v631
      %v633 = vrot.slane %v422, 1
      %v634 = vsel %vm629, %v631, %v633
      %v635 = vrot.slane %v423, 1
      %v636 = vsel %vm629, %v633, %v635
      %v637 = vrot.slane %v424, 1
      %v638 = vsel %vm629, %v635, %v637
      %v639 = vrot.slane %v425, 1
      %v640 = vsel %vm629, %v637, %v639
      %v641 = vrot.slane %v426, 1
      %v642 = vsel %vm629, %v639, %v641
      %v643 = vrot.slane %v427, 1
      %v644 = vsel %vm629, %v641, %v643
      %v645 = vrot.slane %v428, 1
      %v646 = vsel %vm629, %v643, %v645
      %v647 = vrot.slane %v429, 1
      %v648 = vsel %vm629, %v645, %v647
      %v649 = vrot.slane %v430, 1
      %v650 = vsel %vm629, %v647, %v649
      %v651 = vrot.slane %v431, 1
      %v652 = vsel %vm629, %v649, %v651
      %v653 = vrot.slane %v432, 1
      %v654 = vsel %vm629, %v651, %v653
      %v655 = vrot.slane %v433, 1
      %v656 = vsel %vm629, %v653, %v655
      %v657 = vrot.slane %v434, 1
      %v658 = vsel %vm629, %v655, %v657
      %v659 = vrot.slane %v435, 1
      %v660 = vsel %vm629, %v657, %v659
      %v661 = vrot.slane %v436, 1
      %v662 = vsel %vm629, %v659, %v661
      %v663 = vrot.slane %v437, 1
      %v664 = vsel %vm629, %v661, %v663
      %v665 = vrot.slane %v440, 1
      %v666 = vsel %vm629, %v663, %v665
      %v671 = vunpack.c.l.b16 %v336
      %v672 = vunpack.c.l.b16 %v337
      %v673 = vunpack.c.l.b16 %v338
      %v674 = vunpack.c.l.b16 %v339
      %v675 = vpack.c.b16 %v387, %v671
      %v676 = vpack.c.b16 %v673, %v672
      %v677 = vpack.c.b16 %v674, %v674
      %v678 = vrot.slane %v675, 1
      %v679 = vsel %vm629, %v678, %v633
      %v680 = vrot.slane %v676, 1
      %v681 = vsel %vm629, %v663, %v680
      %v682 = vrot.slane %v677, 1
      %v683 = vsel %vm629, %v680, %v682
      %684 = vrot.lane.b32.xlu0 %v679, 64
      %v685 = vpop.permute.xlu0 %684
      %686 = vrot.lane.b32.xlu0 %v636, 64
      %v687 = vpop.permute.xlu0 %686
      %688 = vrot.lane.b32.xlu0 %v638, 64
      %v689 = vpop.permute.xlu0 %688
      %690 = vrot.lane.b32.xlu0 %v640, 64
      %v691 = vpop.permute.xlu0 %690
      %692 = vrot.lane.b32.xlu0 %v642, 64
      %v693 = vpop.permute.xlu0 %692
      %694 = vrot.lane.b32.xlu0 %v644, 64
      %v695 = vpop.permute.xlu0 %694
      %696 = vrot.lane.b32.xlu0 %v646, 64
      %v697 = vpop.permute.xlu0 %696
      %698 = vrot.lane.b32.xlu0 %v648, 64
      %v699 = vpop.permute.xlu0 %698
      %700 = vrot.lane.b32.xlu0 %v650, 64
      %v701 = vpop.permute.xlu0 %700
      %702 = vrot.lane.b32.xlu0 %v652, 64
      %v703 = vpop.permute.xlu0 %702
      %704 = vrot.lane.b32.xlu0 %v654, 64
      %v705 = vpop.permute.xlu0 %704
      %706 = vrot.lane.b32.xlu0 %v656, 64
      %v707 = vpop.permute.xlu0 %706
      %708 = vrot.lane.b32.xlu0 %v658, 64
      %v709 = vpop.permute.xlu0 %708
      %710 = vrot.lane.b32.xlu0 %v660, 64
      %v711 = vpop.permute.xlu0 %710
      %712 = vrot.lane.b32.xlu0 %v662, 64
      %v713 = vpop.permute.xlu0 %712
      %714 = vrot.lane.b32.xlu0 %v664, 64
      %v715 = vpop.permute.xlu0 %714
      %716 = vrot.lane.b32.xlu0 %v681, 64
      %v717 = vpop.permute.xlu0 %716
      %718 = vrot.lane.b32.xlu0 %v683, 64
      %v719 = vpop.permute.xlu0 %718
      %v721 = vunpack.c.l.b16 %v340
      %v722 = vpack.c.b16 %v721, %v721
      %vm723 = vsmask.f32 6400
      %v725 = vshrl.u32 %v675, 16
      %v727 = vrot.slane %v725, 1
      %v728 = vshll.u32 %v675, 16
      %v730 = vrot.slane %v728, 2
      %v731 = vor.u32 %v727, %v730
      %v732 = vrot.slane %v462, 1
      %v733 = vrot.slane %v458, 2
      %v734 = vor.u32 %v732, %v733
      %v735 = vsel %vm723, %v731, %v734
      %v736 = vrot.slane %v470, 1
      %v737 = vrot.slane %v466, 2
      %v738 = vor.u32 %v736, %v737
      %v739 = vsel %vm723, %v734, %v738
      %v740 = vrot.slane %v478, 1
      %v741 = vrot.slane %v474, 2
      %v742 = vor.u32 %v740, %v741
      %v743 = vsel %vm723, %v738, %v742
      %v744 = vrot.slane %v486, 1
      %v745 = vrot.slane %v482, 2
      %v746 = vor.u32 %v744, %v745
      %v747 = vsel %vm723, %v742, %v746
      %v748 = vrot.slane %v494, 1
      %v749 = vrot.slane %v490, 2
      %v750 = vor.u32 %v748, %v749
      %v751 = vsel %vm723, %v746, %v750
      %v752 = vrot.slane %v502, 1
      %v753 = vrot.slane %v498, 2
      %v754 = vor.u32 %v752, %v753
      %v755 = vsel %vm723, %v750, %v754
      %v756 = vrot.slane %v510, 1
      %v757 = vrot.slane %v506, 2
      %v758 = vor.u32 %v756, %v757
      %v759 = vsel %vm723, %v754, %v758
      %v760 = vrot.slane %v518, 1
      %v761 = vrot.slane %v514, 2
      %v762 = vor.u32 %v760, %v761
      %v763 = vsel %vm723, %v758, %v762
      %v764 = vrot.slane %v526, 1
      %v765 = vrot.slane %v522, 2
      %v766 = vor.u32 %v764, %v765
      %v767 = vsel %vm723, %v762, %v766
      %v768 = vrot.slane %v534, 1
      %v769 = vrot.slane %v530, 2
      %v770 = vor.u32 %v768, %v769
      %v771 = vsel %vm723, %v766, %v770
      %v772 = vrot.slane %v542, 1
      %v773 = vrot.slane %v538, 2
      %v774 = vor.u32 %v772, %v773
      %v775 = vsel %vm723, %v770, %v774
      %v776 = vrot.slane %v550, 1
      %v777 = vrot.slane %v546, 2
      %v778 = vor.u32 %v776, %v777
      %v779 = vsel %vm723, %v774, %v778
      %v780 = vrot.slane %v558, 1
      %v781 = vrot.slane %v554, 2
      %v782 = vor.u32 %v780, %v781
      %v783 = vsel %vm723, %v778, %v782
      %v784 = vrot.slane %v566, 1
      %v785 = vrot.slane %v562, 2
      %v786 = vor.u32 %v784, %v785
      %v787 = vsel %vm723, %v782, %v786
      %v788 = vrot.slane %v574, 1
      %v789 = vrot.slane %v570, 2
      %v790 = vor.u32 %v788, %v789
      %v791 = vsel %vm723, %v786, %v790
      %v792 = vrot.slane %v582, 1
      %v793 = vrot.slane %v578, 2
      %v794 = vor.u32 %v792, %v793
      %v795 = vsel %vm723, %v790, %v794
      %v797 = vshrl.u32 %v676, 16
      %v799 = vrot.slane %v797, 1
      %v800 = vshll.u32 %v676, 16
      %v802 = vrot.slane %v800, 2
      %v803 = vor.u32 %v799, %v802
      %v804 = vsel %vm723, %v794, %v803
      %v806 = vshrl.u32 %v722, 16
      %v808 = vrot.slane %v806, 1
      %v809 = vshll.u32 %v722, 16
      %v811 = vrot.slane %v809, 2
      %v812 = vor.u32 %v808, %v811
      %v813 = vsel %vm723, %v803, %v812
      %v815 = vunpack.c.l.b16 %v341
      %v816 = vpack.c.b16 %v387, %v815
      %vm817 = vcmask 1045504
      %v818 = vrot.slane %v816, 2
      %v819 = vrot.slane %v422, 2
      %v820 = vsel %vm817, %v818, %v819
      %v821 = vrot.slane %v423, 2
      %v822 = vsel %vm817, %v819, %v821
      %v823 = vrot.slane %v424, 2
      %v824 = vsel %vm817, %v821, %v823
      %v825 = vrot.slane %v425, 2
      %v826 = vsel %vm817, %v823, %v825
      %v827 = vrot.slane %v426, 2
      %v828 = vsel %vm817, %v825, %v827
      %v829 = vrot.slane %v427, 2
      %v830 = vsel %vm817, %v827, %v829
      %v831 = vrot.slane %v428, 2
      %v832 = vsel %vm817, %v829, %v831
      %v833 = vrot.slane %v429, 2
      %v834 = vsel %vm817, %v831, %v833
      %v835 = vrot.slane %v430, 2
      %v836 = vsel %vm817, %v833, %v835
      %v837 = vrot.slane %v431, 2
      %v838 = vsel %vm817, %v835, %v837
      %v839 = vrot.slane %v432, 2
      %v840 = vsel %vm817, %v837, %v839
      %v841 = vrot.slane %v433, 2
      %v842 = vsel %vm817, %v839, %v841
      %v843 = vrot.slane %v434, 2
      %v844 = vsel %vm817, %v841, %v843
      %v845 = vrot.slane %v435, 2
      %v846 = vsel %vm817, %v843, %v845
      %v847 = vrot.slane %v436, 2
      %v848 = vsel %vm817, %v845, %v847
      %v849 = vrot.slane %v437, 2
      %v850 = vsel %vm817, %v847, %v849
      %v851 = vrot.slane %v676, 2
      %v852 = vsel %vm817, %v849, %v851
      %v853 = vrot.slane %v722, 2
      %v854 = vsel %vm817, %v851, %v853
      %855 = vrot.lane.b32.xlu0 %v820, 64
      %v856 = vpop.permute.xlu0 %855
      %857 = vrot.lane.b32.xlu0 %v822, 64
      %v858 = vpop.permute.xlu0 %857
      %859 = vrot.lane.b32.xlu0 %v824, 64
      %v860 = vpop.permute.xlu0 %859
      %861 = vrot.lane.b32.xlu0 %v826, 64
      %v862 = vpop.permute.xlu0 %861
      %863 = vrot.lane.b32.xlu0 %v828, 64
      %v864 = vpop.permute.xlu0 %863
      %865 = vrot.lane.b32.xlu0 %v830, 64
      %v866 = vpop.permute.xlu0 %865
      %867 = vrot.lane.b32.xlu0 %v832, 64
      %v868 = vpop.permute.xlu0 %867
      %869 = vrot.lane.b32.xlu0 %v834, 64
      %v870 = vpop.permute.xlu0 %869
      %871 = vrot.lane.b32.xlu0 %v836, 64
      %v872 = vpop.permute.xlu0 %871
      %873 = vrot.lane.b32.xlu0 %v838, 64
      %v874 = vpop.permute.xlu0 %873
      %875 = vrot.lane.b32.xlu0 %v840, 64
      %v876 = vpop.permute.xlu0 %875
      %877 = vrot.lane.b32.xlu0 %v842, 64
      %v878 = vpop.permute.xlu0 %877
      %879 = vrot.lane.b32.xlu0 %v844, 64
      %v880 = vpop.permute.xlu0 %879
      %881 = vrot.lane.b32.xlu0 %v846, 64
      %v882 = vpop.permute.xlu0 %881
      %883 = vrot.lane.b32.xlu0 %v848, 64
      %v884 = vpop.permute.xlu0 %883
      %885 = vrot.lane.b32.xlu0 %v850, 64
      %v886 = vpop.permute.xlu0 %885
      %887 = vrot.lane.b32.xlu0 %v852, 64
      %v888 = vpop.permute.xlu0 %887
      %889 = vrot.lane.b32.xlu0 %v854, 64
      %v890 = vpop.permute.xlu0 %889
      %v895 = vunpack.c.l.b16 %v342
      %v896 = vunpack.c.l.b16 %v343
      %v897 = vunpack.c.l.b16 %v344
      %v898 = vunpack.c.l.b16 %v345
      %v899 = vpack.c.b16 %v389, %v895
      %v900 = vpack.c.b16 %v897, %v896
      %v901 = vpack.c.b16 %v898, %v898
      %v902 = vrot.slane %v899, 2
      %v903 = vsel %vm817, %v902, %v821
      %v904 = vrot.slane %v900, 2
      %v905 = vsel %vm817, %v851, %v904
      %v906 = vrot.slane %v901, 2
      %v907 = vsel %vm817, %v904, %v906
      %v909 = vunpack.c.l.b16 %v346
      %v910 = vpack.c.b16 %v909, %v909
      %vm911 = vsmask.f32 5376
      %v913 = vshrl.u32 %v899, 16
      %v915 = vrot.slane %v913, 2
      %v916 = vshll.u32 %v899, 16
      %v918 = vrot.slane %v916, 3
      %v919 = vor.u32 %v915, %v918
      %v920 = vrot.slane %v470, 2
      %v921 = vrot.slane %v466, 3
      %v922 = vor.u32 %v920, %v921
      %v923 = vsel %vm911, %v919, %v922
      %v924 = vrot.slane %v478, 2
      %v925 = vrot.slane %v474, 3
      %v926 = vor.u32 %v924, %v925
      %v927 = vsel %vm911, %v922, %v926
      %v928 = vrot.slane %v486, 2
      %v929 = vrot.slane %v482, 3
      %v930 = vor.u32 %v928, %v929
      %v931 = vsel %vm911, %v926, %v930
      %v932 = vrot.slane %v494, 2
      %v933 = vrot.slane %v490, 3
      %v934 = vor.u32 %v932, %v933
      %v935 = vsel %vm911, %v930, %v934
      %v936 = vrot.slane %v502, 2
      %v937 = vrot.slane %v498, 3
      %v938 = vor.u32 %v936, %v937
      %v939 = vsel %vm911, %v934, %v938
      %v940 = vrot.slane %v510, 2
      %v941 = vrot.slane %v506, 3
      %v942 = vor.u32 %v940, %v941
      %v943 = vsel %vm911, %v938, %v942
      %v944 = vrot.slane %v518, 2
      %v945 = vrot.slane %v514, 3
      %v946 = vor.u32 %v944, %v945
      %v947 = vsel %vm911, %v942, %v946
      %v948 = vrot.slane %v526, 2
      %v949 = vrot.slane %v522, 3
      %v950 = vor.u32 %v948, %v949
      %v951 = vsel %vm911, %v946, %v950
      %v952 = vrot.slane %v534, 2
      %v953 = vrot.slane %v530, 3
      %v954 = vor.u32 %v952, %v953
      %v955 = vsel %vm911, %v950, %v954
      %v956 = vrot.slane %v542, 2
      %v957 = vrot.slane %v538, 3
      %v958 = vor.u32 %v956, %v957
      %v959 = vsel %vm911, %v954, %v958
      %v960 = vrot.slane %v550, 2
      %v961 = vrot.slane %v546, 3
      %v962 = vor.u32 %v960, %v961
      %v963 = vsel %vm911, %v958, %v962
      %v964 = vrot.slane %v558, 2
      %v965 = vrot.slane %v554, 3
      %v966 = vor.u32 %v964, %v965
      %v967 = vsel %vm911, %v962, %v966
      %v968 = vrot.slane %v566, 2
      %v969 = vrot.slane %v562, 3
      %v970 = vor.u32 %v968, %v969
      %v971 = vsel %vm911, %v966, %v970
      %v972 = vrot.slane %v574, 2
      %v973 = vrot.slane %v570, 3
      %v974 = vor.u32 %v972, %v973
      %v975 = vsel %vm911, %v970, %v974
      %v976 = vrot.slane %v582, 2
      %v977 = vrot.slane %v578, 3
      %v978 = vor.u32 %v976, %v977
      %v979 = vsel %vm911, %v974, %v978
      %v980 = vrot.slane %v797, 2
      %v981 = vrot.slane %v800, 3
      %v982 = vor.u32 %v980, %v981
      %v983 = vsel %vm911, %v978, %v982
      %v985 = vshrl.u32 %v900, 16
      %v987 = vrot.slane %v985, 2
      %v988 = vshll.u32 %v900, 16
      %v990 = vrot.slane %v988, 3
      %v991 = vor.u32 %v987, %v990
      %v992 = vsel %vm911, %v982, %v991
      %v994 = vshrl.u32 %v910, 16
      %v996 = vrot.slane %v994, 2
      %v997 = vshll.u32 %v910, 16
      %v999 = vrot.slane %v997, 3
      %v1000 = vor.u32 %v996, %v999
      %v1001 = vsel %vm911, %v991, %v1000
      %1002 = vrot.lane.b32.xlu0 %v923, 64
      %v1003 = vpop.permute.xlu0 %1002
      %1004 = vrot.lane.b32.xlu0 %v927, 64
      %v1005 = vpop.permute.xlu0 %1004
      %1006 = vrot.lane.b32.xlu0 %v931, 64
      %v1007 = vpop.permute.xlu0 %1006
      %1008 = vrot.lane.b32.xlu0 %v935, 64
      %v1009 = vpop.permute.xlu0 %1008
      %1010 = vrot.lane.b32.xlu0 %v939, 64
      %v1011 = vpop.permute.xlu0 %1010
      %1012 = vrot.lane.b32.xlu0 %v943, 64
      %v1013 = vpop.permute.xlu0 %1012
      %1014 = vrot.lane.b32.xlu0 %v947, 64
      %v1015 = vpop.permute.xlu0 %1014
      %1016 = vrot.lane.b32.xlu0 %v951, 64
      %v1017 = vpop.permute.xlu0 %1016
      %1018 = vrot.lane.b32.xlu0 %v955, 64
      %v1019 = vpop.permute.xlu0 %1018
      %1020 = vrot.lane.b32.xlu0 %v959, 64
      %v1021 = vpop.permute.xlu0 %1020
      %1022 = vrot.lane.b32.xlu0 %v963, 64
      %v1023 = vpop.permute.xlu0 %1022
      %1024 = vrot.lane.b32.xlu0 %v967, 64
      %v1025 = vpop.permute.xlu0 %1024
      %1026 = vrot.lane.b32.xlu0 %v971, 64
      %v1027 = vpop.permute.xlu0 %1026
      %1028 = vrot.lane.b32.xlu0 %v975, 64
      %v1029 = vpop.permute.xlu0 %1028
      %1030 = vrot.lane.b32.xlu0 %v979, 64
      %v1031 = vpop.permute.xlu0 %1030
      %1032 = vrot.lane.b32.xlu0 %v983, 64
      %v1033 = vpop.permute.xlu0 %1032
      %1034 = vrot.lane.b32.xlu0 %v992, 64
      %v1035 = vpop.permute.xlu0 %1034
      %1036 = vrot.lane.b32.xlu0 %v1001, 64
      %v1037 = vpop.permute.xlu0 %1036
      %v1039 = vunpack.c.l.b16 %v347
      %v1040 = vpack.c.b16 %v389, %v1039
      %vm1041 = vcmask 1044480
      %v1042 = vrot.slane %v1040, 3
      %v1043 = vrot.slane %v423, 3
      %v1044 = vsel %vm1041, %v1042, %v1043
      %v1045 = vrot.slane %v424, 3
      %v1046 = vsel %vm1041, %v1043, %v1045
      %v1047 = vrot.slane %v425, 3
      %v1048 = vsel %vm1041, %v1045, %v1047
      %v1049 = vrot.slane %v426, 3
      %v1050 = vsel %vm1041, %v1047, %v1049
      %v1051 = vrot.slane %v427, 3
      %v1052 = vsel %vm1041, %v1049, %v1051
      %v1053 = vrot.slane %v428, 3
      %v1054 = vsel %vm1041, %v1051, %v1053
      %v1055 = vrot.slane %v429, 3
      %v1056 = vsel %vm1041, %v1053, %v1055
      %v1057 = vrot.slane %v430, 3
      %v1058 = vsel %vm1041, %v1055, %v1057
      %v1059 = vrot.slane %v431, 3
      %v1060 = vsel %vm1041, %v1057, %v1059
      %v1061 = vrot.slane %v432, 3
      %v1062 = vsel %vm1041, %v1059, %v1061
      %v1063 = vrot.slane %v433, 3
      %v1064 = vsel %vm1041, %v1061, %v1063
      %v1065 = vrot.slane %v434, 3
      %v1066 = vsel %vm1041, %v1063, %v1065
      %v1067 = vrot.slane %v435, 3
      %v1068 = vsel %vm1041, %v1065, %v1067
      %v1069 = vrot.slane %v436, 3
      %v1070 = vsel %vm1041, %v1067, %v1069
      %v1071 = vrot.slane %v437, 3
      %v1072 = vsel %vm1041, %v1069, %v1071
      %v1073 = vrot.slane %v676, 3
      %v1074 = vsel %vm1041, %v1071, %v1073
      %v1075 = vrot.slane %v900, 3
      %v1076 = vsel %vm1041, %v1073, %v1075
      %v1077 = vrot.slane %v910, 3
      %v1078 = vsel %vm1041, %v1075, %v1077
      %vm1079 = vcmask 523264
      %v1081 = vsel %vm1079, %v420, %v591
      %v1084 = vsel %vm1079, %v421, %v593
      %v1087 = vsel %vm1079, %v422, %v595
      %v1090 = vsel %vm1079, %v423, %v597
      %v1093 = vsel %vm1079, %v424, %v599
      %v1096 = vsel %vm1079, %v425, %v601
      %v1099 = vsel %vm1079, %v426, %v603
      %v1102 = vsel %vm1079, %v427, %v605
      %v1105 = vsel %vm1079, %v428, %v607
      %v1108 = vsel %vm1079, %v429, %v609
      %v1111 = vsel %vm1079, %v430, %v611
      %v1114 = vsel %vm1079, %v431, %v613
      %v1117 = vsel %vm1079, %v432, %v615
      %v1120 = vsel %vm1079, %v433, %v617
      %v1123 = vsel %vm1079, %v434, %v619
      %v1126 = vsel %vm1079, %v435, %v621
      %v1129 = vsel %vm1079, %v436, %v623
      %v1132 = vsel %vm1079, %v437, %v625
      %v1136 = vsel %vm1079, %v632, %v685
      %v1140 = vsel %vm1079, %v634, %v687
      %v1144 = vsel %vm1079, %v636, %v689
      %v1148 = vsel %vm1079, %v638, %v691
      %v1152 = vsel %vm1079, %v640, %v693
      %v1156 = vsel %vm1079, %v642, %v695
      %v1160 = vsel %vm1079, %v644, %v697
      %v1164 = vsel %vm1079, %v646, %v699
      %v1168 = vsel %vm1079, %v648, %v701
      %v1172 = vsel %vm1079, %v650, %v703
      %v1176 = vsel %vm1079, %v652, %v705
      %v1180 = vsel %vm1079, %v654, %v707
      %v1184 = vsel %vm1079, %v656, %v709
      %v1188 = vsel %vm1079, %v658, %v711
      %v1192 = vsel %vm1079, %v660, %v713
      %v1196 = vsel %vm1079, %v662, %v715
      %v1200 = vsel %vm1079, %v664, %v717
      %v1204 = vsel %vm1079, %v666, %v719
      %v1208 = vsel %vm1079, %v735, %v856
      %v1212 = vsel %vm1079, %v739, %v858
      %v1216 = vsel %vm1079, %v743, %v860
      %v1220 = vsel %vm1079, %v747, %v862
      %v1224 = vsel %vm1079, %v751, %v864
      %v1228 = vsel %vm1079, %v755, %v866
      %v1232 = vsel %vm1079, %v759, %v868
      %v1236 = vsel %vm1079, %v763, %v870
      %v1240 = vsel %vm1079, %v767, %v872
      %v1244 = vsel %vm1079, %v771, %v874
      %v1248 = vsel %vm1079, %v775, %v876
      %v1252 = vsel %vm1079, %v779, %v878
      %v1256 = vsel %vm1079, %v783, %v880
      %v1260 = vsel %vm1079, %v787, %v882
      %v1264 = vsel %vm1079, %v791, %v884
      %v1268 = vsel %vm1079, %v795, %v886
      %v1272 = vsel %vm1079, %v804, %v888
      %v1276 = vsel %vm1079, %v813, %v890
      %v1280 = vsel %vm1079, %v903, %v1003
      %v1284 = vsel %vm1079, %v824, %v1005
      %v1288 = vsel %vm1079, %v826, %v1007
      %v1292 = vsel %vm1079, %v828, %v1009
      %v1296 = vsel %vm1079, %v830, %v1011
      %v1300 = vsel %vm1079, %v832, %v1013
      %v1304 = vsel %vm1079, %v834, %v1015
      %v1308 = vsel %vm1079, %v836, %v1017
      %v1312 = vsel %vm1079, %v838, %v1019
      %v1316 = vsel %vm1079, %v840, %v1021
      %v1320 = vsel %vm1079, %v842, %v1023
      %v1324 = vsel %vm1079, %v844, %v1025
      %v1328 = vsel %vm1079, %v846, %v1027
      %v1332 = vsel %vm1079, %v848, %v1029
      %v1336 = vsel %vm1079, %v850, %v1031
      %v1340 = vsel %vm1079, %v852, %v1033
      %v1344 = vsel %vm1079, %v905, %v1035
      %v1348 = vsel %vm1079, %v907, %v1037
      %v1350 = vld [vmem:[%s3] sm:$0xf]
      %v1351 = vld [vmem:[%s3 + $0x4] sm:$0xf]
      %v1352 = vld [vmem:[%s3 + $0x8] sm:$0xf]
      %v1353 = vld [vmem:[%s3 + $0xc] sm:$0xf]
      %v1354 = vld [vmem:[%s3 + $0x10] sm:$0xf]
      %v1355 = vld [vmem:[%s3 + $0x14] sm:$0xf]
      %v1356 = vld [vmem:[%s3 + $0x18] sm:$0xf]
      %v1357 = vld [vmem:[%s3 + $0x1c] sm:$0xf]
      %v1358 = vld [vmem:[%s3 + $0x20] sm:$0xf]
      %v1359 = vld [vmem:[%s3 + $0x24] sm:$0xf]
      %v1360 = vld [vmem:[%s3 + $0x28] sm:$0xf]
      %v1361 = vld [vmem:[%s3 + $0x2c] sm:$0xf]
      %v1362 = vld [vmem:[%s3 + $0x30] sm:$0xf]
      %v1363 = vld [vmem:[%s3 + $0x34] sm:$0xf]
      %v1364 = vld [vmem:[%s3 + $0x38] sm:$0xf]
      %v1365 = vld [vmem:[%s3 + $0x3c] sm:$0xf]
      %v1366 = vld [vmem:[%s3 + $0x40] sm:$0xf]
      %v1367 = vld [vmem:[%s3 + $0x44] sm:$0xf]
      %v1368 = vld [vmem:[%s3 + $0x48] sm:$0xf]
      %v1369 = vld [vmem:[%s3 + $0x4c] sm:$0xf]
      %v1370 = vld [vmem:[%s3 + $0x50] sm:$0xf]
      %v1371 = vld [vmem:[%s3 + $0x54] sm:$0xf]
      %v1372 = vld [vmem:[%s3 + $0x58] sm:$0xf]
      %v1373 = vld [vmem:[%s3 + $0x5c] sm:$0xf]
      %v1374 = vld [vmem:[%s3 + $0x60] sm:$0xf]
      %v1375 = vld [vmem:[%s3 + $0x64] sm:$0xf]
      %v1376 = vld [vmem:[%s3 + $0x68] sm:$0xf]
      %v1377 = vld [vmem:[%s3 + $0x6c] sm:$0xf]
      %v1378 = vld [vmem:[%s3 + $0x70] sm:$0xf]
      %v1379 = vld [vmem:[%s3 + $0x74] sm:$0xf]
      %v1380 = vld [vmem:[%s3 + $0x78] sm:$0xf]
      %v1381 = vld [vmem:[%s3 + $0x7c] sm:$0xf]
      %v1382 = vld [vmem:[%s3 + $0x80] sm:$0xf]
      %v1383 = vld [vmem:[%s3 + $0x84] sm:$0xf]
      %v1384 = vld [vmem:[%s3 + $0x88] sm:$0xf]
      %v1385 = vld [vmem:[%s3 + $0x8c] sm:$0xf]
      %v1386 = vld [vmem:[%s3 + $0x90] sm:$0xf]
      %v1387 = vld [vmem:[%s3 + $0x94] sm:$0xf]
      %v1388 = vld [vmem:[%s3 + $0x98] sm:$0xf]
      %v1389 = vld [vmem:[%s3 + $0x9c] sm:$0xf]
      %v1390 = vld [vmem:[%s3 + $0xa0] sm:$0xf]
      %v1391 = vld [vmem:[%s3 + $0xa4] sm:$0xf]
      %v1392 = vld [vmem:[%s3 + $0xa8] sm:$0xf]
      %v1393 = vld [vmem:[%s3 + $0xac] sm:$0xf]
      %v1394 = vld [vmem:[%s3 + $0xb0] sm:$0xf]
      %v1395 = vld [vmem:[%s3 + $0xb4] sm:$0xf]
      %v1396 = vld [vmem:[%s3 + $0xb8] sm:$0xf]
      %v1397 = vld [vmem:[%s3 + $0xbc] sm:$0xf]
      %v1398 = vld [vmem:[%s3 + $0xc0] sm:$0xf]
      %v1399 = vld [vmem:[%s3 + $0xc4] sm:$0xf]
      %v1400 = vld [vmem:[%s3 + $0xc8] sm:$0xf]
      %v1401 = vld [vmem:[%s3 + $0xcc] sm:$0xf]
      %v1402 = vld [vmem:[%s3 + $0xd0] sm:$0xf]
      %v1403 = vld [vmem:[%s3 + $0xd4] sm:$0xf]
      %v1404 = vld [vmem:[%s3 + $0xd8] sm:$0xf]
      %v1405 = vld [vmem:[%s3 + $0xdc] sm:$0xf]
      %v1406 = vld [vmem:[%s3 + $0xe0] sm:$0xf]
      %v1407 = vld [vmem:[%s3 + $0xe4] sm:$0xf]
      %v1408 = vld [vmem:[%s3 + $0xe8] sm:$0xf]
      %v1409 = vld [vmem:[%s3 + $0xec] sm:$0xf]
      %v1410 = vld [vmem:[%s3 + $0xf0] sm:$0xf]
      %v1411 = vld [vmem:[%s3 + $0xf4] sm:$0xf]
      %v1412 = vld [vmem:[%s3 + $0xf8] sm:$0xf]
      %v1413 = vld [vmem:[%s3 + $0xfc] sm:$0xf]
      %v1414 = vld [vmem:[%s3 + $0x100] sm:$0xf]
      %v1415 = vld [vmem:[%s3 + $0x104] sm:$0xf]
      %v1416 = vld [vmem:[%s3 + $0x108] sm:$0xf]
      %v1417 = vld [vmem:[%s3 + $0x10c] sm:$0xf]
      %v1418 = vld [vmem:[%s3 + $0x110] sm:$0xf]
      %v1419 = vld [vmem:[%s3 + $0x114] sm:$0xf]
      %v1420 = vld [vmem:[%s3 + $0x118] sm:$0xf]
      %v1421 = vld [vmem:[%s3 + $0x11c] sm:$0xf]
      %v1422 = vperm.slane %v297, 0
      %v1495 = vunpack.c.l.b16 %v1350
      %v1496 = vunpack.c.l.b16 %v1351
      %v1497 = vunpack.c.l.b16 %v1352
      %v1498 = vunpack.c.l.b16 %v1353
      %v1499 = vunpack.c.l.b16 %v1354
      %v1500 = vunpack.c.l.b16 %v1355
      %v1501 = vunpack.c.l.b16 %v1356
      %v1502 = vunpack.c.l.b16 %v1357
      %v1503 = vunpack.c.l.b16 %v1358
      %v1504 = vunpack.c.l.b16 %v1359
      %v1505 = vunpack.c.l.b16 %v1360
      %v1506 = vunpack.c.l.b16 %v1361
      %v1507 = vunpack.c.l.b16 %v1362
      %v1508 = vunpack.c.l.b16 %v1363
      %v1509 = vunpack.c.l.b16 %v1364
      %v1510 = vunpack.c.l.b16 %v1365
      %v1511 = vunpack.c.l.b16 %v1366
      %v1512 = vunpack.c.l.b16 %v1367
      %v1513 = vunpack.c.l.b16 %v1368
      %v1514 = vunpack.c.l.b16 %v1369
      %v1515 = vunpack.c.l.b16 %v1370
      %v1516 = vunpack.c.l.b16 %v1371
      %v1517 = vunpack.c.l.b16 %v1372
      %v1518 = vunpack.c.l.b16 %v1373
      %v1519 = vunpack.c.l.b16 %v1374
      %v1520 = vunpack.c.l.b16 %v1375
      %v1521 = vunpack.c.l.b16 %v1376
      %v1522 = vunpack.c.l.b16 %v1377
      %v1523 = vunpack.c.l.b16 %v1378
      %v1524 = vunpack.c.l.b16 %v1379
      %v1525 = vunpack.c.l.b16 %v1380
      %v1526 = vunpack.c.l.b16 %v1381
      %v1527 = vunpack.c.l.b16 %v1382
      %v1528 = vunpack.c.l.b16 %v1383
      %v1529 = vunpack.c.l.b16 %v1384
      %v1530 = vunpack.c.l.b16 %v1385
      %v1531 = vunpack.c.l.b16 %v1386
      %v1532 = vunpack.c.l.b16 %v1387
      %v1533 = vunpack.c.l.b16 %v1388
      %v1534 = vunpack.c.l.b16 %v1389
      %v1535 = vunpack.c.l.b16 %v1390
      %v1536 = vunpack.c.l.b16 %v1391
      %v1537 = vunpack.c.l.b16 %v1392
      %v1538 = vunpack.c.l.b16 %v1393
      %v1539 = vunpack.c.l.b16 %v1394
      %v1540 = vunpack.c.l.b16 %v1395
      %v1541 = vunpack.c.l.b16 %v1396
      %v1542 = vunpack.c.l.b16 %v1397
      %v1543 = vunpack.c.l.b16 %v1398
      %v1544 = vunpack.c.l.b16 %v1399
      %v1545 = vunpack.c.l.b16 %v1400
      %v1546 = vunpack.c.l.b16 %v1401
      %v1547 = vunpack.c.l.b16 %v1402
      %v1548 = vunpack.c.l.b16 %v1403
      %v1549 = vunpack.c.l.b16 %v1404
      %v1550 = vunpack.c.l.b16 %v1405
      %v1551 = vunpack.c.l.b16 %v1406
      %v1552 = vunpack.c.l.b16 %v1407
      %v1553 = vunpack.c.l.b16 %v1408
      %v1554 = vunpack.c.l.b16 %v1409
      %v1555 = vunpack.c.l.b16 %v1410
      %v1556 = vunpack.c.l.b16 %v1411
      %v1557 = vunpack.c.l.b16 %v1412
      %v1558 = vunpack.c.l.b16 %v1413
      %v1559 = vunpack.c.l.b16 %v1414
      %v1560 = vunpack.c.l.b16 %v1415
      %v1561 = vunpack.c.l.b16 %v1416
      %v1562 = vunpack.c.l.b16 %v1417
      %v1563 = vunpack.c.l.b16 %v1418
      %v1564 = vunpack.c.l.b16 %v1419
      %v1565 = vunpack.c.l.b16 %v1420
      %v1566 = vunpack.c.l.b16 %v1421
      %v1567 = vpack.c.b16 %v1496, %v1495
      %v1568 = vpack.c.b16 %v1498, %v1497
      %v1569 = vpack.c.b16 %v1500, %v1499
      %v1570 = vpack.c.b16 %v1502, %v1501
      %v1571 = vpack.c.b16 %v1504, %v1503
      %v1572 = vpack.c.b16 %v1506, %v1505
      %v1573 = vpack.c.b16 %v1508, %v1507
      %v1574 = vpack.c.b16 %v1510, %v1509
      %v1575 = vpack.c.b16 %v1512, %v1511
      %v1576 = vpack.c.b16 %v1514, %v1513
      %v1577 = vpack.c.b16 %v1516, %v1515
      %v1578 = vpack.c.b16 %v1518, %v1517
      %v1579 = vpack.c.b16 %v1520, %v1519
      %v1580 = vpack.c.b16 %v1522, %v1521
      %v1581 = vpack.c.b16 %v1524, %v1523
      %v1582 = vpack.c.b16 %v1526, %v1525
      %v1583 = vpack.c.b16 %v1528, %v1527
      %v1584 = vpack.c.b16 %v1530, %v1529
      %v1585 = vpack.c.b16 %v1532, %v1531
      %v1586 = vpack.c.b16 %v1534, %v1533
      %v1587 = vpack.c.b16 %v1536, %v1535
      %v1588 = vpack.c.b16 %v1538, %v1537
      %v1589 = vpack.c.b16 %v1540, %v1539
      %v1590 = vpack.c.b16 %v1542, %v1541
      %v1591 = vpack.c.b16 %v1544, %v1543
      %v1592 = vpack.c.b16 %v1546, %v1545
      %v1593 = vpack.c.b16 %v1548, %v1547
      %v1594 = vpack.c.b16 %v1550, %v1549
      %v1595 = vpack.c.b16 %v1552, %v1551
      %v1596 = vpack.c.b16 %v1554, %v1553
      %v1597 = vpack.c.b16 %v1556, %v1555
      %v1598 = vpack.c.b16 %v1558, %v1557
      %v1599 = vpack.c.b16 %v1560, %v1559
      %v1600 = vpack.c.b16 %v1562, %v1561
      %v1601 = vpack.c.b16 %v1564, %v1563
      %v1602 = vpack.c.b16 %v1566, %v1565
      %v1640 = vsel %vm1079, %v1044, 0
      %v1643 = vsel %vm1079, %v1046, 0
      %v1646 = vsel %vm1079, %v1048, 0
      %v1649 = vsel %vm1079, %v1050, 0
      %v1652 = vsel %vm1079, %v1052, 0
      %v1655 = vsel %vm1079, %v1054, 0
      %v1658 = vsel %vm1079, %v1056, 0
      %v1661 = vsel %vm1079, %v1058, 0
      %v1664 = vsel %vm1079, %v1060, 0
      %v1667 = vsel %vm1079, %v1062, 0
      %v1670 = vsel %vm1079, %v1064, 0
      %v1673 = vsel %vm1079, %v1066, 0
      %v1676 = vsel %vm1079, %v1068, 0
      %v1679 = vsel %vm1079, %v1070, 0
      %v1682 = vsel %vm1079, %v1072, 0
      %v1685 = vsel %vm1079, %v1074, 0
      %v1688 = vsel %vm1079, %v1076, 0
      %v1691 = vsel %vm1079, %v1078, 0
      %1693 = vmatpush.bf16.msra.mxu0 %v1574
      %1694 = vmatpush.bf16.msra.mxu0 %v1573
      %1695 = vmatpush.bf16.msra.mxu0 %v1572
      %1696 = vmatpush.bf16.msra.mxu0 %v1571
      %1697 = vmatpush.bf16.msra.mxu0 %v1570
      %1698 = vmatpush.bf16.msra.mxu0 %v1569
      %1699 = vmatpush.bf16.msra.mxu0 %v1568
      %1700 = vmatpush.bf16.msra.mxu0 %v1567
      %1701 = vmatmul.bf16.gmra.mxu0 %v1081
      %v1702 = vpop.f32.mrf.mxu0
      %v1703 = vadd.f32 %v1422, %v1702
      %v1704 = vpop.f32.mrf.mxu0
      %v1705 = vadd.f32 %v1422, %v1704
      %1706 = vmatmul.bf16.gmra.mxu0 %v1084
      %v1707 = vpop.f32.mrf.mxu0
      %v1708 = vadd.f32 %v1422, %v1707
      %v1709 = vpop.f32.mrf.mxu0
      %v1710 = vadd.f32 %v1422, %v1709
      %1711 = vmatmul.bf16.gmra.mxu0 %v1087
      %v1712 = vpop.f32.mrf.mxu0
      %v1713 = vadd.f32 %v1422, %v1712
      %v1714 = vpop.f32.mrf.mxu0
      %v1715 = vadd.f32 %v1422, %v1714
      %1716 = vmatmul.bf16.gmra.mxu0 %v1090
      %v1717 = vpop.f32.mrf.mxu0
      %v1718 = vadd.f32 %v1422, %v1717
      %v1719 = vpop.f32.mrf.mxu0
      %v1720 = vadd.f32 %v1422, %v1719
      %1721 = vmatmul.bf16.gmra.mxu0 %v1093
      %v1722 = vpop.f32.mrf.mxu0
      %v1723 = vadd.f32 %v1422, %v1722
      %v1724 = vpop.f32.mrf.mxu0
      %v1725 = vadd.f32 %v1422, %v1724
      %1726 = vmatmul.bf16.gmra.mxu0 %v1096
      %v1727 = vpop.f32.mrf.mxu0
      %v1728 = vadd.f32 %v1422, %v1727
      %v1729 = vpop.f32.mrf.mxu0
      %v1730 = vadd.f32 %v1422, %v1729
      %1731 = vmatmul.bf16.gmra.mxu0 %v1099
      %v1732 = vpop.f32.mrf.mxu0
      %v1733 = vadd.f32 %v1422, %v1732
      %v1734 = vpop.f32.mrf.mxu0
      %v1735 = vadd.f32 %v1422, %v1734
      %1736 = vmatmul.bf16.gmra.mxu0 %v1102
      %v1737 = vpop.f32.mrf.mxu0
      %v1738 = vadd.f32 %v1422, %v1737
      %v1739 = vpop.f32.mrf.mxu0
      %v1740 = vadd.f32 %v1422, %v1739
      %1741 = vmatmul.bf16.gmra.mxu0 %v1105
      %v1742 = vpop.f32.mrf.mxu0
      %v1743 = vadd.f32 %v1422, %v1742
      %v1744 = vpop.f32.mrf.mxu0
      %v1745 = vadd.f32 %v1422, %v1744
      %1746 = vmatmul.bf16.gmra.mxu0 %v1108
      %v1747 = vpop.f32.mrf.mxu0
      %v1748 = vadd.f32 %v1422, %v1747
      %v1749 = vpop.f32.mrf.mxu0
      %v1750 = vadd.f32 %v1422, %v1749
      %1751 = vmatmul.bf16.gmra.mxu0 %v1111
      %v1752 = vpop.f32.mrf.mxu0
      %v1753 = vadd.f32 %v1422, %v1752
      %v1754 = vpop.f32.mrf.mxu0
      %v1755 = vadd.f32 %v1422, %v1754
      %1756 = vmatmul.bf16.gmra.mxu0 %v1114
      %v1757 = vpop.f32.mrf.mxu0
      %v1758 = vadd.f32 %v1422, %v1757
      %v1759 = vpop.f32.mrf.mxu0
      %v1760 = vadd.f32 %v1422, %v1759
      %1761 = vmatmul.bf16.gmra.mxu0 %v1117
      %v1762 = vpop.f32.mrf.mxu0
      %v1763 = vadd.f32 %v1422, %v1762
      %v1764 = vpop.f32.mrf.mxu0
      %v1765 = vadd.f32 %v1422, %v1764
      %1766 = vmatmul.bf16.gmra.mxu0 %v1120
      %v1767 = vpop.f32.mrf.mxu0
      %v1768 = vadd.f32 %v1422, %v1767
      %v1769 = vpop.f32.mrf.mxu0
      %v1770 = vadd.f32 %v1422, %v1769
      %1771 = vmatmul.bf16.gmra.mxu0 %v1123
      %v1772 = vpop.f32.mrf.mxu0
      %v1773 = vadd.f32 %v1422, %v1772
      %v1774 = vpop.f32.mrf.mxu0
      %v1775 = vadd.f32 %v1422, %v1774
      %1776 = vmatmul.bf16.gmra.mxu0 %v1126
      %v1777 = vpop.f32.mrf.mxu0
      %v1778 = vadd.f32 %v1422, %v1777
      %v1779 = vpop.f32.mrf.mxu0
      %v1780 = vadd.f32 %v1422, %v1779
      %1781 = vmatmul.bf16.gmra.mxu0 %v1129
      %v1782 = vpop.f32.mrf.mxu0
      %v1783 = vadd.f32 %v1422, %v1782
      %v1784 = vpop.f32.mrf.mxu0
      %v1785 = vadd.f32 %v1422, %v1784
      %1786 = vmatmul.bf16.gmra.mxu0 %v1132
      %v1787 = vpop.f32.mrf.mxu0
      %v1788 = vadd.f32 %v1422, %v1787
      %v1789 = vpop.f32.mrf.mxu0
      %v1790 = vadd.f32 %v1422, %v1789
      %1791 = vdwg.mxu0
      %1792 = vmatpush.bf16.msra.mxu0 %v1582
      %1793 = vmatpush.bf16.msra.mxu0 %v1581
      %1794 = vmatpush.bf16.msra.mxu0 %v1580
      %1795 = vmatpush.bf16.msra.mxu0 %v1579
      %1796 = vmatpush.bf16.msra.mxu0 %v1578
      %1797 = vmatpush.bf16.msra.mxu0 %v1577
      %1798 = vmatpush.bf16.msra.mxu0 %v1576
      %1799 = vmatpush.bf16.msra.mxu0 %v1575
      %1800 = vmatmul.bf16.gmra.mxu0 %v1136
      %v1801 = vpop.f32.mrf.mxu0
      %v1802 = vadd.f32 %v1703, %v1801
      %v1803 = vpop.f32.mrf.mxu0
      %v1804 = vadd.f32 %v1705, %v1803
      %1805 = vmatmul.bf16.gmra.mxu0 %v1140
      %v1806 = vpop.f32.mrf.mxu0
      %v1807 = vadd.f32 %v1708, %v1806
      %v1808 = vpop.f32.mrf.mxu0
      %v1809 = vadd.f32 %v1710, %v1808
      %1810 = vmatmul.bf16.gmra.mxu0 %v1144
      %v1811 = vpop.f32.mrf.mxu0
      %v1812 = vadd.f32 %v1713, %v1811
      %v1813 = vpop.f32.mrf.mxu0
      %v1814 = vadd.f32 %v1715, %v1813
      %1815 = vmatmul.bf16.gmra.mxu0 %v1148
      %v1816 = vpop.f32.mrf.mxu0
      %v1817 = vadd.f32 %v1718, %v1816
      %v1818 = vpop.f32.mrf.mxu0
      %v1819 = vadd.f32 %v1720, %v1818
      %1820 = vmatmul.bf16.gmra.mxu0 %v1152
      %v1821 = vpop.f32.mrf.mxu0
      %v1822 = vadd.f32 %v1723, %v1821
      %v1823 = vpop.f32.mrf.mxu0
      %v1824 = vadd.f32 %v1725, %v1823
      %1825 = vmatmul.bf16.gmra.mxu0 %v1156
      %v1826 = vpop.f32.mrf.mxu0
      %v1827 = vadd.f32 %v1728, %v1826
      %v1828 = vpop.f32.mrf.mxu0
      %v1829 = vadd.f32 %v1730, %v1828
      %1830 = vmatmul.bf16.gmra.mxu0 %v1160
      %v1831 = vpop.f32.mrf.mxu0
      %v1832 = vadd.f32 %v1733, %v1831
      %v1833 = vpop.f32.mrf.mxu0
      %v1834 = vadd.f32 %v1735, %v1833
      %1835 = vmatmul.bf16.gmra.mxu0 %v1164
      %v1836 = vpop.f32.mrf.mxu0
      %v1837 = vadd.f32 %v1738, %v1836
      %v1838 = vpop.f32.mrf.mxu0
      %v1839 = vadd.f32 %v1740, %v1838
      %1840 = vmatmul.bf16.gmra.mxu0 %v1168
      %v1841 = vpop.f32.mrf.mxu0
      %v1842 = vadd.f32 %v1743, %v1841
      %v1843 = vpop.f32.mrf.mxu0
      %v1844 = vadd.f32 %v1745, %v1843
      %1845 = vmatmul.bf16.gmra.mxu0 %v1172
      %v1846 = vpop.f32.mrf.mxu0
      %v1847 = vadd.f32 %v1748, %v1846
      %v1848 = vpop.f32.mrf.mxu0
      %v1849 = vadd.f32 %v1750, %v1848
      %1850 = vmatmul.bf16.gmra.mxu0 %v1176
      %v1851 = vpop.f32.mrf.mxu0
      %v1852 = vadd.f32 %v1753, %v1851
      %v1853 = vpop.f32.mrf.mxu0
      %v1854 = vadd.f32 %v1755, %v1853
      %1855 = vmatmul.bf16.gmra.mxu0 %v1180
      %v1856 = vpop.f32.mrf.mxu0
      %v1857 = vadd.f32 %v1758, %v1856
      %v1858 = vpop.f32.mrf.mxu0
      %v1859 = vadd.f32 %v1760, %v1858
      %1860 = vmatmul.bf16.gmra.mxu0 %v1184
      %v1861 = vpop.f32.mrf.mxu0
      %v1862 = vadd.f32 %v1763, %v1861
      %v1863 = vpop.f32.mrf.mxu0
      %v1864 = vadd.f32 %v1765, %v1863
      %1865 = vmatmul.bf16.gmra.mxu0 %v1188
      %v1866 = vpop.f32.mrf.mxu0
      %v1867 = vadd.f32 %v1768, %v1866
      %v1868 = vpop.f32.mrf.mxu0
      %v1869 = vadd.f32 %v1770, %v1868
      %1870 = vmatmul.bf16.gmra.mxu0 %v1192
      %v1871 = vpop.f32.mrf.mxu0
      %v1872 = vadd.f32 %v1773, %v1871
      %v1873 = vpop.f32.mrf.mxu0
      %v1874 = vadd.f32 %v1775, %v1873
      %1875 = vmatmul.bf16.gmra.mxu0 %v1196
      %v1876 = vpop.f32.mrf.mxu0
      %v1877 = vadd.f32 %v1778, %v1876
      %v1878 = vpop.f32.mrf.mxu0
      %v1879 = vadd.f32 %v1780, %v1878
      %1880 = vmatmul.bf16.gmra.mxu0 %v1200
      %v1881 = vpop.f32.mrf.mxu0
      %v1882 = vadd.f32 %v1783, %v1881
      %v1883 = vpop.f32.mrf.mxu0
      %v1884 = vadd.f32 %v1785, %v1883
      %1885 = vmatmul.bf16.gmra.mxu0 %v1204
      %v1886 = vpop.f32.mrf.mxu0
      %v1887 = vadd.f32 %v1788, %v1886
      %v1888 = vpop.f32.mrf.mxu0
      %v1889 = vadd.f32 %v1790, %v1888
      %1890 = vdwg.mxu0
      %1891 = vmatpush.bf16.msra.mxu0 %v1590
      %1892 = vmatpush.bf16.msra.mxu0 %v1589
      %1893 = vmatpush.bf16.msra.mxu0 %v1588
      %1894 = vmatpush.bf16.msra.mxu0 %v1587
      %1895 = vmatpush.bf16.msra.mxu0 %v1586
      %1896 = vmatpush.bf16.msra.mxu0 %v1585
      %1897 = vmatpush.bf16.msra.mxu0 %v1584
      %1898 = vmatpush.bf16.msra.mxu0 %v1583
      %1899 = vmatmul.bf16.gmra.mxu0 %v1208
      %v1900 = vpop.f32.mrf.mxu0
      %v1901 = vadd.f32 %v1802, %v1900
      %v1902 = vpop.f32.mrf.mxu0
      %v1903 = vadd.f32 %v1804, %v1902
      %1904 = vmatmul.bf16.gmra.mxu0 %v1212
      %v1905 = vpop.f32.mrf.mxu0
      %v1906 = vadd.f32 %v1807, %v1905
      %v1907 = vpop.f32.mrf.mxu0
      %v1908 = vadd.f32 %v1809, %v1907
      %1909 = vmatmul.bf16.gmra.mxu0 %v1216
      %v1910 = vpop.f32.mrf.mxu0
      %v1911 = vadd.f32 %v1812, %v1910
      %v1912 = vpop.f32.mrf.mxu0
      %v1913 = vadd.f32 %v1814, %v1912
      %1914 = vmatmul.bf16.gmra.mxu0 %v1220
      %v1915 = vpop.f32.mrf.mxu0
      %v1916 = vadd.f32 %v1817, %v1915
      %v1917 = vpop.f32.mrf.mxu0
      %v1918 = vadd.f32 %v1819, %v1917
      %1919 = vmatmul.bf16.gmra.mxu0 %v1224
      %v1920 = vpop.f32.mrf.mxu0
      %v1921 = vadd.f32 %v1822, %v1920
      %v1922 = vpop.f32.mrf.mxu0
      %v1923 = vadd.f32 %v1824, %v1922
      %1924 = vmatmul.bf16.gmra.mxu0 %v1228
      %v1925 = vpop.f32.mrf.mxu0
      %v1926 = vadd.f32 %v1827, %v1925
      %v1927 = vpop.f32.mrf.mxu0
      %v1928 = vadd.f32 %v1829, %v1927
      %1929 = vmatmul.bf16.gmra.mxu0 %v1232
      %v1930 = vpop.f32.mrf.mxu0
      %v1931 = vadd.f32 %v1832, %v1930
      %v1932 = vpop.f32.mrf.mxu0
      %v1933 = vadd.f32 %v1834, %v1932
      %1934 = vmatmul.bf16.gmra.mxu0 %v1236
      %v1935 = vpop.f32.mrf.mxu0
      %v1936 = vadd.f32 %v1837, %v1935
      %v1937 = vpop.f32.mrf.mxu0
      %v1938 = vadd.f32 %v1839, %v1937
      %1939 = vmatmul.bf16.gmra.mxu0 %v1240
      %v1940 = vpop.f32.mrf.mxu0
      %v1941 = vadd.f32 %v1842, %v1940
      %v1942 = vpop.f32.mrf.mxu0
      %v1943 = vadd.f32 %v1844, %v1942
      %1944 = vmatmul.bf16.gmra.mxu0 %v1244
      %v1945 = vpop.f32.mrf.mxu0
      %v1946 = vadd.f32 %v1847, %v1945
      %v1947 = vpop.f32.mrf.mxu0
      %v1948 = vadd.f32 %v1849, %v1947
      %1949 = vmatmul.bf16.gmra.mxu0 %v1248
      %v1950 = vpop.f32.mrf.mxu0
      %v1951 = vadd.f32 %v1852, %v1950
      %v1952 = vpop.f32.mrf.mxu0
      %v1953 = vadd.f32 %v1854, %v1952
      %1954 = vmatmul.bf16.gmra.mxu0 %v1252
      %v1955 = vpop.f32.mrf.mxu0
      %v1956 = vadd.f32 %v1857, %v1955
      %v1957 = vpop.f32.mrf.mxu0
      %v1958 = vadd.f32 %v1859, %v1957
      %1959 = vmatmul.bf16.gmra.mxu0 %v1256
      %v1960 = vpop.f32.mrf.mxu0
      %v1961 = vadd.f32 %v1862, %v1960
      %v1962 = vpop.f32.mrf.mxu0
      %v1963 = vadd.f32 %v1864, %v1962
      %1964 = vmatmul.bf16.gmra.mxu0 %v1260
      %v1965 = vpop.f32.mrf.mxu0
      %v1966 = vadd.f32 %v1867, %v1965
      %v1967 = vpop.f32.mrf.mxu0
      %v1968 = vadd.f32 %v1869, %v1967
      %1969 = vmatmul.bf16.gmra.mxu0 %v1264
      %v1970 = vpop.f32.mrf.mxu0
      %v1971 = vadd.f32 %v1872, %v1970
      %v1972 = vpop.f32.mrf.mxu0
      %v1973 = vadd.f32 %v1874, %v1972
      %1974 = vmatmul.bf16.gmra.mxu0 %v1268
      %v1975 = vpop.f32.mrf.mxu0
      %v1976 = vadd.f32 %v1877, %v1975
      %v1977 = vpop.f32.mrf.mxu0
      %v1978 = vadd.f32 %v1879, %v1977
      %1979 = vmatmul.bf16.gmra.mxu0 %v1272
      %v1980 = vpop.f32.mrf.mxu0
      %v1981 = vadd.f32 %v1882, %v1980
      %v1982 = vpop.f32.mrf.mxu0
      %v1983 = vadd.f32 %v1884, %v1982
      %1984 = vmatmul.bf16.gmra.mxu0 %v1276
      %v1985 = vpop.f32.mrf.mxu0
      %v1986 = vadd.f32 %v1887, %v1985
      %v1987 = vpop.f32.mrf.mxu0
      %v1988 = vadd.f32 %v1889, %v1987
      %1989 = vdwg.mxu0
      %1990 = vmatpush.bf16.msra.mxu0 %v1598
      %1991 = vmatpush.bf16.msra.mxu0 %v1597
      %1992 = vmatpush.bf16.msra.mxu0 %v1596
      %1993 = vmatpush.bf16.msra.mxu0 %v1595
      %1994 = vmatpush.bf16.msra.mxu0 %v1594
      %1995 = vmatpush.bf16.msra.mxu0 %v1593
      %1996 = vmatpush.bf16.msra.mxu0 %v1592
      %1997 = vmatpush.bf16.msra.mxu0 %v1591
      %1998 = vmatmul.bf16.gmra.mxu0 %v1280
      %v1999 = vpop.f32.mrf.mxu0
      %v2000 = vadd.f32 %v1901, %v1999
      %v2001 = vpop.f32.mrf.mxu0
      %v2002 = vadd.f32 %v1903, %v2001
      %2003 = vmatmul.bf16.gmra.mxu0 %v1284
      %v2004 = vpop.f32.mrf.mxu0
      %v2005 = vadd.f32 %v1906, %v2004
      %v2006 = vpop.f32.mrf.mxu0
      %v2007 = vadd.f32 %v1908, %v2006
      %2008 = vmatmul.bf16.gmra.mxu0 %v1288
      %v2009 = vpop.f32.mrf.mxu0
      %v2010 = vadd.f32 %v1911, %v2009
      %v2011 = vpop.f32.mrf.mxu0
      %v2012 = vadd.f32 %v1913, %v2011
      %2013 = vmatmul.bf16.gmra.mxu0 %v1292
      %v2014 = vpop.f32.mrf.mxu0
      %v2015 = vadd.f32 %v1916, %v2014
      %v2016 = vpop.f32.mrf.mxu0
      %v2017 = vadd.f32 %v1918, %v2016
      %2018 = vmatmul.bf16.gmra.mxu0 %v1296
      %v2019 = vpop.f32.mrf.mxu0
      %v2020 = vadd.f32 %v1921, %v2019
      %v2021 = vpop.f32.mrf.mxu0
      %v2022 = vadd.f32 %v1923, %v2021
      %2023 = vmatmul.bf16.gmra.mxu0 %v1300
      %v2024 = vpop.f32.mrf.mxu0
      %v2025 = vadd.f32 %v1926, %v2024
      %v2026 = vpop.f32.mrf.mxu0
      %v2027 = vadd.f32 %v1928, %v2026
      %2028 = vmatmul.bf16.gmra.mxu0 %v1304
      %v2029 = vpop.f32.mrf.mxu0
      %v2030 = vadd.f32 %v1931, %v2029
      %v2031 = vpop.f32.mrf.mxu0
      %v2032 = vadd.f32 %v1933, %v2031
      %2033 = vmatmul.bf16.gmra.mxu0 %v1308
      %v2034 = vpop.f32.mrf.mxu0
      %v2035 = vadd.f32 %v1936, %v2034
      %v2036 = vpop.f32.mrf.mxu0
      %v2037 = vadd.f32 %v1938, %v2036
      %2038 = vmatmul.bf16.gmra.mxu0 %v1312
      %v2039 = vpop.f32.mrf.mxu0
      %v2040 = vadd.f32 %v1941, %v2039
      %v2041 = vpop.f32.mrf.mxu0
      %v2042 = vadd.f32 %v1943, %v2041
      %2043 = vmatmul.bf16.gmra.mxu0 %v1316
      %v2044 = vpop.f32.mrf.mxu0
      %v2045 = vadd.f32 %v1946, %v2044
      %v2046 = vpop.f32.mrf.mxu0
      %v2047 = vadd.f32 %v1948, %v2046
      %2048 = vmatmul.bf16.gmra.mxu0 %v1320
      %v2049 = vpop.f32.mrf.mxu0
      %v2050 = vadd.f32 %v1951, %v2049
      %v2051 = vpop.f32.mrf.mxu0
      %v2052 = vadd.f32 %v1953, %v2051
      %2053 = vmatmul.bf16.gmra.mxu0 %v1324
      %v2054 = vpop.f32.mrf.mxu0
      %v2055 = vadd.f32 %v1956, %v2054
      %v2056 = vpop.f32.mrf.mxu0
      %v2057 = vadd.f32 %v1958, %v2056
      %2058 = vmatmul.bf16.gmra.mxu0 %v1328
      %v2059 = vpop.f32.mrf.mxu0
      %v2060 = vadd.f32 %v1961, %v2059
      %v2061 = vpop.f32.mrf.mxu0
      %v2062 = vadd.f32 %v1963, %v2061
      %2063 = vmatmul.bf16.gmra.mxu0 %v1332
      %v2064 = vpop.f32.mrf.mxu0
      %v2065 = vadd.f32 %v1966, %v2064
      %v2066 = vpop.f32.mrf.mxu0
      %v2067 = vadd.f32 %v1968, %v2066
      %2068 = vmatmul.bf16.gmra.mxu0 %v1336
      %v2069 = vpop.f32.mrf.mxu0
      %v2070 = vadd.f32 %v1971, %v2069
      %v2071 = vpop.f32.mrf.mxu0
      %v2072 = vadd.f32 %v1973, %v2071
      %2073 = vmatmul.bf16.gmra.mxu0 %v1340
      %v2074 = vpop.f32.mrf.mxu0
      %v2075 = vadd.f32 %v1976, %v2074
      %v2076 = vpop.f32.mrf.mxu0
      %v2077 = vadd.f32 %v1978, %v2076
      %2078 = vmatmul.bf16.gmra.mxu0 %v1344
      %v2079 = vpop.f32.mrf.mxu0
      %v2080 = vadd.f32 %v1981, %v2079
      %v2081 = vpop.f32.mrf.mxu0
      %v2082 = vadd.f32 %v1983, %v2081
      %2083 = vmatmul.bf16.gmra.mxu0 %v1348
      %v2084 = vpop.f32.mrf.mxu0
      %v2085 = vadd.f32 %v1986, %v2084
      %v2086 = vpop.f32.mrf.mxu0
      %v2087 = vadd.f32 %v1988, %v2086
      %2088 = vdwg.mxu0
      %2089 = vmatpush.bf16.msra.mxu0 0
      %2090 = vmatpush.bf16.msra.mxu0 0
      %2091 = vmatpush.bf16.msra.mxu0 0
      %2092 = vmatpush.bf16.msra.mxu0 0
      %2093 = vmatpush.bf16.msra.mxu0 %v1602
      %2094 = vmatpush.bf16.msra.mxu0 %v1601
      %2095 = vmatpush.bf16.msra.mxu0 %v1600
      %2096 = vmatpush.bf16.msra.mxu0 %v1599
      %2097 = vmatmul.bf16.gmra.mxu0 %v1640
      %v2098 = vpop.f32.mrf.mxu0
      %v2099 = vadd.f32 %v2000, %v2098
      %v2100 = vpop.f32.mrf.mxu0
      %v2101 = vadd.f32 %v2002, %v2100
      %2102 = vmatmul.bf16.gmra.mxu0 %v1643
      %v2103 = vpop.f32.mrf.mxu0
      %v2104 = vadd.f32 %v2005, %v2103
      %v2105 = vpop.f32.mrf.mxu0
      %v2106 = vadd.f32 %v2007, %v2105
      %2107 = vmatmul.bf16.gmra.mxu0 %v1646
      %v2108 = vpop.f32.mrf.mxu0
      %v2109 = vadd.f32 %v2010, %v2108
      %v2110 = vpop.f32.mrf.mxu0
      %v2111 = vadd.f32 %v2012, %v2110
      %2112 = vmatmul.bf16.gmra.mxu0 %v1649
      %v2113 = vpop.f32.mrf.mxu0
      %v2114 = vadd.f32 %v2015, %v2113
      %v2115 = vpop.f32.mrf.mxu0
      %v2116 = vadd.f32 %v2017, %v2115
      %2117 = vmatmul.bf16.gmra.mxu0 %v1652
      %v2118 = vpop.f32.mrf.mxu0
      %v2119 = vadd.f32 %v2020, %v2118
      %v2120 = vpop.f32.mrf.mxu0
      %v2121 = vadd.f32 %v2022, %v2120
      %2122 = vmatmul.bf16.gmra.mxu0 %v1655
      %v2123 = vpop.f32.mrf.mxu0
      %v2124 = vadd.f32 %v2025, %v2123
      %v2125 = vpop.f32.mrf.mxu0
      %v2126 = vadd.f32 %v2027, %v2125
      %2127 = vmatmul.bf16.gmra.mxu0 %v1658
      %v2128 = vpop.f32.mrf.mxu0
      %v2129 = vadd.f32 %v2030, %v2128
      %v2130 = vpop.f32.mrf.mxu0
      %v2131 = vadd.f32 %v2032, %v2130
      %2132 = vmatmul.bf16.gmra.mxu0 %v1661
      %v2133 = vpop.f32.mrf.mxu0
      %v2134 = vadd.f32 %v2035, %v2133
      %v2135 = vpop.f32.mrf.mxu0
      %v2136 = vadd.f32 %v2037, %v2135
      %2137 = vmatmul.bf16.gmra.mxu0 %v1664
      %v2138 = vpop.f32.mrf.mxu0
      %v2139 = vadd.f32 %v2040, %v2138
      %v2140 = vpop.f32.mrf.mxu0
      %v2141 = vadd.f32 %v2042, %v2140
      %2142 = vmatmul.bf16.gmra.mxu0 %v1667
      %v2143 = vpop.f32.mrf.mxu0
      %v2144 = vadd.f32 %v2045, %v2143
      %v2145 = vpop.f32.mrf.mxu0
      %v2146 = vadd.f32 %v2047, %v2145
      %2147 = vmatmul.bf16.gmra.mxu0 %v1670
      %v2148 = vpop.f32.mrf.mxu0
      %v2149 = vadd.f32 %v2050, %v2148
      %v2150 = vpop.f32.mrf.mxu0
      %v2151 = vadd.f32 %v2052, %v2150
      %2152 = vmatmul.bf16.gmra.mxu0 %v1673
      %v2153 = vpop.f32.mrf.mxu0
      %v2154 = vadd.f32 %v2055, %v2153
      %v2155 = vpop.f32.mrf.mxu0
      %v2156 = vadd.f32 %v2057, %v2155
      %2157 = vmatmul.bf16.gmra.mxu0 %v1676
      %v2158 = vpop.f32.mrf.mxu0
      %v2159 = vadd.f32 %v2060, %v2158
      %v2160 = vpop.f32.mrf.mxu0
      %v2161 = vadd.f32 %v2062, %v2160
      %2162 = vmatmul.bf16.gmra.mxu0 %v1679
      %v2163 = vpop.f32.mrf.mxu0
      %v2164 = vadd.f32 %v2065, %v2163
      %v2165 = vpop.f32.mrf.mxu0
      %v2166 = vadd.f32 %v2067, %v2165
      %2167 = vmatmul.bf16.gmra.mxu0 %v1682
      %v2168 = vpop.f32.mrf.mxu0
      %v2169 = vadd.f32 %v2070, %v2168
      %v2170 = vpop.f32.mrf.mxu0
      %v2171 = vadd.f32 %v2072, %v2170
      %2172 = vmatmul.bf16.gmra.mxu0 %v1685
      %v2173 = vpop.f32.mrf.mxu0
      %v2174 = vadd.f32 %v2075, %v2173
      %v2175 = vpop.f32.mrf.mxu0
      %v2176 = vadd.f32 %v2077, %v2175
      %2177 = vmatmul.bf16.gmra.mxu0 %v1688
      %v2178 = vpop.f32.mrf.mxu0
      %v2179 = vadd.f32 %v2080, %v2178
      %v2180 = vpop.f32.mrf.mxu0
      %v2181 = vadd.f32 %v2082, %v2180
      %2182 = vmatmul.bf16.gmra.mxu0 %v1691
      %v2183 = vpop.f32.mrf.mxu0
      %v2184 = vadd.f32 %v2085, %v2183
      %v2185 = vpop.f32.mrf.mxu0
      %v2186 = vadd.f32 %v2087, %v2185
      %2187 = vdwg.mxu0
      %2189 = vset.pattern.permute.xlu0 0
      %2190 = vperm.xlu0 %2189, %v253
      %v2191 = vpop.permute.xlu0 %2190
      %2194 = vset.pattern.permute.xlu0 0
      %2195 = vperm.xlu0 %2194, %v254
      %v2196 = vpop.permute.xlu0 %2195
      %2199 = vset.pattern.permute.xlu0 0
      %2200 = vperm.xlu0 %2199, %v255
      %v2201 = vpop.permute.xlu0 %2200
      %2204 = vset.pattern.permute.xlu0 0
      %2205 = vperm.xlu0 %2204, %v256
      %v2206 = vpop.permute.xlu0 %2205
      %2209 = vset.pattern.permute.xlu0 0
      %2210 = vperm.xlu0 %2209, %v257
      %v2211 = vpop.permute.xlu0 %2210
      %2214 = vset.pattern.permute.xlu0 0
      %2215 = vperm.xlu0 %2214, %v258
      %v2216 = vpop.permute.xlu0 %2215
      %2219 = vset.pattern.permute.xlu0 0
      %2220 = vperm.xlu0 %2219, %v259
      %v2221 = vpop.permute.xlu0 %2220
      %2224 = vset.pattern.permute.xlu0 0
      %2225 = vperm.xlu0 %2224, %v260
      %v2226 = vpop.permute.xlu0 %2225
      %2229 = vset.pattern.permute.xlu0 0
      %2230 = vperm.xlu0 %2229, %v261
      %v2231 = vpop.permute.xlu0 %2230
      %2234 = vset.pattern.permute.xlu0 0
      %2235 = vperm.xlu0 %2234, %v262
      %v2236 = vpop.permute.xlu0 %2235
      %2239 = vset.pattern.permute.xlu0 0
      %2240 = vperm.xlu0 %2239, %v263
      %v2241 = vpop.permute.xlu0 %2240
      %2244 = vset.pattern.permute.xlu0 0
      %2245 = vperm.xlu0 %2244, %v264
      %v2246 = vpop.permute.xlu0 %2245
      %2249 = vset.pattern.permute.xlu0 0
      %2250 = vperm.xlu0 %2249, %v265
      %v2251 = vpop.permute.xlu0 %2250
      %2254 = vset.pattern.permute.xlu0 0
      %2255 = vperm.xlu0 %2254, %v266
      %v2256 = vpop.permute.xlu0 %2255
      %2259 = vset.pattern.permute.xlu0 0
      %2260 = vperm.xlu0 %2259, %v267
      %v2261 = vpop.permute.xlu0 %2260
      %2264 = vset.pattern.permute.xlu0 0
      %2265 = vperm.xlu0 %2264, %v268
      %v2266 = vpop.permute.xlu0 %2265
      %2269 = vset.pattern.permute.xlu0 0
      %2270 = vperm.xlu0 %2269, %v269
      %v2271 = vpop.permute.xlu0 %2270
      %2274 = vset.pattern.permute.xlu0 0
      %2275 = vperm.xlu0 %2274, %v270
      %v2276 = vpop.permute.xlu0 %2275
      %2279 = vset.pattern.permute.xlu0 0
      %2280 = vperm.xlu0 %2279, %v271
      %v2281 = vpop.permute.xlu0 %2280
      %2284 = vset.pattern.permute.xlu0 0
      %2285 = vperm.xlu0 %2284, %v272
      %v2286 = vpop.permute.xlu0 %2285
      %2289 = vset.pattern.permute.xlu0 0
      %2290 = vperm.xlu0 %2289, %v273
      %v2291 = vpop.permute.xlu0 %2290
      %2294 = vset.pattern.permute.xlu0 0
      %2295 = vperm.xlu0 %2294, %v274
      %v2296 = vpop.permute.xlu0 %2295
      %2299 = vset.pattern.permute.xlu0 0
      %2300 = vperm.xlu0 %2299, %v275
      %v2301 = vpop.permute.xlu0 %2300
      %2304 = vset.pattern.permute.xlu0 0
      %2305 = vperm.xlu0 %2304, %v276
      %v2306 = vpop.permute.xlu0 %2305
      %2309 = vset.pattern.permute.xlu0 0
      %2310 = vperm.xlu0 %2309, %v277
      %v2311 = vpop.permute.xlu0 %2310
      %2314 = vset.pattern.permute.xlu0 0
      %2315 = vperm.xlu0 %2314, %v278
      %v2316 = vpop.permute.xlu0 %2315
      %2319 = vset.pattern.permute.xlu0 0
      %2320 = vperm.xlu0 %2319, %v279
      %v2321 = vpop.permute.xlu0 %2320
      %2324 = vset.pattern.permute.xlu0 0
      %2325 = vperm.xlu0 %2324, %v280
      %v2326 = vpop.permute.xlu0 %2325
      %2329 = vset.pattern.permute.xlu0 0
      %2330 = vperm.xlu0 %2329, %v281
      %v2331 = vpop.permute.xlu0 %2330
      %2334 = vset.pattern.permute.xlu0 0
      %2335 = vperm.xlu0 %2334, %v282
      %v2336 = vpop.permute.xlu0 %2335
      %2339 = vset.pattern.permute.xlu0 0
      %2340 = vperm.xlu0 %2339, %v283
      %v2341 = vpop.permute.xlu0 %2340
      %2344 = vset.pattern.permute.xlu0 0
      %2345 = vperm.xlu0 %2344, %v284
      %v2346 = vpop.permute.xlu0 %2345
      %2349 = vset.pattern.permute.xlu0 0
      %2350 = vperm.xlu0 %2349, %v285
      %v2351 = vpop.permute.xlu0 %2350
      %2354 = vset.pattern.permute.xlu0 0
      %2355 = vperm.xlu0 %2354, %v286
      %v2356 = vpop.permute.xlu0 %2355
      %2359 = vset.pattern.permute.xlu0 0
      %2360 = vperm.xlu0 %2359, %v287
      %v2361 = vpop.permute.xlu0 %2360
      %2364 = vset.pattern.permute.xlu0 0
      %2365 = vperm.xlu0 %2364, %v288
      %v2366 = vpop.permute.xlu0 %2365
      %v2368 = vmul.f32 %v2099, %v2191
      %v2369 = vmul.f32 %v2101, %v2196
      %v2370 = vmul.f32 %v2104, %v2201
      %v2371 = vmul.f32 %v2106, %v2206
      %v2372 = vmul.f32 %v2109, %v2211
      %v2373 = vmul.f32 %v2111, %v2216
      %v2374 = vmul.f32 %v2114, %v2221
      %v2375 = vmul.f32 %v2116, %v2226
      %v2376 = vmul.f32 %v2119, %v2231
      %v2377 = vmul.f32 %v2121, %v2236
      %v2378 = vmul.f32 %v2124, %v2241
      %v2379 = vmul.f32 %v2126, %v2246
      %v2380 = vmul.f32 %v2129, %v2251
      %v2381 = vmul.f32 %v2131, %v2256
      %v2382 = vmul.f32 %v2134, %v2261
      %v2383 = vmul.f32 %v2136, %v2266
      %v2384 = vmul.f32 %v2139, %v2271
      %v2385 = vmul.f32 %v2141, %v2276
      %v2386 = vmul.f32 %v2144, %v2281
      %v2387 = vmul.f32 %v2146, %v2286
      %v2388 = vmul.f32 %v2149, %v2291
      %v2389 = vmul.f32 %v2151, %v2296
      %v2390 = vmul.f32 %v2154, %v2301
      %v2391 = vmul.f32 %v2156, %v2306
      %v2392 = vmul.f32 %v2159, %v2311
      %v2393 = vmul.f32 %v2161, %v2316
      %v2394 = vmul.f32 %v2164, %v2321
      %v2395 = vmul.f32 %v2166, %v2326
      %v2396 = vmul.f32 %v2169, %v2331
      %v2397 = vmul.f32 %v2171, %v2336
      %v2398 = vmul.f32 %v2174, %v2341
      %v2399 = vmul.f32 %v2176, %v2346
      %v2400 = vmul.f32 %v2179, %v2351
      %v2401 = vmul.f32 %v2181, %v2356
      %v2402 = vmul.f32 %v2184, %v2361
      %v2403 = vmul.f32 %v2186, %v2366
      %v2404 = vsel %vm1079, %v2368, 0.0
      %v2405 = vsel %vm1079, %v2369, 0.0
      %v2406 = vadd.f32 %v2404, %v2405
      %v2407 = vsel %vm1079, %v2370, 0.0
      %v2408 = vadd.f32 %v2406, %v2407
      %v2409 = vsel %vm1079, %v2371, 0.0
      %v2410 = vadd.f32 %v2408, %v2409
      %v2411 = vsel %vm1079, %v2372, 0.0
      %v2412 = vadd.f32 %v2410, %v2411
      %v2413 = vsel %vm1079, %v2373, 0.0
      %v2414 = vadd.f32 %v2412, %v2413
      %v2415 = vsel %vm1079, %v2374, 0.0
      %v2416 = vadd.f32 %v2414, %v2415
      %v2417 = vsel %vm1079, %v2375, 0.0
      %v2418 = vadd.f32 %v2416, %v2417
      %v2419 = vsel %vm1079, %v2376, 0.0
      %v2420 = vadd.f32 %v2418, %v2419
      %v2421 = vsel %vm1079, %v2377, 0.0
      %v2422 = vadd.f32 %v2420, %v2421
      %v2423 = vsel %vm1079, %v2378, 0.0
      %v2424 = vadd.f32 %v2422, %v2423
      %v2425 = vsel %vm1079, %v2379, 0.0
      %v2426 = vadd.f32 %v2424, %v2425
      %v2427 = vsel %vm1079, %v2380, 0.0
      %v2428 = vadd.f32 %v2426, %v2427
      %v2429 = vsel %vm1079, %v2381, 0.0
      %v2430 = vadd.f32 %v2428, %v2429
      %v2431 = vsel %vm1079, %v2382, 0.0
      %v2432 = vadd.f32 %v2430, %v2431
      %v2433 = vsel %vm1079, %v2383, 0.0
      %v2434 = vadd.f32 %v2432, %v2433
      %v2435 = vsel %vm1079, %v2384, 0.0
      %v2436 = vadd.f32 %v2434, %v2435
      %v2437 = vsel %vm1079, %v2385, 0.0
      %v2438 = vadd.f32 %v2436, %v2437
      %v2439 = vsel %vm1079, %v2386, 0.0
      %v2440 = vadd.f32 %v2438, %v2439
      %v2441 = vsel %vm1079, %v2387, 0.0
      %v2442 = vadd.f32 %v2440, %v2441
      %v2443 = vsel %vm1079, %v2388, 0.0
      %v2444 = vadd.f32 %v2442, %v2443
      %v2445 = vsel %vm1079, %v2389, 0.0
      %v2446 = vadd.f32 %v2444, %v2445
      %v2447 = vsel %vm1079, %v2390, 0.0
      %v2448 = vadd.f32 %v2446, %v2447
      %v2449 = vsel %vm1079, %v2391, 0.0
      %v2450 = vadd.f32 %v2448, %v2449
      %v2451 = vsel %vm1079, %v2392, 0.0
      %v2452 = vadd.f32 %v2450, %v2451
      %v2453 = vsel %vm1079, %v2393, 0.0
      %v2454 = vadd.f32 %v2452, %v2453
      %v2455 = vsel %vm1079, %v2394, 0.0
      %v2456 = vadd.f32 %v2454, %v2455
      %v2457 = vsel %vm1079, %v2395, 0.0
      %v2458 = vadd.f32 %v2456, %v2457
      %v2459 = vsel %vm1079, %v2396, 0.0
      %v2460 = vadd.f32 %v2458, %v2459
      %v2461 = vsel %vm1079, %v2397, 0.0
      %v2462 = vadd.f32 %v2460, %v2461
      %v2463 = vsel %vm1079, %v2398, 0.0
      %v2464 = vadd.f32 %v2462, %v2463
      %v2465 = vsel %vm1079, %v2399, 0.0
      %v2466 = vadd.f32 %v2464, %v2465
      %v2467 = vsel %vm1079, %v2400, 0.0
      %v2468 = vadd.f32 %v2466, %v2467
      %v2469 = vsel %vm1079, %v2401, 0.0
      %v2470 = vadd.f32 %v2468, %v2469
      %v2471 = vsel %vm1079, %v2402, 0.0
      %v2472 = vadd.f32 %v2470, %v2471
      %v2473 = vsel %vm1079, %v2403, 0.0
      %v2474 = vadd.f32 %v2472, %v2473
      %v2475 = vrot.slane %v2474, 4
      %v2476 = vadd.f32 %v2474, %v2475
      %v2477 = vrot.slane %v2476, 2
      %v2478 = vadd.f32 %v2476, %v2477
      %v2479 = vrot.slane %v2478, 1
      %v2480 = vadd.f32 %v2478, %v2479
      %v2481 = vmul.f32 %v2368, %v2368
      %v2482 = vmul.f32 %v2369, %v2369
      %v2483 = vmul.f32 %v2370, %v2370
      %v2484 = vmul.f32 %v2371, %v2371
      %v2485 = vmul.f32 %v2372, %v2372
      %v2486 = vmul.f32 %v2373, %v2373
      %v2487 = vmul.f32 %v2374, %v2374
      %v2488 = vmul.f32 %v2375, %v2375
      %v2489 = vmul.f32 %v2376, %v2376
      %v2490 = vmul.f32 %v2377, %v2377
      %v2491 = vmul.f32 %v2378, %v2378
      %v2492 = vmul.f32 %v2379, %v2379
      %v2493 = vmul.f32 %v2380, %v2380
      %v2494 = vmul.f32 %v2381, %v2381
      %v2495 = vmul.f32 %v2382, %v2382
      %v2496 = vmul.f32 %v2383, %v2383
      %v2497 = vmul.f32 %v2384, %v2384
      %v2498 = vmul.f32 %v2385, %v2385
      %v2499 = vmul.f32 %v2386, %v2386
      %v2500 = vmul.f32 %v2387, %v2387
      %v2501 = vmul.f32 %v2388, %v2388
      %v2502 = vmul.f32 %v2389, %v2389
      %v2503 = vmul.f32 %v2390, %v2390
      %v2504 = vmul.f32 %v2391, %v2391
      %v2505 = vmul.f32 %v2392, %v2392
      %v2506 = vmul.f32 %v2393, %v2393
      %v2507 = vmul.f32 %v2394, %v2394
      %v2508 = vmul.f32 %v2395, %v2395
      %v2509 = vmul.f32 %v2396, %v2396
      %v2510 = vmul.f32 %v2397, %v2397
      %v2511 = vmul.f32 %v2398, %v2398
      %v2512 = vmul.f32 %v2399, %v2399
      %v2513 = vmul.f32 %v2400, %v2400
      %v2514 = vmul.f32 %v2401, %v2401
      %v2515 = vmul.f32 %v2402, %v2402
      %v2516 = vmul.f32 %v2403, %v2403
      %v2517 = vsel %vm1079, %v2481, 0.0
      %v2518 = vsel %vm1079, %v2482, 0.0
      %v2519 = vadd.f32 %v2517, %v2518
      %v2520 = vsel %vm1079, %v2483, 0.0
      %v2521 = vadd.f32 %v2519, %v2520
      %v2522 = vsel %vm1079, %v2484, 0.0
      %v2523 = vadd.f32 %v2521, %v2522
      %v2524 = vsel %vm1079, %v2485, 0.0
      %v2525 = vadd.f32 %v2523, %v2524
      %v2526 = vsel %vm1079, %v2486, 0.0
      %v2527 = vadd.f32 %v2525, %v2526
      %v2528 = vsel %vm1079, %v2487, 0.0
      %v2529 = vadd.f32 %v2527, %v2528
      %v2530 = vsel %vm1079, %v2488, 0.0
      %v2531 = vadd.f32 %v2529, %v2530
      %v2532 = vsel %vm1079, %v2489, 0.0
      %v2533 = vadd.f32 %v2531, %v2532
      %v2534 = vsel %vm1079, %v2490, 0.0
      %v2535 = vadd.f32 %v2533, %v2534
      %v2536 = vsel %vm1079, %v2491, 0.0
      %v2537 = vadd.f32 %v2535, %v2536
      %v2538 = vsel %vm1079, %v2492, 0.0
      %v2539 = vadd.f32 %v2537, %v2538
      %v2540 = vsel %vm1079, %v2493, 0.0
      %v2541 = vadd.f32 %v2539, %v2540
      %v2542 = vsel %vm1079, %v2494, 0.0
      %v2543 = vadd.f32 %v2541, %v2542
      %v2544 = vsel %vm1079, %v2495, 0.0
      %v2545 = vadd.f32 %v2543, %v2544
      %v2546 = vsel %vm1079, %v2496, 0.0
      %v2547 = vadd.f32 %v2545, %v2546
      %v2548 = vsel %vm1079, %v2497, 0.0
      %v2549 = vadd.f32 %v2547, %v2548
      %v2550 = vsel %vm1079, %v2498, 0.0
      %v2551 = vadd.f32 %v2549, %v2550
      %v2552 = vsel %vm1079, %v2499, 0.0
      %v2553 = vadd.f32 %v2551, %v2552
      %v2554 = vsel %vm1079, %v2500, 0.0
      %v2555 = vadd.f32 %v2553, %v2554
      %v2556 = vsel %vm1079, %v2501, 0.0
      %v2557 = vadd.f32 %v2555, %v2556
      %v2558 = vsel %vm1079, %v2502, 0.0
      %v2559 = vadd.f32 %v2557, %v2558
      %v2560 = vsel %vm1079, %v2503, 0.0
      %v2561 = vadd.f32 %v2559, %v2560
      %v2562 = vsel %vm1079, %v2504, 0.0
      %v2563 = vadd.f32 %v2561, %v2562
      %v2564 = vsel %vm1079, %v2505, 0.0
      %v2565 = vadd.f32 %v2563, %v2564
      %v2566 = vsel %vm1079, %v2506, 0.0
      %v2567 = vadd.f32 %v2565, %v2566
      %v2568 = vsel %vm1079, %v2507, 0.0
      %v2569 = vadd.f32 %v2567, %v2568
      %v2570 = vsel %vm1079, %v2508, 0.0
      %v2571 = vadd.f32 %v2569, %v2570
      %v2572 = vsel %vm1079, %v2509, 0.0
      %v2573 = vadd.f32 %v2571, %v2572
      %v2574 = vsel %vm1079, %v2510, 0.0
      %v2575 = vadd.f32 %v2573, %v2574
      %v2576 = vsel %vm1079, %v2511, 0.0
      %v2577 = vadd.f32 %v2575, %v2576
      %v2578 = vsel %vm1079, %v2512, 0.0
      %v2579 = vadd.f32 %v2577, %v2578
      %v2580 = vsel %vm1079, %v2513, 0.0
      %v2581 = vadd.f32 %v2579, %v2580
      %v2582 = vsel %vm1079, %v2514, 0.0
      %v2583 = vadd.f32 %v2581, %v2582
      %v2584 = vsel %vm1079, %v2515, 0.0
      %v2585 = vadd.f32 %v2583, %v2584
      %v2586 = vsel %vm1079, %v2516, 0.0
      %v2587 = vadd.f32 %v2585, %v2586
      %v2588 = vrot.slane %v2587, 4
      %v2589 = vadd.f32 %v2587, %v2588
      %v2590 = vrot.slane %v2589, 2
      %v2591 = vadd.f32 %v2589, %v2590
      %v2592 = vrot.slane %v2591, 1
      %v2593 = vadd.f32 %v2591, %v2592
      %vm2594 = vcmask 1040384
      %v2595 = vsel %vm2594, %v2480, %v2593
      %v2597 = vsel %vm1079, %v2595, 0
      %2599 = vmatpush.msra.mxu0 0.0
      %2600 = vmatpush.msra.mxu0 0.0
      %2601 = vmatpush.msra.mxu0 0.0
      %2602 = vmatpush.msra.mxu0 0.0
      %2603 = vmatpush.msra.mxu0 0.0
      %2604 = vmatpush.msra.mxu0 0.0
      %2605 = vmatpush.msra.mxu0 0.0
      %2606 = vmatpush.msra.mxu0 0.0
      %2607 = vmatpush.msra.mxu0 %v296
      %2608 = vmatpush.msra.mxu0 %v295
      %2609 = vmatpush.msra.mxu0 %v294
      %2610 = vmatpush.msra.mxu0 %v293
      %2611 = vmatpush.msra.mxu0 %v292
      %2612 = vmatpush.msra.mxu0 %v291
      %2613 = vmatpush.msra.mxu0 %v290
      %2614 = vmatpush.msra.mxu0 %v289
      %2615 = vmatmul.f32.gmra.mxu0 %v2597
      %v2616 = vpop.f32.mrf.mxu0
      %v2617 = vadd.f32 0.0, %v2616
      %2618 = vdwg.mxu0
      %v2619 = vmul.f32 %v2617, %v2617
      %v2621 = vrot.slane %v2619, 7
      %v2623 = vsub.f32 %v2617, %v2621
      %v2624 = vadd.f32 %v2623, 1e-05
      %v2625 = vrsqrt.pop %v2624
      %v2626 = vmul.f32 %v2625, %v2624
      %v2627 = vmul.f32 %v2626, %v2625
      %v2628 = vmul.f32 0.5, %v2627
      %v2629 = vsub.f32 1.5, %v2628
      %v2630 = vmul.f32 %v2625, %v2629
      %vm2631 = vweird.f32 %v2624
      %vm2632 = vweird.f32 %v2625
      %vm2633 = vmor %vm2631, %vm2632
      %v2634 = vsel %vm2633, %v2625, %v2630
      %v2635 = vperm.slane %v2617, 0
      %v2636 = vsub.f32 %v2099, %v2635
      %v2637 = vsub.f32 %v2101, %v2635
      %v2638 = vsub.f32 %v2104, %v2635
      %v2639 = vsub.f32 %v2106, %v2635
      %v2640 = vsub.f32 %v2109, %v2635
      %v2641 = vsub.f32 %v2111, %v2635
      %v2642 = vsub.f32 %v2114, %v2635
      %v2643 = vsub.f32 %v2116, %v2635
      %v2644 = vsub.f32 %v2119, %v2635
      %v2645 = vsub.f32 %v2121, %v2635
      %v2646 = vsub.f32 %v2124, %v2635
      %v2647 = vsub.f32 %v2126, %v2635
      %v2648 = vsub.f32 %v2129, %v2635
      %v2649 = vsub.f32 %v2131, %v2635
      %v2650 = vsub.f32 %v2134, %v2635
      %v2651 = vsub.f32 %v2136, %v2635
      %v2652 = vsub.f32 %v2139, %v2635
      %v2653 = vsub.f32 %v2141, %v2635
      %v2654 = vsub.f32 %v2144, %v2635
      %v2655 = vsub.f32 %v2146, %v2635
      %v2656 = vsub.f32 %v2149, %v2635
      %v2657 = vsub.f32 %v2151, %v2635
      %v2658 = vsub.f32 %v2154, %v2635
      %v2659 = vsub.f32 %v2156, %v2635
      %v2660 = vsub.f32 %v2159, %v2635
      %v2661 = vsub.f32 %v2161, %v2635
      %v2662 = vsub.f32 %v2164, %v2635
      %v2663 = vsub.f32 %v2166, %v2635
      %v2664 = vsub.f32 %v2169, %v2635
      %v2665 = vsub.f32 %v2171, %v2635
      %v2666 = vsub.f32 %v2174, %v2635
      %v2667 = vsub.f32 %v2176, %v2635
      %v2668 = vsub.f32 %v2179, %v2635
      %v2669 = vsub.f32 %v2181, %v2635
      %v2670 = vsub.f32 %v2184, %v2635
      %v2671 = vsub.f32 %v2186, %v2635
      %v2672 = vperm.slane %v2634, 1
      %v2673 = vmul.f32 %v2636, %v2672
      %v2674 = vmul.f32 %v2637, %v2672
      %v2675 = vmul.f32 %v2638, %v2672
      %v2676 = vmul.f32 %v2639, %v2672
      %v2677 = vmul.f32 %v2640, %v2672
      %v2678 = vmul.f32 %v2641, %v2672
      %v2679 = vmul.f32 %v2642, %v2672
      %v2680 = vmul.f32 %v2643, %v2672
      %v2681 = vmul.f32 %v2644, %v2672
      %v2682 = vmul.f32 %v2645, %v2672
      %v2683 = vmul.f32 %v2646, %v2672
      %v2684 = vmul.f32 %v2647, %v2672
      %v2685 = vmul.f32 %v2648, %v2672
      %v2686 = vmul.f32 %v2649, %v2672
      %v2687 = vmul.f32 %v2650, %v2672
      %v2688 = vmul.f32 %v2651, %v2672
      %v2689 = vmul.f32 %v2652, %v2672
      %v2690 = vmul.f32 %v2653, %v2672
      %v2691 = vmul.f32 %v2654, %v2672
      %v2692 = vmul.f32 %v2655, %v2672
      %v2693 = vmul.f32 %v2656, %v2672
      %v2694 = vmul.f32 %v2657, %v2672
      %v2695 = vmul.f32 %v2658, %v2672
      %v2696 = vmul.f32 %v2659, %v2672
      %v2697 = vmul.f32 %v2660, %v2672
      %v2698 = vmul.f32 %v2661, %v2672
      %v2699 = vmul.f32 %v2662, %v2672
      %v2700 = vmul.f32 %v2663, %v2672
      %v2701 = vmul.f32 %v2664, %v2672
      %v2702 = vmul.f32 %v2665, %v2672
      %v2703 = vmul.f32 %v2666, %v2672
      %v2704 = vmul.f32 %v2667, %v2672
      %v2705 = vmul.f32 %v2668, %v2672
      %v2706 = vmul.f32 %v2669, %v2672
      %v2707 = vmul.f32 %v2670, %v2672
      %v2708 = vmul.f32 %v2671, %v2672
      %v2709 = vperm.slane %v297, 1
      %v2710 = vmul.f32 %v2673, %v2709
      %v2711 = vmul.f32 %v2674, %v2709
      %v2712 = vmul.f32 %v2675, %v2709
      %v2713 = vmul.f32 %v2676, %v2709
      %v2714 = vmul.f32 %v2677, %v2709
      %v2715 = vmul.f32 %v2678, %v2709
      %v2716 = vmul.f32 %v2679, %v2709
      %v2717 = vmul.f32 %v2680, %v2709
      %v2718 = vmul.f32 %v2681, %v2709
      %v2719 = vmul.f32 %v2682, %v2709
      %v2720 = vmul.f32 %v2683, %v2709
      %v2721 = vmul.f32 %v2684, %v2709
      %v2722 = vmul.f32 %v2685, %v2709
      %v2723 = vmul.f32 %v2686, %v2709
      %v2724 = vmul.f32 %v2687, %v2709
      %v2725 = vmul.f32 %v2688, %v2709
      %v2726 = vmul.f32 %v2689, %v2709
      %v2727 = vmul.f32 %v2690, %v2709
      %v2728 = vmul.f32 %v2691, %v2709
      %v2729 = vmul.f32 %v2692, %v2709
      %v2730 = vmul.f32 %v2693, %v2709
      %v2731 = vmul.f32 %v2694, %v2709
      %v2732 = vmul.f32 %v2695, %v2709
      %v2733 = vmul.f32 %v2696, %v2709
      %v2734 = vmul.f32 %v2697, %v2709
      %v2735 = vmul.f32 %v2698, %v2709
      %v2736 = vmul.f32 %v2699, %v2709
      %v2737 = vmul.f32 %v2700, %v2709
      %v2738 = vmul.f32 %v2701, %v2709
      %v2739 = vmul.f32 %v2702, %v2709
      %v2740 = vmul.f32 %v2703, %v2709
      %v2741 = vmul.f32 %v2704, %v2709
      %v2742 = vmul.f32 %v2705, %v2709
      %v2743 = vmul.f32 %v2706, %v2709
      %v2744 = vmul.f32 %v2707, %v2709
      %v2745 = vmul.f32 %v2708, %v2709
      %v2746 = vperm.slane %v297, 2
      %v2747 = vadd.f32 %v2710, %v2746
      %v2748 = vadd.f32 %v2711, %v2746
      %v2749 = vadd.f32 %v2712, %v2746
      %v2750 = vadd.f32 %v2713, %v2746
      %v2751 = vadd.f32 %v2714, %v2746
      %v2752 = vadd.f32 %v2715, %v2746
      %v2753 = vadd.f32 %v2716, %v2746
      %v2754 = vadd.f32 %v2717, %v2746
      %v2755 = vadd.f32 %v2718, %v2746
      %v2756 = vadd.f32 %v2719, %v2746
      %v2757 = vadd.f32 %v2720, %v2746
      %v2758 = vadd.f32 %v2721, %v2746
      %v2759 = vadd.f32 %v2722, %v2746
      %v2760 = vadd.f32 %v2723, %v2746
      %v2761 = vadd.f32 %v2724, %v2746
      %v2762 = vadd.f32 %v2725, %v2746
      %v2763 = vadd.f32 %v2726, %v2746
      %v2764 = vadd.f32 %v2727, %v2746
      %v2765 = vadd.f32 %v2728, %v2746
      %v2766 = vadd.f32 %v2729, %v2746
      %v2767 = vadd.f32 %v2730, %v2746
      %v2768 = vadd.f32 %v2731, %v2746
      %v2769 = vadd.f32 %v2732, %v2746
      %v2770 = vadd.f32 %v2733, %v2746
      %v2771 = vadd.f32 %v2734, %v2746
      %v2772 = vadd.f32 %v2735, %v2746
      %v2773 = vadd.f32 %v2736, %v2746
      %v2774 = vadd.f32 %v2737, %v2746
      %v2775 = vadd.f32 %v2738, %v2746
      %v2776 = vadd.f32 %v2739, %v2746
      %v2777 = vadd.f32 %v2740, %v2746
      %v2778 = vadd.f32 %v2741, %v2746
      %v2779 = vadd.f32 %v2742, %v2746
      %v2780 = vadd.f32 %v2743, %v2746
      %v2781 = vadd.f32 %v2744, %v2746
      %v2782 = vadd.f32 %v2745, %v2746
      %v2783 = vmax.f32 %v2747, 0.0
      %v2784 = vmax.f32 %v2748, 0.0
      %v2785 = vmax.f32 %v2749, 0.0
      %v2786 = vmax.f32 %v2750, 0.0
      %v2787 = vmax.f32 %v2751, 0.0
      %v2788 = vmax.f32 %v2752, 0.0
      %v2789 = vmax.f32 %v2753, 0.0
      %v2790 = vmax.f32 %v2754, 0.0
      %v2791 = vmax.f32 %v2755, 0.0
      %v2792 = vmax.f32 %v2756, 0.0
      %v2793 = vmax.f32 %v2757, 0.0
      %v2794 = vmax.f32 %v2758, 0.0
      %v2795 = vmax.f32 %v2759, 0.0
      %v2796 = vmax.f32 %v2760, 0.0
      %v2797 = vmax.f32 %v2761, 0.0
      %v2798 = vmax.f32 %v2762, 0.0
      %v2799 = vmax.f32 %v2763, 0.0
      %v2800 = vmax.f32 %v2764, 0.0
      %v2801 = vmax.f32 %v2765, 0.0
      %v2802 = vmax.f32 %v2766, 0.0
      %v2803 = vmax.f32 %v2767, 0.0
      %v2804 = vmax.f32 %v2768, 0.0
      %v2805 = vmax.f32 %v2769, 0.0
      %v2806 = vmax.f32 %v2770, 0.0
      %v2807 = vmax.f32 %v2771, 0.0
      %v2808 = vmax.f32 %v2772, 0.0
      %v2809 = vmax.f32 %v2773, 0.0
      %v2810 = vmax.f32 %v2774, 0.0
      %v2811 = vmax.f32 %v2775, 0.0
      %v2812 = vmax.f32 %v2776, 0.0
      %v2813 = vmax.f32 %v2777, 0.0
      %v2814 = vmax.f32 %v2778, 0.0
      %v2815 = vmax.f32 %v2779, 0.0
      %v2816 = vmax.f32 %v2780, 0.0
      %v2817 = vmax.f32 %v2781, 0.0
      %v2818 = vmax.f32 %v2782, 0.0
      %v2819 = vpack.c.bf16 %v2784, %v2783
      %v2820 = vpack.c.bf16 %v2786, %v2785
      %v2821 = vpack.c.bf16 %v2788, %v2787
      %v2822 = vpack.c.bf16 %v2790, %v2789
      %v2823 = vpack.c.bf16 %v2792, %v2791
      %v2824 = vpack.c.bf16 %v2794, %v2793
      %v2825 = vpack.c.bf16 %v2796, %v2795
      %v2826 = vpack.c.bf16 %v2798, %v2797
      %v2827 = vpack.c.bf16 %v2800, %v2799
      %v2828 = vpack.c.bf16 %v2802, %v2801
      %v2829 = vpack.c.bf16 %v2804, %v2803
      %v2830 = vpack.c.bf16 %v2806, %v2805
      %v2831 = vpack.c.bf16 %v2808, %v2807
      %v2832 = vpack.c.bf16 %v2810, %v2809
      %v2833 = vpack.c.bf16 %v2812, %v2811
      %v2834 = vpack.c.bf16 %v2814, %v2813
      %v2835 = vpack.c.bf16 %v2816, %v2815
      %v2836 = vpack.c.bf16 %v2818, %v2817
      %v2837 = vld [vmem:[%s4] sm:$0xf]
      %v2838 = vld [vmem:[%s4 + $0x4] sm:$0xf]
      %v2839 = vld [vmem:[%s4 + $0x8] sm:$0xf]
      %v2840 = vld [vmem:[%s4 + $0xc] sm:$0xf]
      %v2841 = vld [vmem:[%s4 + $0x10] sm:$0xf]
      %v2842 = vld [vmem:[%s4 + $0x14] sm:$0xf]
      %v2843 = vld [vmem:[%s4 + $0x18] sm:$0xf]
      %v2844 = vld [vmem:[%s4 + $0x1c] sm:$0xf]
      %v2845 = vperm.slane %v297, 3
      %v2854 = vunpack.c.l.b16 %v2837
      %v2855 = vunpack.c.l.b16 %v2838
      %v2856 = vunpack.c.l.b16 %v2839
      %v2857 = vunpack.c.l.b16 %v2840
      %v2858 = vunpack.c.l.b16 %v2841
      %v2859 = vunpack.c.l.b16 %v2842
      %v2860 = vunpack.c.l.b16 %v2843
      %v2861 = vunpack.c.l.b16 %v2844
      %v2862 = vpack.c.b16 %v2855, %v2854
      %v2863 = vpack.c.b16 %v2857, %v2856
      %v2864 = vpack.c.b16 %v2859, %v2858
      %v2865 = vpack.c.b16 %v2861, %v2860
      %v2871 = vsel %vm1079, %v2819, 0
      %v2874 = vsel %vm1079, %v2820, 0
      %v2877 = vsel %vm1079, %v2821, 0
      %v2880 = vsel %vm1079, %v2822, 0
      %v2883 = vsel %vm1079, %v2823, 0
      %v2886 = vsel %vm1079, %v2824, 0
      %v2889 = vsel %vm1079, %v2825, 0
      %v2892 = vsel %vm1079, %v2826, 0
      %v2895 = vsel %vm1079, %v2827, 0
      %v2898 = vsel %vm1079, %v2828, 0
      %v2901 = vsel %vm1079, %v2829, 0
      %v2904 = vsel %vm1079, %v2830, 0
      %v2907 = vsel %vm1079, %v2831, 0
      %v2910 = vsel %vm1079, %v2832, 0
      %v2913 = vsel %vm1079, %v2833, 0
      %v2916 = vsel %vm1079, %v2834, 0
      %v2919 = vsel %vm1079, %v2835, 0
      %v2922 = vsel %vm1079, %v2836, 0
      %2924 = vmatpush.bf16.msra.mxu0 0
      %2925 = vmatpush.bf16.msra.mxu0 0
      %2926 = vmatpush.bf16.msra.mxu0 0
      %2927 = vmatpush.bf16.msra.mxu0 0
      %2928 = vmatpush.bf16.msra.mxu0 %v2865
      %2929 = vmatpush.bf16.msra.mxu0 %v2864
      %2930 = vmatpush.bf16.msra.mxu0 %v2863
      %2931 = vmatpush.bf16.msra.mxu0 %v2862
      %2932 = vmatmul.bf16.gmra.mxu0 %v2871
      %v2933 = vpop.f32.mrf.mxu0
      %v2934 = vadd.f32 %v2845, %v2933
      %v2935 = vpop.f32.mrf.mxu0
      %v2936 = vadd.f32 %v2845, %v2935
      %2937 = vmatmul.bf16.gmra.mxu0 %v2874
      %v2938 = vpop.f32.mrf.mxu0
      %v2939 = vadd.f32 %v2845, %v2938
      %v2940 = vpop.f32.mrf.mxu0
      %v2941 = vadd.f32 %v2845, %v2940
      %2942 = vmatmul.bf16.gmra.mxu0 %v2877
      %v2943 = vpop.f32.mrf.mxu0
      %v2944 = vadd.f32 %v2845, %v2943
      %v2945 = vpop.f32.mrf.mxu0
      %v2946 = vadd.f32 %v2845, %v2945
      %2947 = vmatmul.bf16.gmra.mxu0 %v2880
      %v2948 = vpop.f32.mrf.mxu0
      %v2949 = vadd.f32 %v2845, %v2948
      %v2950 = vpop.f32.mrf.mxu0
      %v2951 = vadd.f32 %v2845, %v2950
      %2952 = vmatmul.bf16.gmra.mxu0 %v2883
      %v2953 = vpop.f32.mrf.mxu0
      %v2954 = vadd.f32 %v2845, %v2953
      %v2955 = vpop.f32.mrf.mxu0
      %v2956 = vadd.f32 %v2845, %v2955
      %2957 = vmatmul.bf16.gmra.mxu0 %v2886
      %v2958 = vpop.f32.mrf.mxu0
      %v2959 = vadd.f32 %v2845, %v2958
      %v2960 = vpop.f32.mrf.mxu0
      %v2961 = vadd.f32 %v2845, %v2960
      %2962 = vmatmul.bf16.gmra.mxu0 %v2889
      %v2963 = vpop.f32.mrf.mxu0
      %v2964 = vadd.f32 %v2845, %v2963
      %v2965 = vpop.f32.mrf.mxu0
      %v2966 = vadd.f32 %v2845, %v2965
      %2967 = vmatmul.bf16.gmra.mxu0 %v2892
      %v2968 = vpop.f32.mrf.mxu0
      %v2969 = vadd.f32 %v2845, %v2968
      %v2970 = vpop.f32.mrf.mxu0
      %v2971 = vadd.f32 %v2845, %v2970
      %2972 = vmatmul.bf16.gmra.mxu0 %v2895
      %v2973 = vpop.f32.mrf.mxu0
      %v2974 = vadd.f32 %v2845, %v2973
      %v2975 = vpop.f32.mrf.mxu0
      %v2976 = vadd.f32 %v2845, %v2975
      %2977 = vmatmul.bf16.gmra.mxu0 %v2898
      %v2978 = vpop.f32.mrf.mxu0
      %v2979 = vadd.f32 %v2845, %v2978
      %v2980 = vpop.f32.mrf.mxu0
      %v2981 = vadd.f32 %v2845, %v2980
      %2982 = vmatmul.bf16.gmra.mxu0 %v2901
      %v2983 = vpop.f32.mrf.mxu0
      %v2984 = vadd.f32 %v2845, %v2983
      %v2985 = vpop.f32.mrf.mxu0
      %v2986 = vadd.f32 %v2845, %v2985
      %2987 = vmatmul.bf16.gmra.mxu0 %v2904
      %v2988 = vpop.f32.mrf.mxu0
      %v2989 = vadd.f32 %v2845, %v2988
      %v2990 = vpop.f32.mrf.mxu0
      %v2991 = vadd.f32 %v2845, %v2990
      %2992 = vmatmul.bf16.gmra.mxu0 %v2907
      %v2993 = vpop.f32.mrf.mxu0
      %v2994 = vadd.f32 %v2845, %v2993
      %v2995 = vpop.f32.mrf.mxu0
      %v2996 = vadd.f32 %v2845, %v2995
      %2997 = vmatmul.bf16.gmra.mxu0 %v2910
      %v2998 = vpop.f32.mrf.mxu0
      %v2999 = vadd.f32 %v2845, %v2998
      %v3000 = vpop.f32.mrf.mxu0
      %v3001 = vadd.f32 %v2845, %v3000
      %3002 = vmatmul.bf16.gmra.mxu0 %v2913
      %v3003 = vpop.f32.mrf.mxu0
      %v3004 = vadd.f32 %v2845, %v3003
      %v3005 = vpop.f32.mrf.mxu0
      %v3006 = vadd.f32 %v2845, %v3005
      %3007 = vmatmul.bf16.gmra.mxu0 %v2916
      %v3008 = vpop.f32.mrf.mxu0
      %v3009 = vadd.f32 %v2845, %v3008
      %v3010 = vpop.f32.mrf.mxu0
      %v3011 = vadd.f32 %v2845, %v3010
      %3012 = vmatmul.bf16.gmra.mxu0 %v2919
      %v3013 = vpop.f32.mrf.mxu0
      %v3014 = vadd.f32 %v2845, %v3013
      %v3015 = vpop.f32.mrf.mxu0
      %v3016 = vadd.f32 %v2845, %v3015
      %3017 = vmatmul.bf16.gmra.mxu0 %v2922
      %v3018 = vpop.f32.mrf.mxu0
      %v3019 = vadd.f32 %v2845, %v3018
      %v3020 = vpop.f32.mrf.mxu0
      %v3021 = vadd.f32 %v2845, %v3020
      %3022 = vdwg.mxu0
      %v3023 = vmul.f32 %v2934, %v2191
      %v3024 = vmul.f32 %v2936, %v2196
      %v3025 = vmul.f32 %v2939, %v2201
      %v3026 = vmul.f32 %v2941, %v2206
      %v3027 = vmul.f32 %v2944, %v2211
      %v3028 = vmul.f32 %v2946, %v2216
      %v3029 = vmul.f32 %v2949, %v2221
      %v3030 = vmul.f32 %v2951, %v2226
      %v3031 = vmul.f32 %v2954, %v2231
      %v3032 = vmul.f32 %v2956, %v2236
      %v3033 = vmul.f32 %v2959, %v2241
      %v3034 = vmul.f32 %v2961, %v2246
      %v3035 = vmul.f32 %v2964, %v2251
      %v3036 = vmul.f32 %v2966, %v2256
      %v3037 = vmul.f32 %v2969, %v2261
      %v3038 = vmul.f32 %v2971, %v2266
      %v3039 = vmul.f32 %v2974, %v2271
      %v3040 = vmul.f32 %v2976, %v2276
      %v3041 = vmul.f32 %v2979, %v2281
      %v3042 = vmul.f32 %v2981, %v2286
      %v3043 = vmul.f32 %v2984, %v2291
      %v3044 = vmul.f32 %v2986, %v2296
      %v3045 = vmul.f32 %v2989, %v2301
      %v3046 = vmul.f32 %v2991, %v2306
      %v3047 = vmul.f32 %v2994, %v2311
      %v3048 = vmul.f32 %v2996, %v2316
      %v3049 = vmul.f32 %v2999, %v2321
      %v3050 = vmul.f32 %v3001, %v2326
      %v3051 = vmul.f32 %v3004, %v2331
      %v3052 = vmul.f32 %v3006, %v2336
      %v3053 = vmul.f32 %v3009, %v2341
      %v3054 = vmul.f32 %v3011, %v2346
      %v3055 = vmul.f32 %v3014, %v2351
      %v3056 = vmul.f32 %v3016, %v2356
      %v3057 = vmul.f32 %v3019, %v2361
      %v3058 = vmul.f32 %v3021, %v2366
      %v3059 = vsel %vm1079, %v3023, 0.0
      %v3060 = vsel %vm1079, %v3024, 0.0
      %v3061 = vadd.f32 %v3059, %v3060
      %v3062 = vsel %vm1079, %v3025, 0.0
      %v3063 = vadd.f32 %v3061, %v3062
      %v3064 = vsel %vm1079, %v3026, 0.0
      %v3065 = vadd.f32 %v3063, %v3064
      %v3066 = vsel %vm1079, %v3027, 0.0
      %v3067 = vadd.f32 %v3065, %v3066
      %v3068 = vsel %vm1079, %v3028, 0.0
      %v3069 = vadd.f32 %v3067, %v3068
      %v3070 = vsel %vm1079, %v3029, 0.0
      %v3071 = vadd.f32 %v3069, %v3070
      %v3072 = vsel %vm1079, %v3030, 0.0
      %v3073 = vadd.f32 %v3071, %v3072
      %v3074 = vsel %vm1079, %v3031, 0.0
      %v3075 = vadd.f32 %v3073, %v3074
      %v3076 = vsel %vm1079, %v3032, 0.0
      %v3077 = vadd.f32 %v3075, %v3076
      %v3078 = vsel %vm1079, %v3033, 0.0
      %v3079 = vadd.f32 %v3077, %v3078
      %v3080 = vsel %vm1079, %v3034, 0.0
      %v3081 = vadd.f32 %v3079, %v3080
      %v3082 = vsel %vm1079, %v3035, 0.0
      %v3083 = vadd.f32 %v3081, %v3082
      %v3084 = vsel %vm1079, %v3036, 0.0
      %v3085 = vadd.f32 %v3083, %v3084
      %v3086 = vsel %vm1079, %v3037, 0.0
      %v3087 = vadd.f32 %v3085, %v3086
      %v3088 = vsel %vm1079, %v3038, 0.0
      %v3089 = vadd.f32 %v3087, %v3088
      %v3090 = vsel %vm1079, %v3039, 0.0
      %v3091 = vadd.f32 %v3089, %v3090
      %v3092 = vsel %vm1079, %v3040, 0.0
      %v3093 = vadd.f32 %v3091, %v3092
      %v3094 = vsel %vm1079, %v3041, 0.0
      %v3095 = vadd.f32 %v3093, %v3094
      %v3096 = vsel %vm1079, %v3042, 0.0
      %v3097 = vadd.f32 %v3095, %v3096
      %v3098 = vsel %vm1079, %v3043, 0.0
      %v3099 = vadd.f32 %v3097, %v3098
      %v3100 = vsel %vm1079, %v3044, 0.0
      %v3101 = vadd.f32 %v3099, %v3100
      %v3102 = vsel %vm1079, %v3045, 0.0
      %v3103 = vadd.f32 %v3101, %v3102
      %v3104 = vsel %vm1079, %v3046, 0.0
      %v3105 = vadd.f32 %v3103, %v3104
      %v3106 = vsel %vm1079, %v3047, 0.0
      %v3107 = vadd.f32 %v3105, %v3106
      %v3108 = vsel %vm1079, %v3048, 0.0
      %v3109 = vadd.f32 %v3107, %v3108
      %v3110 = vsel %vm1079, %v3049, 0.0
      %v3111 = vadd.f32 %v3109, %v3110
      %v3112 = vsel %vm1079, %v3050, 0.0
      %v3113 = vadd.f32 %v3111, %v3112
      %v3114 = vsel %vm1079, %v3051, 0.0
      %v3115 = vadd.f32 %v3113, %v3114
      %v3116 = vsel %vm1079, %v3052, 0.0
      %v3117 = vadd.f32 %v3115, %v3116
      %v3118 = vsel %vm1079, %v3053, 0.0
      %v3119 = vadd.f32 %v3117, %v3118
      %v3120 = vsel %vm1079, %v3054, 0.0
      %v3121 = vadd.f32 %v3119, %v3120
      %v3122 = vsel %vm1079, %v3055, 0.0
      %v3123 = vadd.f32 %v3121, %v3122
      %v3124 = vsel %vm1079, %v3056, 0.0
      %v3125 = vadd.f32 %v3123, %v3124
      %v3126 = vsel %vm1079, %v3057, 0.0
      %v3127 = vadd.f32 %v3125, %v3126
      %v3128 = vsel %vm1079, %v3058, 0.0
      %v3129 = vadd.f32 %v3127, %v3128
      %v3130 = vrot.slane %v3129, 4
      %v3131 = vadd.f32 %v3129, %v3130
      %v3132 = vrot.slane %v3131, 2
      %v3133 = vadd.f32 %v3131, %v3132
      %v3134 = vrot.slane %v3133, 1
      %v3135 = vadd.f32 %v3133, %v3134
      %v3136 = vmul.f32 %v3023, %v3023
      %v3137 = vmul.f32 %v3024, %v3024
      %v3138 = vmul.f32 %v3025, %v3025
      %v3139 = vmul.f32 %v3026, %v3026
      %v3140 = vmul.f32 %v3027, %v3027
      %v3141 = vmul.f32 %v3028, %v3028
      %v3142 = vmul.f32 %v3029, %v3029
      %v3143 = vmul.f32 %v3030, %v3030
      %v3144 = vmul.f32 %v3031, %v3031
      %v3145 = vmul.f32 %v3032, %v3032
      %v3146 = vmul.f32 %v3033, %v3033
      %v3147 = vmul.f32 %v3034, %v3034
      %v3148 = vmul.f32 %v3035, %v3035
      %v3149 = vmul.f32 %v3036, %v3036
      %v3150 = vmul.f32 %v3037, %v3037
      %v3151 = vmul.f32 %v3038, %v3038
      %v3152 = vmul.f32 %v3039, %v3039
      %v3153 = vmul.f32 %v3040, %v3040
      %v3154 = vmul.f32 %v3041, %v3041
      %v3155 = vmul.f32 %v3042, %v3042
      %v3156 = vmul.f32 %v3043, %v3043
      %v3157 = vmul.f32 %v3044, %v3044
      %v3158 = vmul.f32 %v3045, %v3045
      %v3159 = vmul.f32 %v3046, %v3046
      %v3160 = vmul.f32 %v3047, %v3047
      %v3161 = vmul.f32 %v3048, %v3048
      %v3162 = vmul.f32 %v3049, %v3049
      %v3163 = vmul.f32 %v3050, %v3050
      %v3164 = vmul.f32 %v3051, %v3051
      %v3165 = vmul.f32 %v3052, %v3052
      %v3166 = vmul.f32 %v3053, %v3053
      %v3167 = vmul.f32 %v3054, %v3054
      %v3168 = vmul.f32 %v3055, %v3055
      %v3169 = vmul.f32 %v3056, %v3056
      %v3170 = vmul.f32 %v3057, %v3057
      %v3171 = vmul.f32 %v3058, %v3058
      %v3172 = vsel %vm1079, %v3136, 0.0
      %v3173 = vsel %vm1079, %v3137, 0.0
      %v3174 = vadd.f32 %v3172, %v3173
      %v3175 = vsel %vm1079, %v3138, 0.0
      %v3176 = vadd.f32 %v3174, %v3175
      %v3177 = vsel %vm1079, %v3139, 0.0
      %v3178 = vadd.f32 %v3176, %v3177
      %v3179 = vsel %vm1079, %v3140, 0.0
      %v3180 = vadd.f32 %v3178, %v3179
      %v3181 = vsel %vm1079, %v3141, 0.0
      %v3182 = vadd.f32 %v3180, %v3181
      %v3183 = vsel %vm1079, %v3142, 0.0
      %v3184 = vadd.f32 %v3182, %v3183
      %v3185 = vsel %vm1079, %v3143, 0.0
      %v3186 = vadd.f32 %v3184, %v3185
      %v3187 = vsel %vm1079, %v3144, 0.0
      %v3188 = vadd.f32 %v3186, %v3187
      %v3189 = vsel %vm1079, %v3145, 0.0
      %v3190 = vadd.f32 %v3188, %v3189
      %v3191 = vsel %vm1079, %v3146, 0.0
      %v3192 = vadd.f32 %v3190, %v3191
      %v3193 = vsel %vm1079, %v3147, 0.0
      %v3194 = vadd.f32 %v3192, %v3193
      %v3195 = vsel %vm1079, %v3148, 0.0
      %v3196 = vadd.f32 %v3194, %v3195
      %v3197 = vsel %vm1079, %v3149, 0.0
      %v3198 = vadd.f32 %v3196, %v3197
      %v3199 = vsel %vm1079, %v3150, 0.0
      %v3200 = vadd.f32 %v3198, %v3199
      %v3201 = vsel %vm1079, %v3151, 0.0
      %v3202 = vadd.f32 %v3200, %v3201
      %v3203 = vsel %vm1079, %v3152, 0.0
      %v3204 = vadd.f32 %v3202, %v3203
      %v3205 = vsel %vm1079, %v3153, 0.0
      %v3206 = vadd.f32 %v3204, %v3205
      %v3207 = vsel %vm1079, %v3154, 0.0
      %v3208 = vadd.f32 %v3206, %v3207
      %v3209 = vsel %vm1079, %v3155, 0.0
      %v3210 = vadd.f32 %v3208, %v3209
      %v3211 = vsel %vm1079, %v3156, 0.0
      %v3212 = vadd.f32 %v3210, %v3211
      %v3213 = vsel %vm1079, %v3157, 0.0
      %v3214 = vadd.f32 %v3212, %v3213
      %v3215 = vsel %vm1079, %v3158, 0.0
      %v3216 = vadd.f32 %v3214, %v3215
      %v3217 = vsel %vm1079, %v3159, 0.0
      %v3218 = vadd.f32 %v3216, %v3217
      %v3219 = vsel %vm1079, %v3160, 0.0
      %v3220 = vadd.f32 %v3218, %v3219
      %v3221 = vsel %vm1079, %v3161, 0.0
      %v3222 = vadd.f32 %v3220, %v3221
      %v3223 = vsel %vm1079, %v3162, 0.0
      %v3224 = vadd.f32 %v3222, %v3223
      %v3225 = vsel %vm1079, %v3163, 0.0
      %v3226 = vadd.f32 %v3224, %v3225
      %v3227 = vsel %vm1079, %v3164, 0.0
      %v3228 = vadd.f32 %v3226, %v3227
      %v3229 = vsel %vm1079, %v3165, 0.0
      %v3230 = vadd.f32 %v3228, %v3229
      %v3231 = vsel %vm1079, %v3166, 0.0
      %v3232 = vadd.f32 %v3230, %v3231
      %v3233 = vsel %vm1079, %v3167, 0.0
      %v3234 = vadd.f32 %v3232, %v3233
      %v3235 = vsel %vm1079, %v3168, 0.0
      %v3236 = vadd.f32 %v3234, %v3235
      %v3237 = vsel %vm1079, %v3169, 0.0
      %v3238 = vadd.f32 %v3236, %v3237
      %v3239 = vsel %vm1079, %v3170, 0.0
      %v3240 = vadd.f32 %v3238, %v3239
      %v3241 = vsel %vm1079, %v3171, 0.0
      %v3242 = vadd.f32 %v3240, %v3241
      %v3243 = vrot.slane %v3242, 4
      %v3244 = vadd.f32 %v3242, %v3243
      %v3245 = vrot.slane %v3244, 2
      %v3246 = vadd.f32 %v3244, %v3245
      %v3247 = vrot.slane %v3246, 1
      %v3248 = vadd.f32 %v3246, %v3247
      %v3249 = vsel %vm2594, %v3135, %v3248
      %v3251 = vsel %vm1079, %v3249, 0
      %3253 = vmatpush.msra.mxu0 0.0
      %3254 = vmatpush.msra.mxu0 0.0
      %3255 = vmatpush.msra.mxu0 0.0
      %3256 = vmatpush.msra.mxu0 0.0
      %3257 = vmatpush.msra.mxu0 0.0
      %3258 = vmatpush.msra.mxu0 0.0
      %3259 = vmatpush.msra.mxu0 0.0
      %3260 = vmatpush.msra.mxu0 0.0
      %3261 = vmatpush.msra.mxu0 %v296
      %3262 = vmatpush.msra.mxu0 %v295
      %3263 = vmatpush.msra.mxu0 %v294
      %3264 = vmatpush.msra.mxu0 %v293
      %3265 = vmatpush.msra.mxu0 %v292
      %3266 = vmatpush.msra.mxu0 %v291
      %3267 = vmatpush.msra.mxu0 %v290
      %3268 = vmatpush.msra.mxu0 %v289
      %3269 = vmatmul.f32.gmra.mxu0 %v3251
      %v3270 = vpop.f32.mrf.mxu0
      %v3271 = vadd.f32 0.0, %v3270
      %3272 = vdwg.mxu0
      %v3273 = vmul.f32 %v3271, %v3271
      %v3275 = vrot.slane %v3273, 7
      %v3277 = vsub.f32 %v3271, %v3275
      %v3278 = vadd.f32 %v3277, 1e-05
      %v3279 = vrsqrt.pop %v3278
      %v3280 = vmul.f32 %v3279, %v3278
      %v3281 = vmul.f32 %v3280, %v3279
      %v3282 = vmul.f32 0.5, %v3281
      %v3283 = vsub.f32 1.5, %v3282
      %v3284 = vmul.f32 %v3279, %v3283
      %vm3285 = vweird.f32 %v3278
      %vm3286 = vweird.f32 %v3279
      %vm3287 = vmor %vm3285, %vm3286
      %v3288 = vsel %vm3287, %v3279, %v3284
      %v3289 = vperm.slane %v3271, 0
      %v3290 = vsub.f32 %v2934, %v3289
      %v3291 = vsub.f32 %v2936, %v3289
      %v3292 = vsub.f32 %v2939, %v3289
      %v3293 = vsub.f32 %v2941, %v3289
      %v3294 = vsub.f32 %v2944, %v3289
      %v3295 = vsub.f32 %v2946, %v3289
      %v3296 = vsub.f32 %v2949, %v3289
      %v3297 = vsub.f32 %v2951, %v3289
      %v3298 = vsub.f32 %v2954, %v3289
      %v3299 = vsub.f32 %v2956, %v3289
      %v3300 = vsub.f32 %v2959, %v3289
      %v3301 = vsub.f32 %v2961, %v3289
      %v3302 = vsub.f32 %v2964, %v3289
      %v3303 = vsub.f32 %v2966, %v3289
      %v3304 = vsub.f32 %v2969, %v3289
      %v3305 = vsub.f32 %v2971, %v3289
      %v3306 = vsub.f32 %v2974, %v3289
      %v3307 = vsub.f32 %v2976, %v3289
      %v3308 = vsub.f32 %v2979, %v3289
      %v3309 = vsub.f32 %v2981, %v3289
      %v3310 = vsub.f32 %v2984, %v3289
      %v3311 = vsub.f32 %v2986, %v3289
      %v3312 = vsub.f32 %v2989, %v3289
      %v3313 = vsub.f32 %v2991, %v3289
      %v3314 = vsub.f32 %v2994, %v3289
      %v3315 = vsub.f32 %v2996, %v3289
      %v3316 = vsub.f32 %v2999, %v3289
      %v3317 = vsub.f32 %v3001, %v3289
      %v3318 = vsub.f32 %v3004, %v3289
      %v3319 = vsub.f32 %v3006, %v3289
      %v3320 = vsub.f32 %v3009, %v3289
      %v3321 = vsub.f32 %v3011, %v3289
      %v3322 = vsub.f32 %v3014, %v3289
      %v3323 = vsub.f32 %v3016, %v3289
      %v3324 = vsub.f32 %v3019, %v3289
      %v3325 = vsub.f32 %v3021, %v3289
      %v3326 = vperm.slane %v3288, 1
      %v3327 = vmul.f32 %v3290, %v3326
      %v3328 = vmul.f32 %v3291, %v3326
      %v3329 = vmul.f32 %v3292, %v3326
      %v3330 = vmul.f32 %v3293, %v3326
      %v3331 = vmul.f32 %v3294, %v3326
      %v3332 = vmul.f32 %v3295, %v3326
      %v3333 = vmul.f32 %v3296, %v3326
      %v3334 = vmul.f32 %v3297, %v3326
      %v3335 = vmul.f32 %v3298, %v3326
      %v3336 = vmul.f32 %v3299, %v3326
      %v3337 = vmul.f32 %v3300, %v3326
      %v3338 = vmul.f32 %v3301, %v3326
      %v3339 = vmul.f32 %v3302, %v3326
      %v3340 = vmul.f32 %v3303, %v3326
      %v3341 = vmul.f32 %v3304, %v3326
      %v3342 = vmul.f32 %v3305, %v3326
      %v3343 = vmul.f32 %v3306, %v3326
      %v3344 = vmul.f32 %v3307, %v3326
      %v3345 = vmul.f32 %v3308, %v3326
      %v3346 = vmul.f32 %v3309, %v3326
      %v3347 = vmul.f32 %v3310, %v3326
      %v3348 = vmul.f32 %v3311, %v3326
      %v3349 = vmul.f32 %v3312, %v3326
      %v3350 = vmul.f32 %v3313, %v3326
      %v3351 = vmul.f32 %v3314, %v3326
      %v3352 = vmul.f32 %v3315, %v3326
      %v3353 = vmul.f32 %v3316, %v3326
      %v3354 = vmul.f32 %v3317, %v3326
      %v3355 = vmul.f32 %v3318, %v3326
      %v3356 = vmul.f32 %v3319, %v3326
      %v3357 = vmul.f32 %v3320, %v3326
      %v3358 = vmul.f32 %v3321, %v3326
      %v3359 = vmul.f32 %v3322, %v3326
      %v3360 = vmul.f32 %v3323, %v3326
      %v3361 = vmul.f32 %v3324, %v3326
      %v3362 = vmul.f32 %v3325, %v3326
      %v3363 = vperm.slane %v297, 4
      %v3364 = vmul.f32 %v3327, %v3363
      %v3365 = vmul.f32 %v3328, %v3363
      %v3366 = vmul.f32 %v3329, %v3363
      %v3367 = vmul.f32 %v3330, %v3363
      %v3368 = vmul.f32 %v3331, %v3363
      %v3369 = vmul.f32 %v3332, %v3363
      %v3370 = vmul.f32 %v3333, %v3363
      %v3371 = vmul.f32 %v3334, %v3363
      %v3372 = vmul.f32 %v3335, %v3363
      %v3373 = vmul.f32 %v3336, %v3363
      %v3374 = vmul.f32 %v3337, %v3363
      %v3375 = vmul.f32 %v3338, %v3363
      %v3376 = vmul.f32 %v3339, %v3363
      %v3377 = vmul.f32 %v3340, %v3363
      %v3378 = vmul.f32 %v3341, %v3363
      %v3379 = vmul.f32 %v3342, %v3363
      %v3380 = vmul.f32 %v3343, %v3363
      %v3381 = vmul.f32 %v3344, %v3363
      %v3382 = vmul.f32 %v3345, %v3363
      %v3383 = vmul.f32 %v3346, %v3363
      %v3384 = vmul.f32 %v3347, %v3363
      %v3385 = vmul.f32 %v3348, %v3363
      %v3386 = vmul.f32 %v3349, %v3363
      %v3387 = vmul.f32 %v3350, %v3363
      %v3388 = vmul.f32 %v3351, %v3363
      %v3389 = vmul.f32 %v3352, %v3363
      %v3390 = vmul.f32 %v3353, %v3363
      %v3391 = vmul.f32 %v3354, %v3363
      %v3392 = vmul.f32 %v3355, %v3363
      %v3393 = vmul.f32 %v3356, %v3363
      %v3394 = vmul.f32 %v3357, %v3363
      %v3395 = vmul.f32 %v3358, %v3363
      %v3396 = vmul.f32 %v3359, %v3363
      %v3397 = vmul.f32 %v3360, %v3363
      %v3398 = vmul.f32 %v3361, %v3363
      %v3399 = vmul.f32 %v3362, %v3363
      %v3400 = vperm.slane %v297, 5
      %v3401 = vadd.f32 %v3364, %v3400
      %v3402 = vadd.f32 %v3365, %v3400
      %v3403 = vadd.f32 %v3366, %v3400
      %v3404 = vadd.f32 %v3367, %v3400
      %v3405 = vadd.f32 %v3368, %v3400
      %v3406 = vadd.f32 %v3369, %v3400
      %v3407 = vadd.f32 %v3370, %v3400
      %v3408 = vadd.f32 %v3371, %v3400
      %v3409 = vadd.f32 %v3372, %v3400
      %v3410 = vadd.f32 %v3373, %v3400
      %v3411 = vadd.f32 %v3374, %v3400
      %v3412 = vadd.f32 %v3375, %v3400
      %v3413 = vadd.f32 %v3376, %v3400
      %v3414 = vadd.f32 %v3377, %v3400
      %v3415 = vadd.f32 %v3378, %v3400
      %v3416 = vadd.f32 %v3379, %v3400
      %v3417 = vadd.f32 %v3380, %v3400
      %v3418 = vadd.f32 %v3381, %v3400
      %v3419 = vadd.f32 %v3382, %v3400
      %v3420 = vadd.f32 %v3383, %v3400
      %v3421 = vadd.f32 %v3384, %v3400
      %v3422 = vadd.f32 %v3385, %v3400
      %v3423 = vadd.f32 %v3386, %v3400
      %v3424 = vadd.f32 %v3387, %v3400
      %v3425 = vadd.f32 %v3388, %v3400
      %v3426 = vadd.f32 %v3389, %v3400
      %v3427 = vadd.f32 %v3390, %v3400
      %v3428 = vadd.f32 %v3391, %v3400
      %v3429 = vadd.f32 %v3392, %v3400
      %v3430 = vadd.f32 %v3393, %v3400
      %v3431 = vadd.f32 %v3394, %v3400
      %v3432 = vadd.f32 %v3395, %v3400
      %v3433 = vadd.f32 %v3396, %v3400
      %v3434 = vadd.f32 %v3397, %v3400
      %v3435 = vadd.f32 %v3398, %v3400
      %v3436 = vadd.f32 %v3399, %v3400
      %v3437 = vunpack.c.l.bf16 %v336
      %v3438 = vunpack.c.l.bf16 %v301
      %v3439 = vunpack.c.l.bf16 %v302
      %v3440 = vunpack.c.l.bf16 %v303
      %v3441 = vunpack.c.l.bf16 %v304
      %v3442 = vunpack.c.l.bf16 %v305
      %v3443 = vunpack.c.l.bf16 %v306
      %v3444 = vunpack.c.l.bf16 %v307
      %v3445 = vunpack.c.l.bf16 %v308
      %v3446 = vunpack.c.l.bf16 %v309
      %v3447 = vunpack.c.l.bf16 %v310
      %v3448 = vunpack.c.l.bf16 %v311
      %v3449 = vunpack.c.l.bf16 %v312
      %v3450 = vunpack.c.l.bf16 %v313
      %v3451 = vunpack.c.l.bf16 %v314
      %v3452 = vunpack.c.l.bf16 %v315
      %v3453 = vunpack.c.l.bf16 %v316
      %v3454 = vunpack.c.l.bf16 %v317
      %v3455 = vunpack.c.l.bf16 %v318
      %v3456 = vunpack.c.l.bf16 %v319
      %v3457 = vunpack.c.l.bf16 %v320
      %v3458 = vunpack.c.l.bf16 %v321
      %v3459 = vunpack.c.l.bf16 %v322
      %v3460 = vunpack.c.l.bf16 %v323
      %v3461 = vunpack.c.l.bf16 %v324
      %v3462 = vunpack.c.l.bf16 %v325
      %v3463 = vunpack.c.l.bf16 %v326
      %v3464 = vunpack.c.l.bf16 %v327
      %v3465 = vunpack.c.l.bf16 %v328
      %v3466 = vunpack.c.l.bf16 %v329
      %v3467 = vunpack.c.l.bf16 %v330
      %v3468 = vunpack.c.l.bf16 %v331
      %v3469 = vunpack.c.l.bf16 %v332
      %v3470 = vunpack.c.l.bf16 %v333
      %v3471 = vunpack.c.l.bf16 %v337
      %v3472 = vunpack.c.l.bf16 %v338
      %v3473 = vunpack.c.l.bf16 %v340
      %vm3511 = vcmask 1044480
      %v3512 = vrot.slane %v3437, 3
      %v3513 = vrot.slane %v3438, 3
      %v3514 = vsel %vm3511, %v3512, %v3513
      %v3515 = vrot.slane %v3439, 3
      %v3516 = vsel %vm3511, %v3513, %v3515
      %v3517 = vrot.slane %v3440, 3
      %v3518 = vsel %vm3511, %v3515, %v3517
      %v3519 = vrot.slane %v3441, 3
      %v3520 = vsel %vm3511, %v3517, %v3519
      %v3521 = vrot.slane %v3442, 3
      %v3522 = vsel %vm3511, %v3519, %v3521
      %v3523 = vrot.slane %v3443, 3
      %v3524 = vsel %vm3511, %v3521, %v3523
      %v3525 = vrot.slane %v3444, 3
      %v3526 = vsel %vm3511, %v3523, %v3525
      %v3527 = vrot.slane %v3445, 3
      %v3528 = vsel %vm3511, %v3525, %v3527
      %v3529 = vrot.slane %v3446, 3
      %v3530 = vsel %vm3511, %v3527, %v3529
      %v3531 = vrot.slane %v3447, 3
      %v3532 = vsel %vm3511, %v3529, %v3531
      %v3533 = vrot.slane %v3448, 3
      %v3534 = vsel %vm3511, %v3531, %v3533
      %v3535 = vrot.slane %v3449, 3
      %v3536 = vsel %vm3511, %v3533, %v3535
      %v3537 = vrot.slane %v3450, 3
      %v3538 = vsel %vm3511, %v3535, %v3537
      %v3539 = vrot.slane %v3451, 3
      %v3540 = vsel %vm3511, %v3537, %v3539
      %v3541 = vrot.slane %v3452, 3
      %v3542 = vsel %vm3511, %v3539, %v3541
      %v3543 = vrot.slane %v3453, 3
      %v3544 = vsel %vm3511, %v3541, %v3543
      %v3545 = vrot.slane %v3454, 3
      %v3546 = vsel %vm3511, %v3543, %v3545
      %v3547 = vrot.slane %v3455, 3
      %v3548 = vsel %vm3511, %v3545, %v3547
      %v3549 = vrot.slane %v3456, 3
      %v3550 = vsel %vm3511, %v3547, %v3549
      %v3551 = vrot.slane %v3457, 3
      %v3552 = vsel %vm3511, %v3549, %v3551
      %v3553 = vrot.slane %v3458, 3
      %v3554 = vsel %vm3511, %v3551, %v3553
      %v3555 = vrot.slane %v3459, 3
      %v3556 = vsel %vm3511, %v3553, %v3555
      %v3557 = vrot.slane %v3460, 3
      %v3558 = vsel %vm3511, %v3555, %v3557
      %v3559 = vrot.slane %v3461, 3
      %v3560 = vsel %vm3511, %v3557, %v3559
      %v3561 = vrot.slane %v3462, 3
      %v3562 = vsel %vm3511, %v3559, %v3561
      %v3563 = vrot.slane %v3463, 3
      %v3564 = vsel %vm3511, %v3561, %v3563
      %v3565 = vrot.slane %v3464, 3
      %v3566 = vsel %vm3511, %v3563, %v3565
      %v3567 = vrot.slane %v3465, 3
      %v3568 = vsel %vm3511, %v3565, %v3567
      %v3569 = vrot.slane %v3466, 3
      %v3570 = vsel %vm3511, %v3567, %v3569
      %v3571 = vrot.slane %v3467, 3
      %v3572 = vsel %vm3511, %v3569, %v3571
      %v3573 = vrot.slane %v3468, 3
      %v3574 = vsel %vm3511, %v3571, %v3573
      %v3575 = vrot.slane %v3469, 3
      %v3576 = vsel %vm3511, %v3573, %v3575
      %v3577 = vrot.slane %v3470, 3
      %v3578 = vsel %vm3511, %v3575, %v3577
      %v3579 = vrot.slane %v3471, 3
      %v3580 = vsel %vm3511, %v3577, %v3579
      %v3581 = vrot.slane %v3472, 3
      %v3582 = vsel %vm3511, %v3579, %v3581
      %v3583 = vrot.slane %v3473, 3
      %v3584 = vsel %vm3511, %v3581, %v3583
      %v3621 = vadd.f32 %v3401, %v3514
      %v3622 = vadd.f32 %v3402, %v3516
      %v3623 = vadd.f32 %v3403, %v3518
      %v3624 = vadd.f32 %v3404, %v3520
      %v3625 = vadd.f32 %v3405, %v3522
      %v3626 = vadd.f32 %v3406, %v3524
      %v3627 = vadd.f32 %v3407, %v3526
      %v3628 = vadd.f32 %v3408, %v3528
      %v3629 = vadd.f32 %v3409, %v3530
      %v3630 = vadd.f32 %v3410, %v3532
      %v3631 = vadd.f32 %v3411, %v3534
      %v3632 = vadd.f32 %v3412, %v3536
      %v3633 = vadd.f32 %v3413, %v3538
      %v3634 = vadd.f32 %v3414, %v3540
      %v3635 = vadd.f32 %v3415, %v3542
      %v3636 = vadd.f32 %v3416, %v3544
      %v3637 = vadd.f32 %v3417, %v3546
      %v3638 = vadd.f32 %v3418, %v3548
      %v3639 = vadd.f32 %v3419, %v3550
      %v3640 = vadd.f32 %v3420, %v3552
      %v3641 = vadd.f32 %v3421, %v3554
      %v3642 = vadd.f32 %v3422, %v3556
      %v3643 = vadd.f32 %v3423, %v3558
      %v3644 = vadd.f32 %v3424, %v3560
      %v3645 = vadd.f32 %v3425, %v3562
      %v3646 = vadd.f32 %v3426, %v3564
      %v3647 = vadd.f32 %v3427, %v3566
      %v3648 = vadd.f32 %v3428, %v3568
      %v3649 = vadd.f32 %v3429, %v3570
      %v3650 = vadd.f32 %v3430, %v3572
      %v3651 = vadd.f32 %v3431, %v3574
      %v3652 = vadd.f32 %v3432, %v3576
      %v3653 = vadd.f32 %v3433, %v3578
      %v3654 = vadd.f32 %v3434, %v3580
      %v3655 = vadd.f32 %v3435, %v3582
      %v3656 = vadd.f32 %v3436, %v3584
      %v3657 = vmax.f32 %v3621, 0.0
      %v3658 = vmax.f32 %v3622, 0.0
      %v3659 = vmax.f32 %v3623, 0.0
      %v3660 = vmax.f32 %v3624, 0.0
      %v3661 = vmax.f32 %v3625, 0.0
      %v3662 = vmax.f32 %v3626, 0.0
      %v3663 = vmax.f32 %v3627, 0.0
      %v3664 = vmax.f32 %v3628, 0.0
      %v3665 = vmax.f32 %v3629, 0.0
      %v3666 = vmax.f32 %v3630, 0.0
      %v3667 = vmax.f32 %v3631, 0.0
      %v3668 = vmax.f32 %v3632, 0.0
      %v3669 = vmax.f32 %v3633, 0.0
      %v3670 = vmax.f32 %v3634, 0.0
      %v3671 = vmax.f32 %v3635, 0.0
      %v3672 = vmax.f32 %v3636, 0.0
      %v3673 = vmax.f32 %v3637, 0.0
      %v3674 = vmax.f32 %v3638, 0.0
      %v3675 = vmax.f32 %v3639, 0.0
      %v3676 = vmax.f32 %v3640, 0.0
      %v3677 = vmax.f32 %v3641, 0.0
      %v3678 = vmax.f32 %v3642, 0.0
      %v3679 = vmax.f32 %v3643, 0.0
      %v3680 = vmax.f32 %v3644, 0.0
      %v3681 = vmax.f32 %v3645, 0.0
      %v3682 = vmax.f32 %v3646, 0.0
      %v3683 = vmax.f32 %v3647, 0.0
      %v3684 = vmax.f32 %v3648, 0.0
      %v3685 = vmax.f32 %v3649, 0.0
      %v3686 = vmax.f32 %v3650, 0.0
      %v3687 = vmax.f32 %v3651, 0.0
      %v3688 = vmax.f32 %v3652, 0.0
      %v3689 = vmax.f32 %v3653, 0.0
      %v3690 = vmax.f32 %v3654, 0.0
      %v3691 = vmax.f32 %v3655, 0.0
      %v3692 = vmax.f32 %v3656, 0.0
      %3693 = vst.msk [vmem:[%s251] sm:$0xff] %vm1079, %v3657
      %3694 = vst.msk [vmem:[%s251 + $0x8] sm:$0xff] %vm1079, %v3658
      %3695 = vst.msk [vmem:[%s251 + $0x10] sm:$0xff] %vm1079, %v3659
      %3696 = vst.msk [vmem:[%s251 + $0x18] sm:$0xff] %vm1079, %v3660
      %3697 = vst.msk [vmem:[%s251 + $0x20] sm:$0xff] %vm1079, %v3661
      %3698 = vst.msk [vmem:[%s251 + $0x28] sm:$0xff] %vm1079, %v3662
      %3699 = vst.msk [vmem:[%s251 + $0x30] sm:$0xff] %vm1079, %v3663
      %3700 = vst.msk [vmem:[%s251 + $0x38] sm:$0xff] %vm1079, %v3664
      %3701 = vst.msk [vmem:[%s251 + $0x40] sm:$0xff] %vm1079, %v3665
      %3702 = vst.msk [vmem:[%s251 + $0x48] sm:$0xff] %vm1079, %v3666
      %3703 = vst.msk [vmem:[%s251 + $0x50] sm:$0xff] %vm1079, %v3667
      %3704 = vst.msk [vmem:[%s251 + $0x58] sm:$0xff] %vm1079, %v3668
      %3705 = vst.msk [vmem:[%s251 + $0x60] sm:$0xff] %vm1079, %v3669
      %3706 = vst.msk [vmem:[%s251 + $0x68] sm:$0xff] %vm1079, %v3670
      %3707 = vst.msk [vmem:[%s251 + $0x70] sm:$0xff] %vm1079, %v3671
      %3708 = vst.msk [vmem:[%s251 + $0x78] sm:$0xff] %vm1079, %v3672
      %3709 = vst.msk [vmem:[%s251 + $0x80] sm:$0xff] %vm1079, %v3673
      %3710 = vst.msk [vmem:[%s251 + $0x88] sm:$0xff] %vm1079, %v3674
      %3711 = vst.msk [vmem:[%s251 + $0x90] sm:$0xff] %vm1079, %v3675
      %3712 = vst.msk [vmem:[%s251 + $0x98] sm:$0xff] %vm1079, %v3676
      %3713 = vst.msk [vmem:[%s251 + $0xa0] sm:$0xff] %vm1079, %v3677
      %3714 = vst.msk [vmem:[%s251 + $0xa8] sm:$0xff] %vm1079, %v3678
      %3715 = vst.msk [vmem:[%s251 + $0xb0] sm:$0xff] %vm1079, %v3679
      %3716 = vst.msk [vmem:[%s251 + $0xb8] sm:$0xff] %vm1079, %v3680
      %3717 = vst.msk [vmem:[%s251 + $0xc0] sm:$0xff] %vm1079, %v3681
      %3718 = vst.msk [vmem:[%s251 + $0xc8] sm:$0xff] %vm1079, %v3682
      %3719 = vst.msk [vmem:[%s251 + $0xd0] sm:$0xff] %vm1079, %v3683
      %3720 = vst.msk [vmem:[%s251 + $0xd8] sm:$0xff] %vm1079, %v3684
      %3721 = vst.msk [vmem:[%s251 + $0xe0] sm:$0xff] %vm1079, %v3685
      %3722 = vst.msk [vmem:[%s251 + $0xe8] sm:$0xff] %vm1079, %v3686
      %3723 = vst.msk [vmem:[%s251 + $0xf0] sm:$0xff] %vm1079, %v3687
      %3724 = vst.msk [vmem:[%s251 + $0xf8] sm:$0xff] %vm1079, %v3688
      %3725 = vst.msk [vmem:[%s251 + $0x100] sm:$0xff] %vm1079, %v3689
      %3726 = vst.msk [vmem:[%s251 + $0x108] sm:$0xff] %vm1079, %v3690
      %3727 = vst.msk [vmem:[%s251 + $0x110] sm:$0xff] %vm1079, %v3691
      %3728 = vst.msk [vmem:[%s251 + $0x118] sm:$0xff] %vm1079, %v3692
      %p3729 = scmp.lt.s32.totalorder %s17, 1
      %s3730 = scalar_select %p3729, %s17, 1
      %s3731 = smul.addr %s3730, 36
      %s3732 = smul.addr %s3731, 8
      %s3733 = scalar_lea.vmem %s6, %s3732
      // Predicated region
      $region45: #{residual_block_forward.1} parent=43 // pred_check
        %p3734 = pneg %p166
      $region46: #{residual_block_forward.1} parent=43 // pred_check_branch
        %3736 = sbr.rel (%p3734) target = $region48
      $region47: #{residual_block_forward.1} parent=43 // pred_region
        _
      $region48: #{residual_block_forward.1} parent=43 // pred_fallthru
        _
    $region44: #{residual_block_forward.1} parent=5 // pred_fallthru
      _
    %p3737 = scmp.le.s32.totalorder 2, %s12
    // Predicated region
    $region49: #{residual_block_forward.1} parent=5 // pred_check
      %p3738 = pneg %p3737
    $region50: #{residual_block_forward.1} parent=5 // pred_check_branch
      %3740 = sbr.rel (%p3738) target = $region52
    $region51: #{residual_block_forward.1} parent=5 // pred_region
      %s3741 = ssub.s32 %s12, 2
      // Predicated region
      $region53: #{residual_block_forward.1} parent=51 // pred_check
        %p3742 = pneg %p172
      $region54: #{residual_block_forward.1} parent=51 // pred_check_branch
        %3744 = sbr.rel (%p3742) target = $region56
      $region55: #{residual_block_forward.1} parent=51 // pred_region
        %p3745 = scmp.lt.s32.totalorder %s18, 1
        %s3746 = scalar_select %p3745, %s18, 1
        %s3747 = smul.addr %s3746, 36
        %s3748 = smul.addr %s3747, 8
        %s3749 = scalar_lea.vmem %s6, %s3748
      $region56: #{residual_block_forward.1} parent=51 // pred_fallthru
        _
    $region52: #{residual_block_forward.1} parent=5 // pred_fallthru
      _
  $region6: #{residual_block_forward.1} parent=0 // loop_footer
    %s16 = sadd.s32 1, %s12
  $region7: #{residual_block_forward.1} parent=0 // loop_footer_branch
    %11 = sbr.rel target = $region3
  $region8: #{residual_block_forward.1} parent=0 // loop_exit
    _

</llo_original>
